<compile_context>
chip_gen: v5e
topology: v5e:2x2
jax: 0.10.0
libtpu: 0.0.40
codegen_flags: <defaults>
</compile_context>

<pallas_src>
import jax
import jax.numpy as jnp
import numpy as np
from jax import lax
from jax.experimental import pallas as pl
from jax.experimental.pallas import tpu as pltpu


def _round_up(x, m):
    return ((x + m - 1) // m) * m


def _full_spec(shape):
    """Whole-array block, same block for every grid step (kept resident)."""
    nd = len(shape)
    return pl.BlockSpec(shape, lambda c, nd=nd: (0,) * nd)


def _vmem_budget_bytes():
    """VMEM budget: physical capacity minus headroom, capped at 100 MiB."""
    try:
        cap = int(pltpu.get_tpu_info().vmem_capacity_bytes)
    except Exception:
        cap = 64 * 1024 * 1024          # v7x-safe fallback
    return int(min(cap - 8 * 1024 * 1024, 100 * 1024 * 1024))


def _pick_time_chunk(T, Bp, Hp, E, L, Vp, budget):
    """Largest divisor of T whose per-chunk VMEM footprint fits the budget."""
    fixed = 0
    fixed += (E * 4 * Hp) * 2 + 4 * Hp * 4                 # layer-0 W_ih (bf16) + bias
    fixed += (L - 1) * ((Hp * 4 * Hp) * 2 + 4 * Hp * 4)    # deeper-layer W_ih + bias
    fixed += L * (Hp * 4 * Hp) * 2                         # W_hh (bf16)
    fixed += Hp * Vp * 2 + Vp * 4                          # fc weights / bias
    fixed += 2 * (2 * L * Bp * Hp * 4)                     # h/c state + hn/cn out buffers
    fixed += Bp * Vp * 4                                   # logits out buffer

    def chunk_bytes(Tc):
        b = 2 * (Tc * Bp * E * 2)                          # double-buffered x chunk (bf16)
        b += Tc * Bp * 4 * Hp * 4                          # input-projection gates (f32)
        if L > 1:
            b += Tc * Bp * Hp * 4                          # inter-layer hidden seq (f32)
        return b

    best = 1
    for Tc in range(1, T + 1):
        if T % Tc == 0 and fixed + chunk_bytes(Tc) <= 0.7 * budget:
            best = Tc
    return best


# ----------------------------------------------------------------------------
# Fused kernel: L LSTM layers + final Linear, time-chunked over the grid.
# ----------------------------------------------------------------------------
def _make_char_lstm_kernel(num_layers, Tc, Bp, Hp):
    def kernel(*refs):
        # ---- unpack refs: inputs..., outputs..., scratch... -----------------
        x_ref = refs[0]                       # (Tc*Bp, E)   embedded input chunk (bf16)
        pos = 1
        layer_refs = []
        for _ in range(num_layers):
            layer_refs.append((refs[pos],      # wih  (in, 4Hp)  bf16
                               refs[pos + 1],  # whh  (Hp, 4Hp)  bf16
                               refs[pos + 2])) # bias (1, 4Hp)   f32 (= b_ih + b_hh)
            pos += 3
        fcw_ref = refs[pos]                   # (Hp, Vp) bf16
        fcb_ref = refs[pos + 1]               # (1, Vp)  f32
        pos += 2
        logits_ref = refs[pos]                # (Bp, Vp)
        hn_ref = refs[pos + 1]                # (L, Bp, Hp)
        cn_ref = refs[pos + 2]                # (L, Bp, Hp)
        pos += 3
        h_state = refs[pos]                   # (L, Bp, Hp) f32  running h per layer
        c_state = refs[pos + 1]               # (L, Bp, Hp) f32  running c per layer
        gates_sc = refs[pos + 2]              # (Tc*Bp, 4Hp) f32 per-chunk input gates
        hseq_sc = refs[pos + 3] if num_layers > 1 else None  # (Tc*Bp, Hp) f32

        chunk = pl.program_id(0)

        @pl.when(chunk == 0)
        def _():
            h_state[...] = jnp.zeros_like(h_state)
            c_state[...] = jnp.zeros_like(c_state)

        unroll = Tc if Tc <= 8 else 8

        for l, (wih_ref, whh_ref, b_ref) in enumerate(layer_refs):
            # Hoisted input projection for the whole chunk: one MXU matmul.
            if l == 0:
                src = x_ref[...]
            else:
                src = hseq_sc[...].astype(jnp.bfloat16)
            gates_sc[...] = (
                jnp.dot(src, wih_ref[...], preferred_element_type=jnp.float32)
                + b_ref[...])

            def step(t, carry, whh_ref=whh_ref, l=l):
                h, c = carry
                row = pl.multiple_of(t * Bp, Bp)
                g = (gates_sc[pl.ds(row, Bp), :]
                     + jnp.dot(h.astype(jnp.bfloat16), whh_ref[...],
                               preferred_element_type=jnp.float32))   # (Bp, 4Hp)
                # Gates repacked [i, f, o, g]: one sigmoid over 3*Hp lanes.
                sig = jax.nn.sigmoid(g[:, 0:3 * Hp])
                i_g = sig[:, 0 * Hp:1 * Hp]
                f_g = sig[:, 1 * Hp:2 * Hp]
                o_g = sig[:, 2 * Hp:3 * Hp]
                g_g = jnp.tanh(g[:, 3 * Hp:4 * Hp])
                c_new = f_g * c + i_g * g_g
                h_new = o_g * jnp.tanh(c_new)
                if l < num_layers - 1:
                    hseq_sc[pl.ds(row, Bp), :] = h_new
                return (h_new, c_new)

            h_f, c_f = lax.fori_loop(
                0, Tc, step,
                (h_state[l, :, :], c_state[l, :, :]),
                unroll=unroll)
            h_state[l, :, :] = h_f
            c_state[l, :, :] = c_f

        @pl.when(chunk == pl.num_programs(0) - 1)
        def _():
            hn_ref[...] = h_state[...]
            cn_ref[...] = c_state[...]
            logits_ref[...] = (
                jnp.dot(h_state[num_layers - 1, :, :].astype(jnp.bfloat16),
                        fcw_ref[...], preferred_element_type=jnp.float32)
                + fcb_ref[...])

    return kernel


# ----------------------------------------------------------------------------
# CharLSTM forward (glue + padding in JAX, hot path in one Pallas call)
# ----------------------------------------------------------------------------
def char_lstm_forward(params, tokens):
    """tokens: (B, T) int32. Returns (logits (B,V), (h_n, c_n)) like PyTorch."""
    B, T = tokens.shape
    E = params["embed"].shape[1]
    H = params["lstm"][0]["w_hh"].shape[1]
    L = len(params["lstm"])
    V = params["fc_w"].shape[0]

    Bp = _round_up(B, 8)      # sublane alignment
    Hp = _round_up(H, 128)    # lane alignment: each gate is a full 128-lane slab
    Vp = _round_up(V, 128)    # lane-dense logits store

    budget = _vmem_budget_bytes()
    Tc = _pick_time_chunk(T, Bp, Hp, E, L, Vp, budget)
    num_chunks = T // Tc

    # Embedding lookup (gather) stays in plain JAX.
    # TODO(synk): could be fused via scalar-prefetched token ids; minor at E=16.
    x = jnp.take(params["embed"], tokens, axis=0)          # (B, T, E)
    x = jnp.transpose(x, (1, 0, 2))                        # (T, B, E) time-major
    x = jnp.pad(x, ((0, 0), (0, Bp - B), (0, 0)))          # (T, Bp, E)
    x2d = x.reshape(T * Bp, E).astype(jnp.bfloat16)

    # Repack gate blocks [i,f,g,o] -> [i,f,o,g] and zero-pad H inside each
    # block, so padded hidden units stay exactly 0 through the recurrence.
    perm = jnp.array([0, 1, 3, 2])

    def pad_gate_mat(w):                                   # (4H, in) -> (4Hp, in)
        in_sz = w.shape[1]
        w4 = w.reshape(4, H, in_sz)[perm]
        return jnp.pad(w4, ((0, 0), (0, Hp - H), (0, 0))).reshape(4 * Hp, in_sz)

    def pad_gate_vec(b):                                   # (4H,) -> (4Hp,)
        b4 = b.reshape(4, H)[perm]
        return jnp.pad(b4, ((0, 0), (0, Hp - H))).reshape(4 * Hp)

    inputs = [x2d]
    in_specs = [pl.BlockSpec((Tc * Bp, E), lambda c: (c, 0))]
    for l, lp in enumerate(params["lstm"]):
        wih = pad_gate_mat(lp["w_ih"])                     # (4Hp, E) or (4Hp, H)
        if l > 0:
            wih = jnp.pad(wih, ((0, 0), (0, Hp - H)))      # pad hidden input cols
        whh = jnp.pad(pad_gate_mat(lp["w_hh"]),
                      ((0, 0), (0, Hp - H)))               # (4Hp, Hp)
        bias = pad_gate_vec(lp["b_ih"] + lp["b_hh"])       # (4Hp,)
        # Pre-transpose so the kernel does plain (M,K)x(K,4Hp) bf16 MXU matmuls.
        wih_t = jnp.transpose(wih).astype(jnp.bfloat16)
        whh_t = jnp.transpose(whh).astype(jnp.bfloat16)
        bias2 = bias.reshape(1, 4 * Hp).astype(jnp.float32)
        inputs += [wih_t, whh_t, bias2]
        in_specs += [_full_spec(wih_t.shape), _full_spec(whh_t.shape),
                     _full_spec(bias2.shape)]

    fcw = jnp.pad(jnp.transpose(params["fc_w"]),
                  ((0, Hp - H), (0, Vp - V))).astype(jnp.bfloat16)   # (Hp, Vp)
    fcb = jnp.pad(params["fc_b"], (0, Vp - V)).reshape(1, Vp).astype(jnp.float32)
    inputs += [fcw, fcb]
    in_specs += [_full_spec(fcw.shape), _full_spec(fcb.shape)]

    kernel = _make_char_lstm_kernel(L, Tc, Bp, Hp)

    scratch_shapes = [
        pltpu.VMEM((L, Bp, Hp), jnp.float32),        # running h per layer
        pltpu.VMEM((L, Bp, Hp), jnp.float32),        # running c per layer
        pltpu.VMEM((Tc * Bp, 4 * Hp), jnp.float32),  # per-chunk input-proj gates
    ]
    if L > 1:
        scratch_shapes.append(pltpu.VMEM((Tc * Bp, Hp), jnp.float32))

    # TODO(synk): on v7x (2 TCs) a leading "parallel" batch-shard axis would
    # double throughput once Bp >= 16; at Bp=8 it is not applicable.
    logits_p, hn_p, cn_p = pl.pallas_call(
        kernel,
        out_shape=(
            jax.ShapeDtypeStruct((Bp, Vp), jnp.float32),
            jax.ShapeDtypeStruct((L, Bp, Hp), jnp.float32),
            jax.ShapeDtypeStruct((L, Bp, Hp), jnp.float32),
        ),
        grid_spec=pltpu.PrefetchScalarGridSpec(
            num_scalar_prefetch=0,
            grid=(num_chunks,),
            in_specs=in_specs,
            out_specs=[
                _full_spec((Bp, Vp)),
                _full_spec((L, Bp, Hp)),
                _full_spec((L, Bp, Hp)),
            ],
            scratch_shapes=scratch_shapes,
        ),
        compiler_params=pltpu.CompilerParams(
            dimension_semantics=("arbitrary",),
            vmem_limit_bytes=budget),
    )(*inputs)

    # Strip alignment padding.
    logits = logits_p[:B, :V]
    h_n = hn_p[:, :B, :H]
    c_n = cn_p[:, :B, :H]
    # TODO(synk): nn.LSTM inter-layer dropout is training-mode only; this
    # forward implements eval semantics (identity).
    return logits, (h_n, c_n)


# ----------------------------------------------------------------------------
# Pure-JAX reference (for correctness check)
# ----------------------------------------------------------------------------
def char_lstm_reference(params, tokens):
    x = jnp.take(params["embed"], tokens, axis=0)          # (B, T, E)
    B, T, _ = x.shape
    h_n, c_n = [], []
    layer_in = x
    for lp in params["lstm"]:
        H = lp["w_hh"].shape[1]

        def step(carry, x_t, lp=lp, H=H):
            h, c = carry
            gates = (x_t @ lp["w_ih"].T + lp["b_ih"]
                     + h @ lp["w_hh"].T + lp["b_hh"])
            i = jax.nn.sigmoid(gates[:, 0 * H:1 * H])
            f = jax.nn.sigmoid(gates[:, 1 * H:2 * H])
            g = jnp.tanh(gates[:, 2 * H:3 * H])
            o = jax.nn.sigmoid(gates[:, 3 * H:4 * H])
            c = f * c + i * g
            h = o * jnp.tanh(c)
            return (h, c), h

        h0 = jnp.zeros((B, H), jnp.float32)
        c0 = jnp.zeros((B, H), jnp.float32)
        (h_f, c_f), hs = jax.lax.scan(step, (h0, c0),
                                      jnp.transpose(layer_in, (1, 0, 2)))
        h_n.append(h_f)
        c_n.append(c_f)
        layer_in = jnp.transpose(hs, (1, 0, 2))
    logits = h_n[-1] @ params["fc_w"].T + params["fc_b"]
    return logits, (jnp.stack(h_n, 0), jnp.stack(c_n, 0))


# ----------------------------------------------------------------------------
# Deterministic parameter init (shapes mirror the PyTorch module)
# ----------------------------------------------------------------------------
def init_params(key, vocab, embed_size, hidden, layers):
    keys = jax.random.split(key, 2 + 4 * layers + 2)
    k = iter(keys)
    scale = 1.0 / np.sqrt(hidden)
    params = {
        "embed": jax.random.normal(next(k), (vocab, embed_size), jnp.float32) * 0.1,
        "lstm": [],
        "fc_w": jax.random.uniform(next(k), (vocab, hidden), jnp.float32,
                                   -scale, scale),
    }
    params["fc_b"] = jnp.zeros((vocab,), jnp.float32)
    for l in range(layers):
        in_sz = embed_size if l == 0 else hidden
        params["lstm"].append({
            "w_ih": jax.random.uniform(next(k), (4 * hidden, in_sz),
                                       jnp.float32, -scale, scale),
            "w_hh": jax.random.uniform(next(k), (4 * hidden, hidden),
                                       jnp.float32, -scale, scale),
            "b_ih": jax.random.uniform(next(k), (4 * hidden,),
                                       jnp.float32, -scale, scale),
            "b_hh": jax.random.uniform(next(k), (4 * hidden,),
                                       jnp.float32, -scale, scale),
        })
    return params


if __name__ == "__main__":
    VOCAB, EMBED, HIDDEN, LAYERS = 32, 16, 32, 2
    B, T = 2, 8

    key = jax.random.PRNGKey(0)
    pkey, tkey = jax.random.split(key)
    params = init_params(pkey, VOCAB, EMBED, HIDDEN, LAYERS)
    tokens = jax.random.randint(tkey, (B, T), 0, VOCAB, dtype=jnp.int32)

    logits, (h_n, c_n) = char_lstm_forward(params, tokens)
    jax.block_until_ready((logits, h_n, c_n))

    ref_logits, (ref_h, ref_c) = char_lstm_reference(params, tokens)
    # bf16 MXU operands (f32 accumulate / state) -> loosened tolerance.
    np.testing.assert_allclose(np.asarray(logits), np.asarray(ref_logits),
                               rtol=2e-2, atol=2e-2)
    np.testing.assert_allclose(np.asarray(h_n), np.asarray(ref_h),
                               rtol=2e-2, atol=2e-2)
    np.testing.assert_allclose(np.asarray(c_n), np.asarray(ref_c),
                               rtol=2e-2, atol=2e-2)

    assert logits.shape == (B, VOCAB)
    assert h_n.shape == (LAYERS, B, HIDDEN) and c_n.shape == (LAYERS, B, HIDDEN)
    print("KERNEL_OK")
</pallas_src>

<mosaic_0001>
module attributes {stable_mosaic.version = 11 : i64} {
  func.func @kernel(%arg0: i32, %arg1: memref<64x16xbf16, #tpu.memory_space<vmem>>, %arg2: memref<16x512xbf16, #tpu.memory_space<vmem>>, %arg3: memref<128x512xbf16, #tpu.memory_space<vmem>>, %arg4: memref<1x512xf32, #tpu.memory_space<vmem>>, %arg5: memref<128x512xbf16, #tpu.memory_space<vmem>>, %arg6: memref<128x512xbf16, #tpu.memory_space<vmem>>, %arg7: memref<1x512xf32, #tpu.memory_space<vmem>>, %arg8: memref<128x128xbf16, #tpu.memory_space<vmem>>, %arg9: memref<1x128xf32, #tpu.memory_space<vmem>>, %arg10: memref<8x128xf32, #tpu.memory_space<vmem>>, %arg11: memref<2x8x128xf32, #tpu.memory_space<vmem>>, %arg12: memref<2x8x128xf32, #tpu.memory_space<vmem>>, %arg13: memref<2x8x128xf32, #tpu.memory_space<vmem>>, %arg14: memref<2x8x128xf32, #tpu.memory_space<vmem>>, %arg15: memref<64x512xf32, #tpu.memory_space<vmem>>, %arg16: memref<64x128xf32, #tpu.memory_space<vmem>>) attributes {dimension_semantics = [#tpu.dimension_semantics<arbitrary>], iteration_bounds = array<i64: 1>, scalar_prefetch = 0 : i64, scratch_operands = 4 : i64, tpu.core_type = #tpu.core_type<tc>, window_params = [{transform_indices = @transform_0, window_bounds = array<i64: 64, 16>}, {pipeline_mode = #tpu.pipeline_mode<synchronous>, transform_indices = @transform_1, window_bounds = array<i64: 16, 512>}, {pipeline_mode = #tpu.pipeline_mode<synchronous>, transform_indices = @transform_2, window_bounds = array<i64: 128, 512>}, {pipeline_mode = #tpu.pipeline_mode<synchronous>, transform_indices = @transform_3, window_bounds = array<i64: 1, 512>}, {pipeline_mode = #tpu.pipeline_mode<synchronous>, transform_indices = @transform_4, window_bounds = array<i64: 128, 512>}, {pipeline_mode = #tpu.pipeline_mode<synchronous>, transform_indices = @transform_5, window_bounds = array<i64: 128, 512>}, {pipeline_mode = #tpu.pipeline_mode<synchronous>, transform_indices = @transform_6, window_bounds = array<i64: 1, 512>}, {pipeline_mode = #tpu.pipeline_mode<synchronous>, transform_indices = @transform_7, window_bounds = array<i64: 128, 128>}, {pipeline_mode = #tpu.pipeline_mode<synchronous>, transform_indices = @transform_8, window_bounds = array<i64: 1, 128>}, {pipeline_mode = #tpu.pipeline_mode<synchronous>, transform_indices = @transform_9, window_bounds = array<i64: 8, 128>}, {pipeline_mode = #tpu.pipeline_mode<synchronous>, transform_indices = @transform_10, window_bounds = array<i64: 2, 8, 128>}, {pipeline_mode = #tpu.pipeline_mode<synchronous>, transform_indices = @transform_11, window_bounds = array<i64: 2, 8, 128>}]} {
    %c0_i32 = arith.constant 0 : i32
    %0 = arith.cmpi eq, %arg0, %c0_i32 : i32
    %1 = arith.extui %0 : i1 to i32
    %c0_i32_0 = arith.constant 0 : i32
    %2 = arith.cmpi ne, %1, %c0_i32_0 : i32
    scf.if %2 {
      %cst_156 = arith.constant 0.000000e+00 : f32
      %441 = vector.broadcast %cst_156 : f32 to vector<2x8x128xf32>
      %c0_157 = arith.constant 0 : index
      %c0_158 = arith.constant 0 : index
      %c0_159 = arith.constant 0 : index
      %442 = vector.load %arg13[%c0_157, %c0_158, %c0_159] : memref<2x8x128xf32, #tpu.memory_space<vmem>>, vector<2x8x128xf32>
      tpu.vector_store %arg13[%c0_157, %c0_158, %c0_159], %441 {strides = array<i32>} : memref<2x8x128xf32, #tpu.memory_space<vmem>>, vector<2x8x128xf32>,
      %cst_160 = arith.constant 0.000000e+00 : f32
      %443 = vector.broadcast %cst_160 : f32 to vector<2x8x128xf32>
      %c0_161 = arith.constant 0 : index
      %c0_162 = arith.constant 0 : index
      %c0_163 = arith.constant 0 : index
      %444 = vector.load %arg14[%c0_161, %c0_162, %c0_163] : memref<2x8x128xf32, #tpu.memory_space<vmem>>, vector<2x8x128xf32>
      tpu.vector_store %arg14[%c0_161, %c0_162, %c0_163], %443 {strides = array<i32>} : memref<2x8x128xf32, #tpu.memory_space<vmem>>, vector<2x8x128xf32>,
    } else {
    }
    %c0 = arith.constant 0 : index
    %c0_1 = arith.constant 0 : index
    %3 = vector.load %arg1[%c0, %c0_1] : memref<64x16xbf16, #tpu.memory_space<vmem>>, vector<64x16xbf16>
    %c0_2 = arith.constant 0 : index
    %c0_3 = arith.constant 0 : index
    %4 = vector.load %arg2[%c0_2, %c0_3] : memref<16x512xbf16, #tpu.memory_space<vmem>>, vector<16x512xbf16>
    %cst = arith.constant dense<0.000000e+00> : vector<64x512xf32>
    %5 = tpu.matmul %3, %4, %cst {dimension_numbers = #tpu.dot_dimension_numbers<[1], [0], [0], [1], [0, 0, 1, 1], [], []>} : vector<64x16xbf16>, vector<16x512xbf16>, vector<64x512xf32> -> vector<64x512xf32>
    %c0_4 = arith.constant 0 : index
    %c0_5 = arith.constant 0 : index
    %6 = vector.load %arg4[%c0_4, %c0_5] : memref<1x512xf32, #tpu.memory_space<vmem>>, vector<1x512xf32>
    %7 = vector.broadcast %6 : vector<1x512xf32> to vector<64x512xf32>
    %8 = arith.addf %5, %7 : vector<64x512xf32>
    %c0_6 = arith.constant 0 : index
    %c0_7 = arith.constant 0 : index
    %9 = vector.load %arg15[%c0_6, %c0_7] : memref<64x512xf32, #tpu.memory_space<vmem>>, vector<64x512xf32>
    tpu.vector_store %arg15[%c0_6, %c0_7], %8 {strides = array<i32>} : memref<64x512xf32, #tpu.memory_space<vmem>>, vector<64x512xf32>,
    %c0_8 = arith.constant 0 : index
    %c0_9 = arith.constant 0 : index
    %c0_10 = arith.constant 0 : index
    %10 = vector.load %arg13[%c0_8, %c0_9, %c0_10] : memref<2x8x128xf32, #tpu.memory_space<vmem>>, vector<1x8x128xf32>
    %11 = vector.shape_cast %10 : vector<1x8x128xf32> to vector<8x128xf32>
    %c0_11 = arith.constant 0 : index
    %c0_12 = arith.constant 0 : index
    %c0_13 = arith.constant 0 : index
    %12 = vector.load %arg14[%c0_11, %c0_12, %c0_13] : memref<2x8x128xf32, #tpu.memory_space<vmem>>, vector<1x8x128xf32>
    %13 = vector.shape_cast %12 : vector<1x8x128xf32> to vector<8x128xf32>
    %c0_i32_14 = arith.constant 0 : i32
    %c8_i32 = arith.constant 8 : i32
    %14 = arith.muli %c0_i32_14, %c8_i32 : i32
    %15 = tpu.assume_multiple %14, 8 : i32
    %16 = arith.index_cast %15 : i32 to index
    %c0_15 = arith.constant 0 : index
    %17 = vector.load %arg15[%16, %c0_15] : memref<64x512xf32, #tpu.memory_space<vmem>>, vector<8x512xf32>
    %18 = arith.truncf %11 : vector<8x128xf32> to vector<8x128xbf16>
    %c0_16 = arith.constant 0 : index
    %c0_17 = arith.constant 0 : index
    %19 = vector.load %arg3[%c0_16, %c0_17] : memref<128x512xbf16, #tpu.memory_space<vmem>>, vector<128x512xbf16>
    %cst_18 = arith.constant dense<0.000000e+00> : vector<8x512xf32>
    %20 = tpu.matmul %18, %19, %cst_18 {dimension_numbers = #tpu.dot_dimension_numbers<[1], [0], [0], [1], [0, 0, 1, 1], [], []>} : vector<8x128xbf16>, vector<128x512xbf16>, vector<8x512xf32> -> vector<8x512xf32>
    %21 = arith.addf %17, %20 : vector<8x512xf32>
    %22 = vector.extract_strided_slice %21 {offsets = [0, 0], sizes = [8, 384], strides = [1, 1]} : vector<8x512xf32> to vector<8x384xf32>
    %23 = arith.negf %22 : vector<8x384xf32>
    %24 = math.exp %23 : vector<8x384xf32>
    %cst_19 = arith.constant 1.000000e+00 : f32
    %25 = vector.broadcast %cst_19 : f32 to vector<8x384xf32>
    %26 = arith.addf %25, %24 : vector<8x384xf32>
    %27 = arith.divf %25, %26 : vector<8x384xf32>
    %28 = vector.extract_strided_slice %27 {offsets = [0, 0], sizes = [8, 128], strides = [1, 1]} : vector<8x384xf32> to vector<8x128xf32>
    %29 = vector.extract_strided_slice %27 {offsets = [0, 128], sizes = [8, 128], strides = [1, 1]} : vector<8x384xf32> to vector<8x128xf32>
    %30 = vector.extract_strided_slice %27 {offsets = [0, 256], sizes = [8, 128], strides = [1, 1]} : vector<8x384xf32> to vector<8x128xf32>
    %31 = vector.extract_strided_slice %21 {offsets = [0, 384], sizes = [8, 128], strides = [1, 1]} : vector<8x512xf32> to vector<8x128xf32>
    %32 = math.tanh %31 : vector<8x128xf32>
    %33 = arith.mulf %29, %13 : vector<8x128xf32>
    %34 = arith.mulf %28, %32 : vector<8x128xf32>
    %35 = arith.addf %33, %34 : vector<8x128xf32>
    %36 = math.tanh %35 : vector<8x128xf32>
    %37 = arith.mulf %30, %36 : vector<8x128xf32>
    %38 = arith.index_cast %15 : i32 to index
    %c0_20 = arith.constant 0 : index
    %39 = vector.load %arg16[%38, %c0_20] : memref<64x128xf32, #tpu.memory_space<vmem>>, vector<8x128xf32>
    tpu.vector_store %arg16[%38, %c0_20], %37 {strides = array<i32>} : memref<64x128xf32, #tpu.memory_space<vmem>>, vector<8x128xf32>,
    %c1_i32 = arith.constant 1 : i32
    %c8_i32_21 = arith.constant 8 : i32
    %40 = arith.muli %c1_i32, %c8_i32_21 : i32
    %41 = tpu.assume_multiple %40, 8 : i32
    %42 = arith.index_cast %41 : i32 to index
    %c0_22 = arith.constant 0 : index
    %43 = vector.load %arg15[%42, %c0_22] : memref<64x512xf32, #tpu.memory_space<vmem>>, vector<8x512xf32>
    %44 = arith.truncf %37 : vector<8x128xf32> to vector<8x128xbf16>
    %c0_23 = arith.constant 0 : index
    %c0_24 = arith.constant 0 : index
    %45 = vector.load %arg3[%c0_23, %c0_24] : memref<128x512xbf16, #tpu.memory_space<vmem>>, vector<128x512xbf16>
    %cst_25 = arith.constant dense<0.000000e+00> : vector<8x512xf32>
    %46 = tpu.matmul %44, %45, %cst_25 {dimension_numbers = #tpu.dot_dimension_numbers<[1], [0], [0], [1], [0, 0, 1, 1], [], []>} : vector<8x128xbf16>, vector<128x512xbf16>, vector<8x512xf32> -> vector<8x512xf32>
    %47 = arith.addf %43, %46 : vector<8x512xf32>
    %48 = vector.extract_strided_slice %47 {offsets = [0, 0], sizes = [8, 384], strides = [1, 1]} : vector<8x512xf32> to vector<8x384xf32>
    %49 = arith.negf %48 : vector<8x384xf32>
    %50 = math.exp %49 : vector<8x384xf32>
    %cst_26 = arith.constant 1.000000e+00 : f32
    %51 = vector.broadcast %cst_26 : f32 to vector<8x384xf32>
    %52 = arith.addf %51, %50 : vector<8x384xf32>
    %53 = arith.divf %51, %52 : vector<8x384xf32>
    %54 = vector.extract_strided_slice %53 {offsets = [0, 0], sizes = [8, 128], strides = [1, 1]} : vector<8x384xf32> to vector<8x128xf32>
    %55 = vector.extract_strided_slice %53 {offsets = [0, 128], sizes = [8, 128], strides = [1, 1]} : vector<8x384xf32> to vector<8x128xf32>
    %56 = vector.extract_strided_slice %53 {offsets = [0, 256], sizes = [8, 128], strides = [1, 1]} : vector<8x384xf32> to vector<8x128xf32>
    %57 = vector.extract_strided_slice %47 {offsets = [0, 384], sizes = [8, 128], strides = [1, 1]} : vector<8x512xf32> to vector<8x128xf32>
    %58 = math.tanh %57 : vector<8x128xf32>
    %59 = arith.mulf %55, %35 : vector<8x128xf32>
    %60 = arith.mulf %54, %58 : vector<8x128xf32>
    %61 = arith.addf %59, %60 : vector<8x128xf32>
    %62 = math.tanh %61 : vector<8x128xf32>
    %63 = arith.mulf %56, %62 : vector<8x128xf32>
    %64 = arith.index_cast %41 : i32 to index
    %c0_27 = arith.constant 0 : index
    %65 = vector.load %arg16[%64, %c0_27] : memref<64x128xf32, #tpu.memory_space<vmem>>, vector<8x128xf32>
    tpu.vector_store %arg16[%64, %c0_27], %63 {strides = array<i32>} : memref<64x128xf32, #tpu.memory_space<vmem>>, vector<8x128xf32>,
    %c2_i32 = arith.constant 2 : i32
    %c8_i32_28 = arith.constant 8 : i32
    %66 = arith.muli %c2_i32, %c8_i32_28 : i32
    %67 = tpu.assume_multiple %66, 8 : i32
    %68 = arith.index_cast %67 : i32 to index
    %c0_29 = arith.constant 0 : index
    %69 = vector.load %arg15[%68, %c0_29] : memref<64x512xf32, #tpu.memory_space<vmem>>, vector<8x512xf32>
    %70 = arith.truncf %63 : vector<8x128xf32> to vector<8x128xbf16>
    %c0_30 = arith.constant 0 : index
    %c0_31 = arith.constant 0 : index
    %71 = vector.load %arg3[%c0_30, %c0_31] : memref<128x512xbf16, #tpu.memory_space<vmem>>, vector<128x512xbf16>
    %cst_32 = arith.constant dense<0.000000e+00> : vector<8x512xf32>
    %72 = tpu.matmul %70, %71, %cst_32 {dimension_numbers = #tpu.dot_dimension_numbers<[1], [0], [0], [1], [0, 0, 1, 1], [], []>} : vector<8x128xbf16>, vector<128x512xbf16>, vector<8x512xf32> -> vector<8x512xf32>
    %73 = arith.addf %69, %72 : vector<8x512xf32>
    %74 = vector.extract_strided_slice %73 {offsets = [0, 0], sizes = [8, 384], strides = [1, 1]} : vector<8x512xf32> to vector<8x384xf32>
    %75 = arith.negf %74 : vector<8x384xf32>
    %76 = math.exp %75 : vector<8x384xf32>
    %cst_33 = arith.constant 1.000000e+00 : f32
    %77 = vector.broadcast %cst_33 : f32 to vector<8x384xf32>
    %78 = arith.addf %77, %76 : vector<8x384xf32>
    %79 = arith.divf %77, %78 : vector<8x384xf32>
    %80 = vector.extract_strided_slice %79 {offsets = [0, 0], sizes = [8, 128], strides = [1, 1]} : vector<8x384xf32> to vector<8x128xf32>
    %81 = vector.extract_strided_slice %79 {offsets = [0, 128], sizes = [8, 128], strides = [1, 1]} : vector<8x384xf32> to vector<8x128xf32>
    %82 = vector.extract_strided_slice %79 {offsets = [0, 256], sizes = [8, 128], strides = [1, 1]} : vector<8x384xf32> to vector<8x128xf32>
    %83 = vector.extract_strided_slice %73 {offsets = [0, 384], sizes = [8, 128], strides = [1, 1]} : vector<8x512xf32> to vector<8x128xf32>
    %84 = math.tanh %83 : vector<8x128xf32>
    %85 = arith.mulf %81, %61 : vector<8x128xf32>
    %86 = arith.mulf %80, %84 : vector<8x128xf32>
    %87 = arith.addf %85, %86 : vector<8x128xf32>
    %88 = math.tanh %87 : vector<8x128xf32>
    %89 = arith.mulf %82, %88 : vector<8x128xf32>
    %90 = arith.index_cast %67 : i32 to index
    %c0_34 = arith.constant 0 : index
    %91 = vector.load %arg16[%90, %c0_34] : memref<64x128xf32, #tpu.memory_space<vmem>>, vector<8x128xf32>
    tpu.vector_store %arg16[%90, %c0_34], %89 {strides = array<i32>} : memref<64x128xf32, #tpu.memory_space<vmem>>, vector<8x128xf32>,
    %c3_i32 = arith.constant 3 : i32
    %c8_i32_35 = arith.constant 8 : i32
    %92 = arith.muli %c3_i32, %c8_i32_35 : i32
    %93 = tpu.assume_multiple %92, 8 : i32
    %94 = arith.index_cast %93 : i32 to index
    %c0_36 = arith.constant 0 : index
    %95 = vector.load %arg15[%94, %c0_36] : memref<64x512xf32, #tpu.memory_space<vmem>>, vector<8x512xf32>
    %96 = arith.truncf %89 : vector<8x128xf32> to vector<8x128xbf16>
    %c0_37 = arith.constant 0 : index
    %c0_38 = arith.constant 0 : index
    %97 = vector.load %arg3[%c0_37, %c0_38] : memref<128x512xbf16, #tpu.memory_space<vmem>>, vector<128x512xbf16>
    %cst_39 = arith.constant dense<0.000000e+00> : vector<8x512xf32>
    %98 = tpu.matmul %96, %97, %cst_39 {dimension_numbers = #tpu.dot_dimension_numbers<[1], [0], [0], [1], [0, 0, 1, 1], [], []>} : vector<8x128xbf16>, vector<128x512xbf16>, vector<8x512xf32> -> vector<8x512xf32>
    %99 = arith.addf %95, %98 : vector<8x512xf32>
    %100 = vector.extract_strided_slice %99 {offsets = [0, 0], sizes = [8, 384], strides = [1, 1]} : vector<8x512xf32> to vector<8x384xf32>
    %101 = arith.negf %100 : vector<8x384xf32>
    %102 = math.exp %101 : vector<8x384xf32>
    %cst_40 = arith.constant 1.000000e+00 : f32
    %103 = vector.broadcast %cst_40 : f32 to vector<8x384xf32>
    %104 = arith.addf %103, %102 : vector<8x384xf32>
    %105 = arith.divf %103, %104 : vector<8x384xf32>
    %106 = vector.extract_strided_slice %105 {offsets = [0, 0], sizes = [8, 128], strides = [1, 1]} : vector<8x384xf32> to vector<8x128xf32>
    %107 = vector.extract_strided_slice %105 {offsets = [0, 128], sizes = [8, 128], strides = [1, 1]} : vector<8x384xf32> to vector<8x128xf32>
    %108 = vector.extract_strided_slice %105 {offsets = [0, 256], sizes = [8, 128], strides = [1, 1]} : vector<8x384xf32> to vector<8x128xf32>
    %109 = vector.extract_strided_slice %99 {offsets = [0, 384], sizes = [8, 128], strides = [1, 1]} : vector<8x512xf32> to vector<8x128xf32>
    %110 = math.tanh %109 : vector<8x128xf32>
    %111 = arith.mulf %107, %87 : vector<8x128xf32>
    %112 = arith.mulf %106, %110 : vector<8x128xf32>
    %113 = arith.addf %111, %112 : vector<8x128xf32>
    %114 = math.tanh %113 : vector<8x128xf32>
    %115 = arith.mulf %108, %114 : vector<8x128xf32>
    %116 = arith.index_cast %93 : i32 to index
    %c0_41 = arith.constant 0 : index
    %117 = vector.load %arg16[%116, %c0_41] : memref<64x128xf32, #tpu.memory_space<vmem>>, vector<8x128xf32>
    tpu.vector_store %arg16[%116, %c0_41], %115 {strides = array<i32>} : memref<64x128xf32, #tpu.memory_space<vmem>>, vector<8x128xf32>,
    %c4_i32 = arith.constant 4 : i32
    %c8_i32_42 = arith.constant 8 : i32
    %118 = arith.muli %c4_i32, %c8_i32_42 : i32
    %119 = tpu.assume_multiple %118, 8 : i32
    %120 = arith.index_cast %119 : i32 to index
    %c0_43 = arith.constant 0 : index
    %121 = vector.load %arg15[%120, %c0_43] : memref<64x512xf32, #tpu.memory_space<vmem>>, vector<8x512xf32>
    %122 = arith.truncf %115 : vector<8x128xf32> to vector<8x128xbf16>
    %c0_44 = arith.constant 0 : index
    %c0_45 = arith.constant 0 : index
    %123 = vector.load %arg3[%c0_44, %c0_45] : memref<128x512xbf16, #tpu.memory_space<vmem>>, vector<128x512xbf16>
    %cst_46 = arith.constant dense<0.000000e+00> : vector<8x512xf32>
    %124 = tpu.matmul %122, %123, %cst_46 {dimension_numbers = #tpu.dot_dimension_numbers<[1], [0], [0], [1], [0, 0, 1, 1], [], []>} : vector<8x128xbf16>, vector<128x512xbf16>, vector<8x512xf32> -> vector<8x512xf32>
    %125 = arith.addf %121, %124 : vector<8x512xf32>
    %126 = vector.extract_strided_slice %125 {offsets = [0, 0], sizes = [8, 384], strides = [1, 1]} : vector<8x512xf32> to vector<8x384xf32>
    %127 = arith.negf %126 : vector<8x384xf32>
    %128 = math.exp %127 : vector<8x384xf32>
    %cst_47 = arith.constant 1.000000e+00 : f32
    %129 = vector.broadcast %cst_47 : f32 to vector<8x384xf32>
    %130 = arith.addf %129, %128 : vector<8x384xf32>
    %131 = arith.divf %129, %130 : vector<8x384xf32>
    %132 = vector.extract_strided_slice %131 {offsets = [0, 0], sizes = [8, 128], strides = [1, 1]} : vector<8x384xf32> to vector<8x128xf32>
    %133 = vector.extract_strided_slice %131 {offsets = [0, 128], sizes = [8, 128], strides = [1, 1]} : vector<8x384xf32> to vector<8x128xf32>
    %134 = vector.extract_strided_slice %131 {offsets = [0, 256], sizes = [8, 128], strides = [1, 1]} : vector<8x384xf32> to vector<8x128xf32>
    %135 = vector.extract_strided_slice %125 {offsets = [0, 384], sizes = [8, 128], strides = [1, 1]} : vector<8x512xf32> to vector<8x128xf32>
    %136 = math.tanh %135 : vector<8x128xf32>
    %137 = arith.mulf %133, %113 : vector<8x128xf32>
    %138 = arith.mulf %132, %136 : vector<8x128xf32>
    %139 = arith.addf %137, %138 : vector<8x128xf32>
    %140 = math.tanh %139 : vector<8x128xf32>
    %141 = arith.mulf %134, %140 : vector<8x128xf32>
    %142 = arith.index_cast %119 : i32 to index
    %c0_48 = arith.constant 0 : index
    %143 = vector.load %arg16[%142, %c0_48] : memref<64x128xf32, #tpu.memory_space<vmem>>, vector<8x128xf32>
    tpu.vector_store %arg16[%142, %c0_48], %141 {strides = array<i32>} : memref<64x128xf32, #tpu.memory_space<vmem>>, vector<8x128xf32>,
    %c5_i32 = arith.constant 5 : i32
    %c8_i32_49 = arith.constant 8 : i32
    %144 = arith.muli %c5_i32, %c8_i32_49 : i32
    %145 = tpu.assume_multiple %144, 8 : i32
    %146 = arith.index_cast %145 : i32 to index
    %c0_50 = arith.constant 0 : index
    %147 = vector.load %arg15[%146, %c0_50] : memref<64x512xf32, #tpu.memory_space<vmem>>, vector<8x512xf32>
    %148 = arith.truncf %141 : vector<8x128xf32> to vector<8x128xbf16>
    %c0_51 = arith.constant 0 : index
    %c0_52 = arith.constant 0 : index
    %149 = vector.load %arg3[%c0_51, %c0_52] : memref<128x512xbf16, #tpu.memory_space<vmem>>, vector<128x512xbf16>
    %cst_53 = arith.constant dense<0.000000e+00> : vector<8x512xf32>
    %150 = tpu.matmul %148, %149, %cst_53 {dimension_numbers = #tpu.dot_dimension_numbers<[1], [0], [0], [1], [0, 0, 1, 1], [], []>} : vector<8x128xbf16>, vector<128x512xbf16>, vector<8x512xf32> -> vector<8x512xf32>
    %151 = arith.addf %147, %150 : vector<8x512xf32>
    %152 = vector.extract_strided_slice %151 {offsets = [0, 0], sizes = [8, 384], strides = [1, 1]} : vector<8x512xf32> to vector<8x384xf32>
    %153 = arith.negf %152 : vector<8x384xf32>
    %154 = math.exp %153 : vector<8x384xf32>
    %cst_54 = arith.constant 1.000000e+00 : f32
    %155 = vector.broadcast %cst_54 : f32 to vector<8x384xf32>
    %156 = arith.addf %155, %154 : vector<8x384xf32>
    %157 = arith.divf %155, %156 : vector<8x384xf32>
    %158 = vector.extract_strided_slice %157 {offsets = [0, 0], sizes = [8, 128], strides = [1, 1]} : vector<8x384xf32> to vector<8x128xf32>
    %159 = vector.extract_strided_slice %157 {offsets = [0, 128], sizes = [8, 128], strides = [1, 1]} : vector<8x384xf32> to vector<8x128xf32>
    %160 = vector.extract_strided_slice %157 {offsets = [0, 256], sizes = [8, 128], strides = [1, 1]} : vector<8x384xf32> to vector<8x128xf32>
    %161 = vector.extract_strided_slice %151 {offsets = [0, 384], sizes = [8, 128], strides = [1, 1]} : vector<8x512xf32> to vector<8x128xf32>
    %162 = math.tanh %161 : vector<8x128xf32>
    %163 = arith.mulf %159, %139 : vector<8x128xf32>
    %164 = arith.mulf %158, %162 : vector<8x128xf32>
    %165 = arith.addf %163, %164 : vector<8x128xf32>
    %166 = math.tanh %165 : vector<8x128xf32>
    %167 = arith.mulf %160, %166 : vector<8x128xf32>
    %168 = arith.index_cast %145 : i32 to index
    %c0_55 = arith.constant 0 : index
    %169 = vector.load %arg16[%168, %c0_55] : memref<64x128xf32, #tpu.memory_space<vmem>>, vector<8x128xf32>
    tpu.vector_store %arg16[%168, %c0_55], %167 {strides = array<i32>} : memref<64x128xf32, #tpu.memory_space<vmem>>, vector<8x128xf32>,
    %c6_i32 = arith.constant 6 : i32
    %c8_i32_56 = arith.constant 8 : i32
    %170 = arith.muli %c6_i32, %c8_i32_56 : i32
    %171 = tpu.assume_multiple %170, 8 : i32
    %172 = arith.index_cast %171 : i32 to index
    %c0_57 = arith.constant 0 : index
    %173 = vector.load %arg15[%172, %c0_57] : memref<64x512xf32, #tpu.memory_space<vmem>>, vector<8x512xf32>
    %174 = arith.truncf %167 : vector<8x128xf32> to vector<8x128xbf16>
    %c0_58 = arith.constant 0 : index
    %c0_59 = arith.constant 0 : index
    %175 = vector.load %arg3[%c0_58, %c0_59] : memref<128x512xbf16, #tpu.memory_space<vmem>>, vector<128x512xbf16>
    %cst_60 = arith.constant dense<0.000000e+00> : vector<8x512xf32>
    %176 = tpu.matmul %174, %175, %cst_60 {dimension_numbers = #tpu.dot_dimension_numbers<[1], [0], [0], [1], [0, 0, 1, 1], [], []>} : vector<8x128xbf16>, vector<128x512xbf16>, vector<8x512xf32> -> vector<8x512xf32>
    %177 = arith.addf %173, %176 : vector<8x512xf32>
    %178 = vector.extract_strided_slice %177 {offsets = [0, 0], sizes = [8, 384], strides = [1, 1]} : vector<8x512xf32> to vector<8x384xf32>
    %179 = arith.negf %178 : vector<8x384xf32>
    %180 = math.exp %179 : vector<8x384xf32>
    %cst_61 = arith.constant 1.000000e+00 : f32
    %181 = vector.broadcast %cst_61 : f32 to vector<8x384xf32>
    %182 = arith.addf %181, %180 : vector<8x384xf32>
    %183 = arith.divf %181, %182 : vector<8x384xf32>
    %184 = vector.extract_strided_slice %183 {offsets = [0, 0], sizes = [8, 128], strides = [1, 1]} : vector<8x384xf32> to vector<8x128xf32>
    %185 = vector.extract_strided_slice %183 {offsets = [0, 128], sizes = [8, 128], strides = [1, 1]} : vector<8x384xf32> to vector<8x128xf32>
    %186 = vector.extract_strided_slice %183 {offsets = [0, 256], sizes = [8, 128], strides = [1, 1]} : vector<8x384xf32> to vector<8x128xf32>
    %187 = vector.extract_strided_slice %177 {offsets = [0, 384], sizes = [8, 128], strides = [1, 1]} : vector<8x512xf32> to vector<8x128xf32>
    %188 = math.tanh %187 : vector<8x128xf32>
    %189 = arith.mulf %185, %165 : vector<8x128xf32>
    %190 = arith.mulf %184, %188 : vector<8x128xf32>
    %191 = arith.addf %189, %190 : vector<8x128xf32>
    %192 = math.tanh %191 : vector<8x128xf32>
    %193 = arith.mulf %186, %192 : vector<8x128xf32>
    %194 = arith.index_cast %171 : i32 to index
    %c0_62 = arith.constant 0 : index
    %195 = vector.load %arg16[%194, %c0_62] : memref<64x128xf32, #tpu.memory_space<vmem>>, vector<8x128xf32>
    tpu.vector_store %arg16[%194, %c0_62], %193 {strides = array<i32>} : memref<64x128xf32, #tpu.memory_space<vmem>>, vector<8x128xf32>,
    %c7_i32 = arith.constant 7 : i32
    %c8_i32_63 = arith.constant 8 : i32
    %196 = arith.muli %c7_i32, %c8_i32_63 : i32
    %197 = tpu.assume_multiple %196, 8 : i32
    %198 = arith.index_cast %197 : i32 to index
    %c0_64 = arith.constant 0 : index
    %199 = vector.load %arg15[%198, %c0_64] : memref<64x512xf32, #tpu.memory_space<vmem>>, vector<8x512xf32>
    %200 = arith.truncf %193 : vector<8x128xf32> to vector<8x128xbf16>
    %c0_65 = arith.constant 0 : index
    %c0_66 = arith.constant 0 : index
    %201 = vector.load %arg3[%c0_65, %c0_66] : memref<128x512xbf16, #tpu.memory_space<vmem>>, vector<128x512xbf16>
    %cst_67 = arith.constant dense<0.000000e+00> : vector<8x512xf32>
    %202 = tpu.matmul %200, %201, %cst_67 {dimension_numbers = #tpu.dot_dimension_numbers<[1], [0], [0], [1], [0, 0, 1, 1], [], []>} : vector<8x128xbf16>, vector<128x512xbf16>, vector<8x512xf32> -> vector<8x512xf32>
    %203 = arith.addf %199, %202 : vector<8x512xf32>
    %204 = vector.extract_strided_slice %203 {offsets = [0, 0], sizes = [8, 384], strides = [1, 1]} : vector<8x512xf32> to vector<8x384xf32>
    %205 = arith.negf %204 : vector<8x384xf32>
    %206 = math.exp %205 : vector<8x384xf32>
    %cst_68 = arith.constant 1.000000e+00 : f32
    %207 = vector.broadcast %cst_68 : f32 to vector<8x384xf32>
    %208 = arith.addf %207, %206 : vector<8x384xf32>
    %209 = arith.divf %207, %208 : vector<8x384xf32>
    %210 = vector.extract_strided_slice %209 {offsets = [0, 0], sizes = [8, 128], strides = [1, 1]} : vector<8x384xf32> to vector<8x128xf32>
    %211 = vector.extract_strided_slice %209 {offsets = [0, 128], sizes = [8, 128], strides = [1, 1]} : vector<8x384xf32> to vector<8x128xf32>
    %212 = vector.extract_strided_slice %209 {offsets = [0, 256], sizes = [8, 128], strides = [1, 1]} : vector<8x384xf32> to vector<8x128xf32>
    %213 = vector.extract_strided_slice %203 {offsets = [0, 384], sizes = [8, 128], strides = [1, 1]} : vector<8x512xf32> to vector<8x128xf32>
    %214 = math.tanh %213 : vector<8x128xf32>
    %215 = arith.mulf %211, %191 : vector<8x128xf32>
    %216 = arith.mulf %210, %214 : vector<8x128xf32>
    %217 = arith.addf %215, %216 : vector<8x128xf32>
    %218 = math.tanh %217 : vector<8x128xf32>
    %219 = arith.mulf %212, %218 : vector<8x128xf32>
    %220 = arith.index_cast %197 : i32 to index
    %c0_69 = arith.constant 0 : index
    %221 = vector.load %arg16[%220, %c0_69] : memref<64x128xf32, #tpu.memory_space<vmem>>, vector<8x128xf32>
    tpu.vector_store %arg16[%220, %c0_69], %219 {strides = array<i32>} : memref<64x128xf32, #tpu.memory_space<vmem>>, vector<8x128xf32>,
    %c8_i32_70 = arith.constant 8 : i32
    %c0_71 = arith.constant 0 : index
    %c0_72 = arith.constant 0 : index
    %c0_73 = arith.constant 0 : index
    %222 = vector.load %arg13[%c0_71, %c0_72, %c0_73] : memref<2x8x128xf32, #tpu.memory_space<vmem>>, vector<1x8x128xf32>
    %223 = vector.shape_cast %222 : vector<1x8x128xf32> to vector<8x128xf32>
    %224 = vector.shape_cast %219 : vector<8x128xf32> to vector<1x8x128xf32>
    tpu.vector_store %arg13[%c0_71, %c0_72, %c0_73], %224 {strides = array<i32>} : memref<2x8x128xf32, #tpu.memory_space<vmem>>, vector<1x8x128xf32>,
    %c0_74 = arith.constant 0 : index
    %c0_75 = arith.constant 0 : index
    %c0_76 = arith.constant 0 : index
    %225 = vector.load %arg14[%c0_74, %c0_75, %c0_76] : memref<2x8x128xf32, #tpu.memory_space<vmem>>, vector<1x8x128xf32>
    %226 = vector.shape_cast %225 : vector<1x8x128xf32> to vector<8x128xf32>
    %227 = vector.shape_cast %217 : vector<8x128xf32> to vector<1x8x128xf32>
    tpu.vector_store %arg14[%c0_74, %c0_75, %c0_76], %227 {strides = array<i32>} : memref<2x8x128xf32, #tpu.memory_space<vmem>>, vector<1x8x128xf32>,
    %c0_77 = arith.constant 0 : index
    %c0_78 = arith.constant 0 : index
    %228 = vector.load %arg16[%c0_77, %c0_78] : memref<64x128xf32, #tpu.memory_space<vmem>>, vector<64x128xf32>
    %229 = arith.truncf %228 : vector<64x128xf32> to vector<64x128xbf16>
    %c0_79 = arith.constant 0 : index
    %c0_80 = arith.constant 0 : index
    %230 = vector.load %arg5[%c0_79, %c0_80] : memref<128x512xbf16, #tpu.memory_space<vmem>>, vector<128x512xbf16>
    %cst_81 = arith.constant dense<0.000000e+00> : vector<64x512xf32>
    %231 = tpu.matmul %229, %230, %cst_81 {dimension_numbers = #tpu.dot_dimension_numbers<[1], [0], [0], [1], [0, 0, 1, 1], [], []>} : vector<64x128xbf16>, vector<128x512xbf16>, vector<64x512xf32> -> vector<64x512xf32>
    %c0_82 = arith.constant 0 : index
    %c0_83 = arith.constant 0 : index
    %232 = vector.load %arg7[%c0_82, %c0_83] : memref<1x512xf32, #tpu.memory_space<vmem>>, vector<1x512xf32>
    %233 = vector.broadcast %232 : vector<1x512xf32> to vector<64x512xf32>
    %234 = arith.addf %231, %233 : vector<64x512xf32>
    %c0_84 = arith.constant 0 : index
    %c0_85 = arith.constant 0 : index
    %235 = vector.load %arg15[%c0_84, %c0_85] : memref<64x512xf32, #tpu.memory_space<vmem>>, vector<64x512xf32>
    tpu.vector_store %arg15[%c0_84, %c0_85], %234 {strides = array<i32>} : memref<64x512xf32, #tpu.memory_space<vmem>>, vector<64x512xf32>,
    %c1 = arith.constant 1 : index
    %c0_86 = arith.constant 0 : index
    %c0_87 = arith.constant 0 : index
    %236 = vector.load %arg13[%c1, %c0_86, %c0_87] : memref<2x8x128xf32, #tpu.memory_space<vmem>>, vector<1x8x128xf32>
    %237 = vector.shape_cast %236 : vector<1x8x128xf32> to vector<8x128xf32>
    %c1_88 = arith.constant 1 : index
    %c0_89 = arith.constant 0 : index
    %c0_90 = arith.constant 0 : index
    %238 = vector.load %arg14[%c1_88, %c0_89, %c0_90] : memref<2x8x128xf32, #tpu.memory_space<vmem>>, vector<1x8x128xf32>
    %239 = vector.shape_cast %238 : vector<1x8x128xf32> to vector<8x128xf32>
    %c0_i32_91 = arith.constant 0 : i32
    %c8_i32_92 = arith.constant 8 : i32
    %240 = arith.muli %c0_i32_91, %c8_i32_92 : i32
    %241 = tpu.assume_multiple %240, 8 : i32
    %242 = arith.index_cast %241 : i32 to index
    %c0_93 = arith.constant 0 : index
    %243 = vector.load %arg15[%242, %c0_93] : memref<64x512xf32, #tpu.memory_space<vmem>>, vector<8x512xf32>
    %244 = arith.truncf %237 : vector<8x128xf32> to vector<8x128xbf16>
    %c0_94 = arith.constant 0 : index
    %c0_95 = arith.constant 0 : index
    %245 = vector.load %arg6[%c0_94, %c0_95] : memref<128x512xbf16, #tpu.memory_space<vmem>>, vector<128x512xbf16>
    %cst_96 = arith.constant dense<0.000000e+00> : vector<8x512xf32>
    %246 = tpu.matmul %244, %245, %cst_96 {dimension_numbers = #tpu.dot_dimension_numbers<[1], [0], [0], [1], [0, 0, 1, 1], [], []>} : vector<8x128xbf16>, vector<128x512xbf16>, vector<8x512xf32> -> vector<8x512xf32>
    %247 = arith.addf %243, %246 : vector<8x512xf32>
    %248 = vector.extract_strided_slice %247 {offsets = [0, 0], sizes = [8, 384], strides = [1, 1]} : vector<8x512xf32> to vector<8x384xf32>
    %249 = arith.negf %248 : vector<8x384xf32>
    %250 = math.exp %249 : vector<8x384xf32>
    %cst_97 = arith.constant 1.000000e+00 : f32
    %251 = vector.broadcast %cst_97 : f32 to vector<8x384xf32>
    %252 = arith.addf %251, %250 : vector<8x384xf32>
    %253 = arith.divf %251, %252 : vector<8x384xf32>
    %254 = vector.extract_strided_slice %253 {offsets = [0, 0], sizes = [8, 128], strides = [1, 1]} : vector<8x384xf32> to vector<8x128xf32>
    %255 = vector.extract_strided_slice %253 {offsets = [0, 128], sizes = [8, 128], strides = [1, 1]} : vector<8x384xf32> to vector<8x128xf32>
    %256 = vector.extract_strided_slice %253 {offsets = [0, 256], sizes = [8, 128], strides = [1, 1]} : vector<8x384xf32> to vector<8x128xf32>
    %257 = vector.extract_strided_slice %247 {offsets = [0, 384], sizes = [8, 128], strides = [1, 1]} : vector<8x512xf32> to vector<8x128xf32>
    %258 = math.tanh %257 : vector<8x128xf32>
    %259 = arith.mulf %255, %239 : vector<8x128xf32>
    %260 = arith.mulf %254, %258 : vector<8x128xf32>
    %261 = arith.addf %259, %260 : vector<8x128xf32>
    %262 = math.tanh %261 : vector<8x128xf32>
    %263 = arith.mulf %256, %262 : vector<8x128xf32>
    %c1_i32_98 = arith.constant 1 : i32
    %c8_i32_99 = arith.constant 8 : i32
    %264 = arith.muli %c1_i32_98, %c8_i32_99 : i32
    %265 = tpu.assume_multiple %264, 8 : i32
    %266 = arith.index_cast %265 : i32 to index
    %c0_100 = arith.constant 0 : index
    %267 = vector.load %arg15[%266, %c0_100] : memref<64x512xf32, #tpu.memory_space<vmem>>, vector<8x512xf32>
    %268 = arith.truncf %263 : vector<8x128xf32> to vector<8x128xbf16>
    %c0_101 = arith.constant 0 : index
    %c0_102 = arith.constant 0 : index
    %269 = vector.load %arg6[%c0_101, %c0_102] : memref<128x512xbf16, #tpu.memory_space<vmem>>, vector<128x512xbf16>
    %cst_103 = arith.constant dense<0.000000e+00> : vector<8x512xf32>
    %270 = tpu.matmul %268, %269, %cst_103 {dimension_numbers = #tpu.dot_dimension_numbers<[1], [0], [0], [1], [0, 0, 1, 1], [], []>} : vector<8x128xbf16>, vector<128x512xbf16>, vector<8x512xf32> -> vector<8x512xf32>
    %271 = arith.addf %267, %270 : vector<8x512xf32>
    %272 = vector.extract_strided_slice %271 {offsets = [0, 0], sizes = [8, 384], strides = [1, 1]} : vector<8x512xf32> to vector<8x384xf32>
    %273 = arith.negf %272 : vector<8x384xf32>
    %274 = math.exp %273 : vector<8x384xf32>
    %cst_104 = arith.constant 1.000000e+00 : f32
    %275 = vector.broadcast %cst_104 : f32 to vector<8x384xf32>
    %276 = arith.addf %275, %274 : vector<8x384xf32>
    %277 = arith.divf %275, %276 : vector<8x384xf32>
    %278 = vector.extract_strided_slice %277 {offsets = [0, 0], sizes = [8, 128], strides = [1, 1]} : vector<8x384xf32> to vector<8x128xf32>
    %279 = vector.extract_strided_slice %277 {offsets = [0, 128], sizes = [8, 128], strides = [1, 1]} : vector<8x384xf32> to vector<8x128xf32>
    %280 = vector.extract_strided_slice %277 {offsets = [0, 256], sizes = [8, 128], strides = [1, 1]} : vector<8x384xf32> to vector<8x128xf32>
    %281 = vector.extract_strided_slice %271 {offsets = [0, 384], sizes = [8, 128], strides = [1, 1]} : vector<8x512xf32> to vector<8x128xf32>
    %282 = math.tanh %281 : vector<8x128xf32>
    %283 = arith.mulf %279, %261 : vector<8x128xf32>
    %284 = arith.mulf %278, %282 : vector<8x128xf32>
    %285 = arith.addf %283, %284 : vector<8x128xf32>
    %286 = math.tanh %285 : vector<8x128xf32>
    %287 = arith.mulf %280, %286 : vector<8x128xf32>
    %c2_i32_105 = arith.constant 2 : i32
    %c8_i32_106 = arith.constant 8 : i32
    %288 = arith.muli %c2_i32_105, %c8_i32_106 : i32
    %289 = tpu.assume_multiple %288, 8 : i32
    %290 = arith.index_cast %289 : i32 to index
    %c0_107 = arith.constant 0 : index
    %291 = vector.load %arg15[%290, %c0_107] : memref<64x512xf32, #tpu.memory_space<vmem>>, vector<8x512xf32>
    %292 = arith.truncf %287 : vector<8x128xf32> to vector<8x128xbf16>
    %c0_108 = arith.constant 0 : index
    %c0_109 = arith.constant 0 : index
    %293 = vector.load %arg6[%c0_108, %c0_109] : memref<128x512xbf16, #tpu.memory_space<vmem>>, vector<128x512xbf16>
    %cst_110 = arith.constant dense<0.000000e+00> : vector<8x512xf32>
    %294 = tpu.matmul %292, %293, %cst_110 {dimension_numbers = #tpu.dot_dimension_numbers<[1], [0], [0], [1], [0, 0, 1, 1], [], []>} : vector<8x128xbf16>, vector<128x512xbf16>, vector<8x512xf32> -> vector<8x512xf32>
    %295 = arith.addf %291, %294 : vector<8x512xf32>
    %296 = vector.extract_strided_slice %295 {offsets = [0, 0], sizes = [8, 384], strides = [1, 1]} : vector<8x512xf32> to vector<8x384xf32>
    %297 = arith.negf %296 : vector<8x384xf32>
    %298 = math.exp %297 : vector<8x384xf32>
    %cst_111 = arith.constant 1.000000e+00 : f32
    %299 = vector.broadcast %cst_111 : f32 to vector<8x384xf32>
    %300 = arith.addf %299, %298 : vector<8x384xf32>
    %301 = arith.divf %299, %300 : vector<8x384xf32>
    %302 = vector.extract_strided_slice %301 {offsets = [0, 0], sizes = [8, 128], strides = [1, 1]} : vector<8x384xf32> to vector<8x128xf32>
    %303 = vector.extract_strided_slice %301 {offsets = [0, 128], sizes = [8, 128], strides = [1, 1]} : vector<8x384xf32> to vector<8x128xf32>
    %304 = vector.extract_strided_slice %301 {offsets = [0, 256], sizes = [8, 128], strides = [1, 1]} : vector<8x384xf32> to vector<8x128xf32>
    %305 = vector.extract_strided_slice %295 {offsets = [0, 384], sizes = [8, 128], strides = [1, 1]} : vector<8x512xf32> to vector<8x128xf32>
    %306 = math.tanh %305 : vector<8x128xf32>
    %307 = arith.mulf %303, %285 : vector<8x128xf32>
    %308 = arith.mulf %302, %306 : vector<8x128xf32>
    %309 = arith.addf %307, %308 : vector<8x128xf32>
    %310 = math.tanh %309 : vector<8x128xf32>
    %311 = arith.mulf %304, %310 : vector<8x128xf32>
    %c3_i32_112 = arith.constant 3 : i32
    %c8_i32_113 = arith.constant 8 : i32
    %312 = arith.muli %c3_i32_112, %c8_i32_113 : i32
    %313 = tpu.assume_multiple %312, 8 : i32
    %314 = arith.index_cast %313 : i32 to index
    %c0_114 = arith.constant 0 : index
    %315 = vector.load %arg15[%314, %c0_114] : memref<64x512xf32, #tpu.memory_space<vmem>>, vector<8x512xf32>
    %316 = arith.truncf %311 : vector<8x128xf32> to vector<8x128xbf16>
    %c0_115 = arith.constant 0 : index
    %c0_116 = arith.constant 0 : index
    %317 = vector.load %arg6[%c0_115, %c0_116] : memref<128x512xbf16, #tpu.memory_space<vmem>>, vector<128x512xbf16>
    %cst_117 = arith.constant dense<0.000000e+00> : vector<8x512xf32>
    %318 = tpu.matmul %316, %317, %cst_117 {dimension_numbers = #tpu.dot_dimension_numbers<[1], [0], [0], [1], [0, 0, 1, 1], [], []>} : vector<8x128xbf16>, vector<128x512xbf16>, vector<8x512xf32> -> vector<8x512xf32>
    %319 = arith.addf %315, %318 : vector<8x512xf32>
    %320 = vector.extract_strided_slice %319 {offsets = [0, 0], sizes = [8, 384], strides = [1, 1]} : vector<8x512xf32> to vector<8x384xf32>
    %321 = arith.negf %320 : vector<8x384xf32>
    %322 = math.exp %321 : vector<8x384xf32>
    %cst_118 = arith.constant 1.000000e+00 : f32
    %323 = vector.broadcast %cst_118 : f32 to vector<8x384xf32>
    %324 = arith.addf %323, %322 : vector<8x384xf32>
    %325 = arith.divf %323, %324 : vector<8x384xf32>
    %326 = vector.extract_strided_slice %325 {offsets = [0, 0], sizes = [8, 128], strides = [1, 1]} : vector<8x384xf32> to vector<8x128xf32>
    %327 = vector.extract_strided_slice %325 {offsets = [0, 128], sizes = [8, 128], strides = [1, 1]} : vector<8x384xf32> to vector<8x128xf32>
    %328 = vector.extract_strided_slice %325 {offsets = [0, 256], sizes = [8, 128], strides = [1, 1]} : vector<8x384xf32> to vector<8x128xf32>
    %329 = vector.extract_strided_slice %319 {offsets = [0, 384], sizes = [8, 128], strides = [1, 1]} : vector<8x512xf32> to vector<8x128xf32>
    %330 = math.tanh %329 : vector<8x128xf32>
    %331 = arith.mulf %327, %309 : vector<8x128xf32>
    %332 = arith.mulf %326, %330 : vector<8x128xf32>
    %333 = arith.addf %331, %332 : vector<8x128xf32>
    %334 = math.tanh %333 : vector<8x128xf32>
    %335 = arith.mulf %328, %334 : vector<8x128xf32>
    %c4_i32_119 = arith.constant 4 : i32
    %c8_i32_120 = arith.constant 8 : i32
    %336 = arith.muli %c4_i32_119, %c8_i32_120 : i32
    %337 = tpu.assume_multiple %336, 8 : i32
    %338 = arith.index_cast %337 : i32 to index
    %c0_121 = arith.constant 0 : index
    %339 = vector.load %arg15[%338, %c0_121] : memref<64x512xf32, #tpu.memory_space<vmem>>, vector<8x512xf32>
    %340 = arith.truncf %335 : vector<8x128xf32> to vector<8x128xbf16>
    %c0_122 = arith.constant 0 : index
    %c0_123 = arith.constant 0 : index
    %341 = vector.load %arg6[%c0_122, %c0_123] : memref<128x512xbf16, #tpu.memory_space<vmem>>, vector<128x512xbf16>
    %cst_124 = arith.constant dense<0.000000e+00> : vector<8x512xf32>
    %342 = tpu.matmul %340, %341, %cst_124 {dimension_numbers = #tpu.dot_dimension_numbers<[1], [0], [0], [1], [0, 0, 1, 1], [], []>} : vector<8x128xbf16>, vector<128x512xbf16>, vector<8x512xf32> -> vector<8x512xf32>
    %343 = arith.addf %339, %342 : vector<8x512xf32>
    %344 = vector.extract_strided_slice %343 {offsets = [0, 0], sizes = [8, 384], strides = [1, 1]} : vector<8x512xf32> to vector<8x384xf32>
    %345 = arith.negf %344 : vector<8x384xf32>
    %346 = math.exp %345 : vector<8x384xf32>
    %cst_125 = arith.constant 1.000000e+00 : f32
    %347 = vector.broadcast %cst_125 : f32 to vector<8x384xf32>
    %348 = arith.addf %347, %346 : vector<8x384xf32>
    %349 = arith.divf %347, %348 : vector<8x384xf32>
    %350 = vector.extract_strided_slice %349 {offsets = [0, 0], sizes = [8, 128], strides = [1, 1]} : vector<8x384xf32> to vector<8x128xf32>
    %351 = vector.extract_strided_slice %349 {offsets = [0, 128], sizes = [8, 128], strides = [1, 1]} : vector<8x384xf32> to vector<8x128xf32>
    %352 = vector.extract_strided_slice %349 {offsets = [0, 256], sizes = [8, 128], strides = [1, 1]} : vector<8x384xf32> to vector<8x128xf32>
    %353 = vector.extract_strided_slice %343 {offsets = [0, 384], sizes = [8, 128], strides = [1, 1]} : vector<8x512xf32> to vector<8x128xf32>
    %354 = math.tanh %353 : vector<8x128xf32>
    %355 = arith.mulf %351, %333 : vector<8x128xf32>
    %356 = arith.mulf %350, %354 : vector<8x128xf32>
    %357 = arith.addf %355, %356 : vector<8x128xf32>
    %358 = math.tanh %357 : vector<8x128xf32>
    %359 = arith.mulf %352, %358 : vector<8x128xf32>
    %c5_i32_126 = arith.constant 5 : i32
    %c8_i32_127 = arith.constant 8 : i32
    %360 = arith.muli %c5_i32_126, %c8_i32_127 : i32
    %361 = tpu.assume_multiple %360, 8 : i32
    %362 = arith.index_cast %361 : i32 to index
    %c0_128 = arith.constant 0 : index
    %363 = vector.load %arg15[%362, %c0_128] : memref<64x512xf32, #tpu.memory_space<vmem>>, vector<8x512xf32>
    %364 = arith.truncf %359 : vector<8x128xf32> to vector<8x128xbf16>
    %c0_129 = arith.constant 0 : index
    %c0_130 = arith.constant 0 : index
    %365 = vector.load %arg6[%c0_129, %c0_130] : memref<128x512xbf16, #tpu.memory_space<vmem>>, vector<128x512xbf16>
    %cst_131 = arith.constant dense<0.000000e+00> : vector<8x512xf32>
    %366 = tpu.matmul %364, %365, %cst_131 {dimension_numbers = #tpu.dot_dimension_numbers<[1], [0], [0], [1], [0, 0, 1, 1], [], []>} : vector<8x128xbf16>, vector<128x512xbf16>, vector<8x512xf32> -> vector<8x512xf32>
    %367 = arith.addf %363, %366 : vector<8x512xf32>
    %368 = vector.extract_strided_slice %367 {offsets = [0, 0], sizes = [8, 384], strides = [1, 1]} : vector<8x512xf32> to vector<8x384xf32>
    %369 = arith.negf %368 : vector<8x384xf32>
    %370 = math.exp %369 : vector<8x384xf32>
    %cst_132 = arith.constant 1.000000e+00 : f32
    %371 = vector.broadcast %cst_132 : f32 to vector<8x384xf32>
    %372 = arith.addf %371, %370 : vector<8x384xf32>
    %373 = arith.divf %371, %372 : vector<8x384xf32>
    %374 = vector.extract_strided_slice %373 {offsets = [0, 0], sizes = [8, 128], strides = [1, 1]} : vector<8x384xf32> to vector<8x128xf32>
    %375 = vector.extract_strided_slice %373 {offsets = [0, 128], sizes = [8, 128], strides = [1, 1]} : vector<8x384xf32> to vector<8x128xf32>
    %376 = vector.extract_strided_slice %373 {offsets = [0, 256], sizes = [8, 128], strides = [1, 1]} : vector<8x384xf32> to vector<8x128xf32>
    %377 = vector.extract_strided_slice %367 {offsets = [0, 384], sizes = [8, 128], strides = [1, 1]} : vector<8x512xf32> to vector<8x128xf32>
    %378 = math.tanh %377 : vector<8x128xf32>
    %379 = arith.mulf %375, %357 : vector<8x128xf32>
    %380 = arith.mulf %374, %378 : vector<8x128xf32>
    %381 = arith.addf %379, %380 : vector<8x128xf32>
    %382 = math.tanh %381 : vector<8x128xf32>
    %383 = arith.mulf %376, %382 : vector<8x128xf32>
    %c6_i32_133 = arith.constant 6 : i32
    %c8_i32_134 = arith.constant 8 : i32
    %384 = arith.muli %c6_i32_133, %c8_i32_134 : i32
    %385 = tpu.assume_multiple %384, 8 : i32
    %386 = arith.index_cast %385 : i32 to index
    %c0_135 = arith.constant 0 : index
    %387 = vector.load %arg15[%386, %c0_135] : memref<64x512xf32, #tpu.memory_space<vmem>>, vector<8x512xf32>
    %388 = arith.truncf %383 : vector<8x128xf32> to vector<8x128xbf16>
    %c0_136 = arith.constant 0 : index
    %c0_137 = arith.constant 0 : index
    %389 = vector.load %arg6[%c0_136, %c0_137] : memref<128x512xbf16, #tpu.memory_space<vmem>>, vector<128x512xbf16>
    %cst_138 = arith.constant dense<0.000000e+00> : vector<8x512xf32>
    %390 = tpu.matmul %388, %389, %cst_138 {dimension_numbers = #tpu.dot_dimension_numbers<[1], [0], [0], [1], [0, 0, 1, 1], [], []>} : vector<8x128xbf16>, vector<128x512xbf16>, vector<8x512xf32> -> vector<8x512xf32>
    %391 = arith.addf %387, %390 : vector<8x512xf32>
    %392 = vector.extract_strided_slice %391 {offsets = [0, 0], sizes = [8, 384], strides = [1, 1]} : vector<8x512xf32> to vector<8x384xf32>
    %393 = arith.negf %392 : vector<8x384xf32>
    %394 = math.exp %393 : vector<8x384xf32>
    %cst_139 = arith.constant 1.000000e+00 : f32
    %395 = vector.broadcast %cst_139 : f32 to vector<8x384xf32>
    %396 = arith.addf %395, %394 : vector<8x384xf32>
    %397 = arith.divf %395, %396 : vector<8x384xf32>
    %398 = vector.extract_strided_slice %397 {offsets = [0, 0], sizes = [8, 128], strides = [1, 1]} : vector<8x384xf32> to vector<8x128xf32>
    %399 = vector.extract_strided_slice %397 {offsets = [0, 128], sizes = [8, 128], strides = [1, 1]} : vector<8x384xf32> to vector<8x128xf32>
    %400 = vector.extract_strided_slice %397 {offsets = [0, 256], sizes = [8, 128], strides = [1, 1]} : vector<8x384xf32> to vector<8x128xf32>
    %401 = vector.extract_strided_slice %391 {offsets = [0, 384], sizes = [8, 128], strides = [1, 1]} : vector<8x512xf32> to vector<8x128xf32>
    %402 = math.tanh %401 : vector<8x128xf32>
    %403 = arith.mulf %399, %381 : vector<8x128xf32>
    %404 = arith.mulf %398, %402 : vector<8x128xf32>
    %405 = arith.addf %403, %404 : vector<8x128xf32>
    %406 = math.tanh %405 : vector<8x128xf32>
    %407 = arith.mulf %400, %406 : vector<8x128xf32>
    %c7_i32_140 = arith.constant 7 : i32
    %c8_i32_141 = arith.constant 8 : i32
    %408 = arith.muli %c7_i32_140, %c8_i32_141 : i32
    %409 = tpu.assume_multiple %408, 8 : i32
    %410 = arith.index_cast %409 : i32 to index
    %c0_142 = arith.constant 0 : index
    %411 = vector.load %arg15[%410, %c0_142] : memref<64x512xf32, #tpu.memory_space<vmem>>, vector<8x512xf32>
    %412 = arith.truncf %407 : vector<8x128xf32> to vector<8x128xbf16>
    %c0_143 = arith.constant 0 : index
    %c0_144 = arith.constant 0 : index
    %413 = vector.load %arg6[%c0_143, %c0_144] : memref<128x512xbf16, #tpu.memory_space<vmem>>, vector<128x512xbf16>
    %cst_145 = arith.constant dense<0.000000e+00> : vector<8x512xf32>
    %414 = tpu.matmul %412, %413, %cst_145 {dimension_numbers = #tpu.dot_dimension_numbers<[1], [0], [0], [1], [0, 0, 1, 1], [], []>} : vector<8x128xbf16>, vector<128x512xbf16>, vector<8x512xf32> -> vector<8x512xf32>
    %415 = arith.addf %411, %414 : vector<8x512xf32>
    %416 = vector.extract_strided_slice %415 {offsets = [0, 0], sizes = [8, 384], strides = [1, 1]} : vector<8x512xf32> to vector<8x384xf32>
    %417 = arith.negf %416 : vector<8x384xf32>
    %418 = math.exp %417 : vector<8x384xf32>
    %cst_146 = arith.constant 1.000000e+00 : f32
    %419 = vector.broadcast %cst_146 : f32 to vector<8x384xf32>
    %420 = arith.addf %419, %418 : vector<8x384xf32>
    %421 = arith.divf %419, %420 : vector<8x384xf32>
    %422 = vector.extract_strided_slice %421 {offsets = [0, 0], sizes = [8, 128], strides = [1, 1]} : vector<8x384xf32> to vector<8x128xf32>
    %423 = vector.extract_strided_slice %421 {offsets = [0, 128], sizes = [8, 128], strides = [1, 1]} : vector<8x384xf32> to vector<8x128xf32>
    %424 = vector.extract_strided_slice %421 {offsets = [0, 256], sizes = [8, 128], strides = [1, 1]} : vector<8x384xf32> to vector<8x128xf32>
    %425 = vector.extract_strided_slice %415 {offsets = [0, 384], sizes = [8, 128], strides = [1, 1]} : vector<8x512xf32> to vector<8x128xf32>
    %426 = math.tanh %425 : vector<8x128xf32>
    %427 = arith.mulf %423, %405 : vector<8x128xf32>
    %428 = arith.mulf %422, %426 : vector<8x128xf32>
    %429 = arith.addf %427, %428 : vector<8x128xf32>
    %430 = math.tanh %429 : vector<8x128xf32>
    %431 = arith.mulf %424, %430 : vector<8x128xf32>
    %c8_i32_147 = arith.constant 8 : i32
    %c1_148 = arith.constant 1 : index
    %c0_149 = arith.constant 0 : index
    %c0_150 = arith.constant 0 : index
    %432 = vector.load %arg13[%c1_148, %c0_149, %c0_150] : memref<2x8x128xf32, #tpu.memory_space<vmem>>, vector<1x8x128xf32>
    %433 = vector.shape_cast %432 : vector<1x8x128xf32> to vector<8x128xf32>
    %434 = vector.shape_cast %431 : vector<8x128xf32> to vector<1x8x128xf32>
    tpu.vector_store %arg13[%c1_148, %c0_149, %c0_150], %434 {strides = array<i32>} : memref<2x8x128xf32, #tpu.memory_space<vmem>>, vector<1x8x128xf32>,
    %c1_151 = arith.constant 1 : index
    %c0_152 = arith.constant 0 : index
    %c0_153 = arith.constant 0 : index
    %435 = vector.load %arg14[%c1_151, %c0_152, %c0_153] : memref<2x8x128xf32, #tpu.memory_space<vmem>>, vector<1x8x128xf32>
    %436 = vector.shape_cast %435 : vector<1x8x128xf32> to vector<8x128xf32>
    %437 = vector.shape_cast %429 : vector<8x128xf32> to vector<1x8x128xf32>
    tpu.vector_store %arg14[%c1_151, %c0_152, %c0_153], %437 {strides = array<i32>} : memref<2x8x128xf32, #tpu.memory_space<vmem>>, vector<1x8x128xf32>,
    %c0_i32_154 = arith.constant 0 : i32
    %438 = arith.cmpi eq, %arg0, %c0_i32_154 : i32
    %439 = arith.extui %438 : i1 to i32
    %c0_i32_155 = arith.constant 0 : i32
    %440 = arith.cmpi ne, %439, %c0_i32_155 : i32
    scf.if %440 {
      %c0_156 = arith.constant 0 : index
      %c0_157 = arith.constant 0 : index
      %c0_158 = arith.constant 0 : index
      %441 = vector.load %arg13[%c0_156, %c0_157, %c0_158] : memref<2x8x128xf32, #tpu.memory_space<vmem>>, vector<2x8x128xf32>
      %c0_159 = arith.constant 0 : index
      %c0_160 = arith.constant 0 : index
      %c0_161 = arith.constant 0 : index
      %442 = vector.load %arg11[%c0_159, %c0_160, %c0_161] : memref<2x8x128xf32, #tpu.memory_space<vmem>>, vector<2x8x128xf32>
      tpu.vector_store %arg11[%c0_159, %c0_160, %c0_161], %441 {strides = array<i32>} : memref<2x8x128xf32, #tpu.memory_space<vmem>>, vector<2x8x128xf32>,
      %c0_162 = arith.constant 0 : index
      %c0_163 = arith.constant 0 : index
      %c0_164 = arith.constant 0 : index
      %443 = vector.load %arg14[%c0_162, %c0_163, %c0_164] : memref<2x8x128xf32, #tpu.memory_space<vmem>>, vector<2x8x128xf32>
      %c0_165 = arith.constant 0 : index
      %c0_166 = arith.constant 0 : index
      %c0_167 = arith.constant 0 : index
      %444 = vector.load %arg12[%c0_165, %c0_166, %c0_167] : memref<2x8x128xf32, #tpu.memory_space<vmem>>, vector<2x8x128xf32>
      tpu.vector_store %arg12[%c0_165, %c0_166, %c0_167], %443 {strides = array<i32>} : memref<2x8x128xf32, #tpu.memory_space<vmem>>, vector<2x8x128xf32>,
      %c1_168 = arith.constant 1 : index
      %c0_169 = arith.constant 0 : index
      %c0_170 = arith.constant 0 : index
      %445 = vector.load %arg13[%c1_168, %c0_169, %c0_170] : memref<2x8x128xf32, #tpu.memory_space<vmem>>, vector<1x8x128xf32>
      %446 = vector.shape_cast %445 : vector<1x8x128xf32> to vector<8x128xf32>
      %447 = arith.truncf %446 : vector<8x128xf32> to vector<8x128xbf16>
      %c0_171 = arith.constant 0 : index
      %c0_172 = arith.constant 0 : index
      %448 = vector.load %arg8[%c0_171, %c0_172] : memref<128x128xbf16, #tpu.memory_space<vmem>>, vector<128x128xbf16>
      %cst_173 = arith.constant dense<0.000000e+00> : vector<8x128xf32>
      %449 = tpu.matmul %447, %448, %cst_173 {dimension_numbers = #tpu.dot_dimension_numbers<[1], [0], [0], [1], [0, 0, 1, 1], [], []>} : vector<8x128xbf16>, vector<128x128xbf16>, vector<8x128xf32> -> vector<8x128xf32>
      %c0_174 = arith.constant 0 : index
      %c0_175 = arith.constant 0 : index
      %450 = vector.load %arg9[%c0_174, %c0_175] : memref<1x128xf32, #tpu.memory_space<vmem>>, vector<1x128xf32>
      %451 = vector.broadcast %450 : vector<1x128xf32> to vector<8x128xf32>
      %452 = arith.addf %449, %451 : vector<8x128xf32>
      %c0_176 = arith.constant 0 : index
      %c0_177 = arith.constant 0 : index
      %453 = vector.load %arg10[%c0_176, %c0_177] : memref<8x128xf32, #tpu.memory_space<vmem>>, vector<8x128xf32>
      tpu.vector_store %arg10[%c0_176, %c0_177], %452 {strides = array<i32>} : memref<8x128xf32, #tpu.memory_space<vmem>>, vector<8x128xf32>,
    } else {
    }
    return
  }
  func.func @transform_0(%arg0: i32) -> (i32, i32) {
    %c0_i32 = arith.constant 0 : i32
    %c0_i32_0 = arith.constant 0 : i32
    return %arg0, %c0_i32 : i32, i32
  }
  func.func @transform_1(%arg0: i32) -> (i32, i32) {
    %c0_i32 = arith.constant 0 : i32
    %c0_i32_0 = arith.constant 0 : i32
    %c0_i32_1 = arith.constant 0 : i32
    return %c0_i32, %c0_i32_0 : i32, i32
  }
  func.func @transform_2(%arg0: i32) -> (i32, i32) {
    %c0_i32 = arith.constant 0 : i32
    %c0_i32_0 = arith.constant 0 : i32
    %c0_i32_1 = arith.constant 0 : i32
    return %c0_i32, %c0_i32_0 : i32, i32
  }
  func.func @transform_3(%arg0: i32) -> (i32, i32) {
    %c0_i32 = arith.constant 0 : i32
    %c0_i32_0 = arith.constant 0 : i32
    %c0_i32_1 = arith.constant 0 : i32
    return %c0_i32, %c0_i32_0 : i32, i32
  }
  func.func @transform_4(%arg0: i32) -> (i32, i32) {
    %c0_i32 = arith.constant 0 : i32
    %c0_i32_0 = arith.constant 0 : i32
    %c0_i32_1 = arith.constant 0 : i32
    return %c0_i32, %c0_i32_0 : i32, i32
  }
  func.func @transform_5(%arg0: i32) -> (i32, i32) {
    %c0_i32 = arith.constant 0 : i32
    %c0_i32_0 = arith.constant 0 : i32
    %c0_i32_1 = arith.constant 0 : i32
    return %c0_i32, %c0_i32_0 : i32, i32
  }
  func.func @transform_6(%arg0: i32) -> (i32, i32) {
    %c0_i32 = arith.constant 0 : i32
    %c0_i32_0 = arith.constant 0 : i32
    %c0_i32_1 = arith.constant 0 : i32
    return %c0_i32, %c0_i32_0 : i32, i32
  }
  func.func @transform_7(%arg0: i32) -> (i32, i32) {
    %c0_i32 = arith.constant 0 : i32
    %c0_i32_0 = arith.constant 0 : i32
    %c0_i32_1 = arith.constant 0 : i32
    return %c0_i32, %c0_i32_0 : i32, i32
  }
  func.func @transform_8(%arg0: i32) -> (i32, i32) {
    %c0_i32 = arith.constant 0 : i32
    %c0_i32_0 = arith.constant 0 : i32
    %c0_i32_1 = arith.constant 0 : i32
    return %c0_i32, %c0_i32_0 : i32, i32
  }
  func.func @transform_9(%arg0: i32) -> (i32, i32) {
    %c0_i32 = arith.constant 0 : i32
    %c0_i32_0 = arith.constant 0 : i32
    %c0_i32_1 = arith.constant 0 : i32
    return %c0_i32, %c0_i32_0 : i32, i32
  }
  func.func @transform_10(%arg0: i32) -> (i32, i32, i32) {
    %c0_i32 = arith.constant 0 : i32
    %c0_i32_0 = arith.constant 0 : i32
    %c0_i32_1 = arith.constant 0 : i32
    %c0_i32_2 = arith.constant 0 : i32
    return %c0_i32, %c0_i32_0, %c0_i32_1 : i32, i32, i32
  }
  func.func @transform_11(%arg0: i32) -> (i32, i32, i32) {
    %c0_i32 = arith.constant 0 : i32
    %c0_i32_0 = arith.constant 0 : i32
    %c0_i32_1 = arith.constant 0 : i32
    %c0_i32_2 = arith.constant 0 : i32
    return %c0_i32, %c0_i32_0, %c0_i32_1 : i32, i32, i32
  }
}

</mosaic_0001>

<llo_original>
// kernel: tpu_custom_call.1
$region0: #{tpu_custom_call.1}
  #allocation0 [shape = 'u32[]', space=smem, size = 0x4, offset = 0x4, fixed_abs, tag = 'smem constant byte address 0x4 - core index']
  #allocation1 [shape = 'u32[72,128]{1,0:T(1,128)}', space=vmem, size = 0x9000, scoped, tag = 'internal scratch']
  #allocation2 [shape = 'f32[2,8,128]{2,1,0:T(8,128)}', space=vmem, size = 0x2000, scoped, tag = 'scratch operand']
  #allocation3 [shape = 'f32[2,8,128]{2,1,0:T(8,128)}', space=vmem, size = 0x2000, scoped, tag = 'scratch operand']
  #allocation4 [shape = 'f32[64,512]{1,0:T(8,128)}', space=vmem, size = 0x20000, scoped, tag = 'scratch operand']
  #allocation5 [shape = 'f32[64,128]{1,0:T(8,128)}', space=vmem, size = 0x8000, scoped, tag = 'scratch operand']
  %s0 = inlined_call_operand.vmem [shape: bf16[64,16], index: 0, kind: input, shape index: {}]
  %s1 = inlined_call_operand.vmem [shape: bf16[16,512], index: 1, kind: input, shape index: {}]
  %s2 = inlined_call_operand.hbm [shape: bf16[128,512], index: 2, kind: input, shape index: {}]
  %s3 = inlined_call_operand.vmem [shape: f32[1,512], index: 3, kind: input, shape index: {}]
  %s4 = inlined_call_operand.hbm [shape: bf16[128,512], index: 4, kind: input, shape index: {}]
  %s5 = inlined_call_operand.hbm [shape: bf16[128,512], index: 5, kind: input, shape index: {}]
  %s6 = inlined_call_operand.vmem [shape: f32[1,512], index: 6, kind: input, shape index: {}]
  %s7 = inlined_call_operand.hbm [shape: bf16[128,128], index: 7, kind: input, shape index: {}]
  %s8 = inlined_call_operand.vmem [shape: f32[1,128], index: 8, kind: input, shape index: {}]
  %s9 = inlined_call_operand.hbm [shape: f32[8,128], index: 9, kind: output, shape index: {0}]
  %s10 = inlined_call_operand.hbm [shape: f32[2,8,128], index: 10, kind: output, shape index: {1}]
  %s11 = inlined_call_operand.hbm [shape: f32[2,8,128], index: 11, kind: output, shape index: {2}]
  %12 = xla_tuple %s9, %s10, %s11
  %s13 = sld [smem:[#allocation0]]
  $region86: #{tpu_custom_call.1} parent=0
    _
  %s15 = ssub.s32 1, %s13
  %s16 = scalar_select 0, %s15, %s13
  $region1: #{tpu_custom_call.1} parent=0
    #allocation6 [shape = 'u8[131072]{0}', space=vmem, size = 0x20000, scoped, tag = 'input window, operand 2, single buffered']
    #allocation7 [shape = 's32[1]{0}', space=sflag, size = 0x4, scoped, tag = 'scoped memory for tpu_custom_call.1']
    #allocation8 [shape = 's32[1]{0}', space=sflag, size = 0x4, scoped, tag = 'scoped memory for tpu_custom_call.1']
    #allocation9 [shape = 'u8[131072]{0}', space=vmem, size = 0x20000, scoped, tag = 'input window, operand 4, single buffered']
    #allocation10 [shape = 's32[1]{0}', space=sflag, size = 0x4, scoped, tag = 'scoped memory for tpu_custom_call.1']
    #allocation11 [shape = 'u8[131072]{0}', space=vmem, size = 0x20000, scoped, tag = 'input window, operand 5, single buffered']
    #allocation12 [shape = 'u8[32768]{0}', space=vmem, size = 0x8000, scoped, tag = 'input window, operand 7, single buffered']
    #allocation13 [shape = 's32[1]{0}', space=sflag, size = 0x4, scoped, tag = 'scoped memory for tpu_custom_call.1']
    #allocation14 [shape = 'u8[4096]{0}', space=vmem, size = 0x1000, scoped, tag = 'output window, operand 0, single buffered']
    #allocation15 [shape = 'u8[8192]{0}', space=vmem, size = 0x2000, scoped, tag = 'output window, operand 1, single buffered']
    #allocation16 [shape = 's32[1]{0}', space=sflag, size = 0x4, scoped, tag = 'scoped memory for tpu_custom_call.1']
    #allocation17 [shape = 'u8[8192]{0}', space=vmem, size = 0x2000, scoped, tag = 'output window, operand 2, single buffered']
    %17 = vsyncpa [#allocation7], 0
    %18 = vsyncpa [#allocation10], 0
    %19 = vsyncpa [#allocation13], 0
    %20 = vsyncpa [#allocation8], 0
    %21 = vsyncpa [#allocation16], 0
    // Predicated region
    $region2: #{tpu_custom_call.1} parent=1 // pred_check
      _
    $region3: #{tpu_custom_call.1} parent=1 // pred_check_branch
      %23 = sbr.rel (0) target = $region5
    $region4: #{tpu_custom_call.1} parent=1 // pred_region
      _
    $region5: #{tpu_custom_call.1} parent=1 // pred_fallthru
      _
    // Predicated region
    $region6: #{tpu_custom_call.1} parent=1 // pred_check
      _
    $region7: #{tpu_custom_call.1} parent=1 // pred_check_branch
      %25 = sbr.rel (0) target = $region9
    $region8: #{tpu_custom_call.1} parent=1 // pred_region
      _
    $region9: #{tpu_custom_call.1} parent=1 // pred_fallthru
      _
    // Predicated region
    $region10: #{tpu_custom_call.1} parent=1 // pred_check
      _
    $region11: #{tpu_custom_call.1} parent=1 // pred_check_branch
      %27 = sbr.rel (0) target = $region13
    $region12: #{tpu_custom_call.1} parent=1 // pred_region
      %29 = vsyncadd [#allocation7], 0
      %s30 = sshll.u32 %s2, 4
      %s31 = int_to_ptr.hbm [resolvable:$true] %s30
      %s32 = sshll.u32 [#allocation6], 4
      %s33 = int_to_ptr.vmem [resolvable:$true] %s32
      %38 = dma.hbm_to_vmem [thread:$0]  %s31, 4096, %s33, [#allocation7], 256, 256, 16
    $region13: #{tpu_custom_call.1} parent=1 // pred_fallthru
      _
    // Predicated region
    $region14: #{tpu_custom_call.1} parent=1 // pred_check
      _
    $region15: #{tpu_custom_call.1} parent=1 // pred_check_branch
      %40 = sbr.rel (0) target = $region17
    $region16: #{tpu_custom_call.1} parent=1 // pred_region
      _
    $region17: #{tpu_custom_call.1} parent=1 // pred_fallthru
      _
    // Predicated region
    $region18: #{tpu_custom_call.1} parent=1 // pred_check
      _
    $region19: #{tpu_custom_call.1} parent=1 // pred_check_branch
      %42 = sbr.rel (0) target = $region21
    $region20: #{tpu_custom_call.1} parent=1 // pred_region
      %44 = vsyncadd [#allocation10], 0
      %s45 = sshll.u32 %s4, 4
      %s46 = int_to_ptr.hbm [resolvable:$true] %s45
      %s47 = sshll.u32 [#allocation9], 4
      %s48 = int_to_ptr.vmem [resolvable:$true] %s47
      %53 = dma.hbm_to_vmem [thread:$0]  %s46, 4096, %s48, [#allocation10], 256, 256, 16
    $region21: #{tpu_custom_call.1} parent=1 // pred_fallthru
      _
    // Predicated region
    $region22: #{tpu_custom_call.1} parent=1 // pred_check
      _
    $region23: #{tpu_custom_call.1} parent=1 // pred_check_branch
      %55 = sbr.rel (0) target = $region25
    $region24: #{tpu_custom_call.1} parent=1 // pred_region
      %57 = vsyncadd [#allocation10], 0
      %s58 = sshll.u32 %s5, 4
      %s59 = int_to_ptr.hbm [resolvable:$true] %s58
      %s60 = sshll.u32 [#allocation11], 4
      %s61 = int_to_ptr.vmem [resolvable:$true] %s60
      %66 = dma.hbm_to_vmem [thread:$0]  %s59, 4096, %s61, [#allocation10], 256, 256, 16
    $region25: #{tpu_custom_call.1} parent=1 // pred_fallthru
      _
    // Predicated region
    $region26: #{tpu_custom_call.1} parent=1 // pred_check
      _
    $region27: #{tpu_custom_call.1} parent=1 // pred_check_branch
      %68 = sbr.rel (0) target = $region29
    $region28: #{tpu_custom_call.1} parent=1 // pred_region
      _
    $region29: #{tpu_custom_call.1} parent=1 // pred_fallthru
      _
    // Predicated region
    $region30: #{tpu_custom_call.1} parent=1 // pred_check
      _
    $region31: #{tpu_custom_call.1} parent=1 // pred_check_branch
      %70 = sbr.rel (0) target = $region33
    $region32: #{tpu_custom_call.1} parent=1 // pred_region
      %72 = vsyncadd [#allocation13], 0
      %s73 = sshll.u32 %s7, 4
      %s74 = int_to_ptr.hbm [resolvable:$true] %s73
      %s75 = sshll.u32 [#allocation12], 4
      %s76 = int_to_ptr.vmem [resolvable:$true] %s75
      %81 = dma.hbm_to_vmem [thread:$0]  %s74, 1024, %s76, [#allocation13], 64, 64, 4
    $region33: #{tpu_custom_call.1} parent=1 // pred_fallthru
      _
    // Predicated region
    $region34: #{tpu_custom_call.1} parent=1 // pred_check
      _
    $region35: #{tpu_custom_call.1} parent=1 // pred_check_branch
      %83 = sbr.rel (0) target = $region37
    $region36: #{tpu_custom_call.1} parent=1 // pred_region
      _
    $region37: #{tpu_custom_call.1} parent=1 // pred_fallthru
      _
    // Predicated region
    $region38: #{tpu_custom_call.1} parent=1 // pred_check
      _
    $region39: #{tpu_custom_call.1} parent=1 // pred_check_branch
      %85 = sbr.rel (0) target = $region41
    $region40: #{tpu_custom_call.1} parent=1 // pred_region
      %87 = dma.done [#allocation7], 4096
    $region41: #{tpu_custom_call.1} parent=1 // pred_fallthru
      _
    // Predicated region
    $region42: #{tpu_custom_call.1} parent=1 // pred_check
      _
    $region43: #{tpu_custom_call.1} parent=1 // pred_check_branch
      %89 = sbr.rel (0) target = $region45
    $region44: #{tpu_custom_call.1} parent=1 // pred_region
      %91 = dma.done [#allocation10], 4096
    $region45: #{tpu_custom_call.1} parent=1 // pred_fallthru
      _
    // Predicated region
    $region46: #{tpu_custom_call.1} parent=1 // pred_check
      _
    $region47: #{tpu_custom_call.1} parent=1 // pred_check_branch
      %93 = sbr.rel (0) target = $region49
    $region48: #{tpu_custom_call.1} parent=1 // pred_region
      %95 = dma.done [#allocation10], 4096
    $region49: #{tpu_custom_call.1} parent=1 // pred_fallthru
      _
    // Predicated region
    $region50: #{tpu_custom_call.1} parent=1 // pred_check
      _
    $region51: #{tpu_custom_call.1} parent=1 // pred_check_branch
      %97 = sbr.rel (0) target = $region53
    $region52: #{tpu_custom_call.1} parent=1 // pred_region
      %99 = dma.done [#allocation13], 1024
    $region53: #{tpu_custom_call.1} parent=1 // pred_fallthru
      _
    %p101 = scmp.eq.s32.totalorder 0, 0
    // Predicated region
    $region54: #{tpu_custom_call.1} parent=1 // pred_check
      %p102 = pneg %p101
    $region55: #{tpu_custom_call.1} parent=1 // pred_check_branch
      %104 = sbr.rel (%p102) target = $region57
    $region56: #{tpu_custom_call.1} parent=1 // pred_region
      %105 = vst [vmem:[#allocation2] sm:$0xff] 0.0
      %106 = vst [vmem:[#allocation2 + $0x8] sm:$0xff] 0.0
      %107 = vst [vmem:[#allocation3] sm:$0xff] 0.0
      %108 = vst [vmem:[#allocation3 + $0x8] sm:$0xff] 0.0
    $region57: #{tpu_custom_call.1} parent=1 // pred_fallthru
      _
    %v109 = vld [vmem:[%s0] sm:$0xf]
    %v110 = vld [vmem:[%s0 + $0x4] sm:$0xf]
    %v111 = vld [vmem:[%s0 + $0x8] sm:$0xf]
    %v112 = vld [vmem:[%s0 + $0xc] sm:$0xf]
    %v113 = vld [vmem:[%s0 + $0x10] sm:$0xf]
    %v114 = vld [vmem:[%s0 + $0x14] sm:$0xf]
    %v115 = vld [vmem:[%s0 + $0x18] sm:$0xf]
    %v116 = vld [vmem:[%s0 + $0x1c] sm:$0xf]
    %v117 = vld [vmem:[%s1] sm:$0xff]
    %v118 = vld [vmem:[%s1 + $0x8] sm:$0xff]
    %v119 = vld [vmem:[%s1 + $0x10] sm:$0xff]
    %v120 = vld [vmem:[%s1 + $0x18] sm:$0xff]
    %v121 = vld [vmem:[%s3] sm:$0xf]
    %v123 = vperm.slane %v121, 0
    %v124 = vperm.slane %v121, 1
    %v125 = vperm.slane %v121, 2
    %v126 = vperm.slane %v121, 3
    %v139 = vunpack.c.l.b16 %v109
    %v140 = vunpack.c.l.b16 %v110
    %v141 = vunpack.c.l.b16 %v111
    %v142 = vunpack.c.l.b16 %v112
    %v143 = vunpack.c.l.b16 %v113
    %v144 = vunpack.c.l.b16 %v114
    %v145 = vunpack.c.l.b16 %v115
    %v146 = vunpack.c.l.b16 %v116
    %v147 = vpack.c.b16 %v140, %v139
    %v148 = vpack.c.b16 %v142, %v141
    %v149 = vpack.c.b16 %v144, %v143
    %v150 = vpack.c.b16 %v146, %v145
    %v155 = vunpack.c.l.b16 %v117
    %v156 = vunpack.c.h.b16 %v117
    %v157 = vunpack.c.l.b16 %v118
    %v158 = vunpack.c.h.b16 %v118
    %v159 = vunpack.c.l.b16 %v119
    %v160 = vunpack.c.h.b16 %v119
    %v161 = vunpack.c.l.b16 %v120
    %v162 = vunpack.c.h.b16 %v120
    %v163 = vpack.c.b16 %v159, %v155
    %v164 = vpack.c.b16 %v160, %v156
    %v165 = vpack.c.b16 %v161, %v157
    %v166 = vpack.c.b16 %v162, %v158
    %vm171 = vcmask 130048
    %v173 = vsel %vm171, %v147, 0
    %v176 = vsel %vm171, %v148, 0
    %v179 = vsel %vm171, %v149, 0
    %v182 = vsel %vm171, %v150, 0
    %184 = vmatpush.bf16.msra.mxu0 0
    %185 = vmatpush.bf16.msra.mxu0 0
    %186 = vmatpush.bf16.msra.mxu0 0
    %187 = vmatpush.bf16.msra.mxu0 0
    %188 = vmatpush.bf16.msra.mxu0 0
    %189 = vmatpush.bf16.msra.mxu0 0
    %190 = vmatpush.bf16.msra.mxu0 0
    %191 = vmatpush.bf16.msra.mxu0 %v163
    %192 = vmatmul.bf16.gmra.mxu0 %v173
    %v193 = vpop.f32.mrf.mxu0
    %v194 = vadd.f32 %v123, %v193
    %v195 = vpop.f32.mrf.mxu0
    %v196 = vadd.f32 %v123, %v195
    %197 = vmatmul.bf16.gmra.mxu0 %v176
    %v198 = vpop.f32.mrf.mxu0
    %v199 = vadd.f32 %v123, %v198
    %v200 = vpop.f32.mrf.mxu0
    %v201 = vadd.f32 %v123, %v200
    %202 = vmatmul.bf16.gmra.mxu0 %v179
    %v203 = vpop.f32.mrf.mxu0
    %v204 = vadd.f32 %v123, %v203
    %v205 = vpop.f32.mrf.mxu0
    %v206 = vadd.f32 %v123, %v205
    %207 = vmatmul.bf16.gmra.mxu0 %v182
    %v208 = vpop.f32.mrf.mxu0
    %v209 = vadd.f32 %v123, %v208
    %v210 = vpop.f32.mrf.mxu0
    %v211 = vadd.f32 %v123, %v210
    %212 = vdwg.mxu0
    %213 = vmatpush.bf16.msra.mxu0 0
    %214 = vmatpush.bf16.msra.mxu0 0
    %215 = vmatpush.bf16.msra.mxu0 0
    %216 = vmatpush.bf16.msra.mxu0 0
    %217 = vmatpush.bf16.msra.mxu0 0
    %218 = vmatpush.bf16.msra.mxu0 0
    %219 = vmatpush.bf16.msra.mxu0 0
    %220 = vmatpush.bf16.msra.mxu0 %v164
    %221 = vmatmul.bf16.gmra.mxu0 %v173
    %v222 = vpop.f32.mrf.mxu0
    %v223 = vadd.f32 %v124, %v222
    %v224 = vpop.f32.mrf.mxu0
    %v225 = vadd.f32 %v124, %v224
    %226 = vmatmul.bf16.gmra.mxu0 %v176
    %v227 = vpop.f32.mrf.mxu0
    %v228 = vadd.f32 %v124, %v227
    %v229 = vpop.f32.mrf.mxu0
    %v230 = vadd.f32 %v124, %v229
    %231 = vmatmul.bf16.gmra.mxu0 %v179
    %v232 = vpop.f32.mrf.mxu0
    %v233 = vadd.f32 %v124, %v232
    %v234 = vpop.f32.mrf.mxu0
    %v235 = vadd.f32 %v124, %v234
    %236 = vmatmul.bf16.gmra.mxu0 %v182
    %v237 = vpop.f32.mrf.mxu0
    %v238 = vadd.f32 %v124, %v237
    %v239 = vpop.f32.mrf.mxu0
    %v240 = vadd.f32 %v124, %v239
    %241 = vdwg.mxu0
    %242 = vmatpush.bf16.msra.mxu0 0
    %243 = vmatpush.bf16.msra.mxu0 0
    %244 = vmatpush.bf16.msra.mxu0 0
    %245 = vmatpush.bf16.msra.mxu0 0
    %246 = vmatpush.bf16.msra.mxu0 0
    %247 = vmatpush.bf16.msra.mxu0 0
    %248 = vmatpush.bf16.msra.mxu0 0
    %249 = vmatpush.bf16.msra.mxu0 %v165
    %250 = vmatmul.bf16.gmra.mxu0 %v173
    %v251 = vpop.f32.mrf.mxu0
    %v252 = vadd.f32 %v125, %v251
    %v253 = vpop.f32.mrf.mxu0
    %v254 = vadd.f32 %v125, %v253
    %255 = vmatmul.bf16.gmra.mxu0 %v176
    %v256 = vpop.f32.mrf.mxu0
    %v257 = vadd.f32 %v125, %v256
    %v258 = vpop.f32.mrf.mxu0
    %v259 = vadd.f32 %v125, %v258
    %260 = vmatmul.bf16.gmra.mxu0 %v179
    %v261 = vpop.f32.mrf.mxu0
    %v262 = vadd.f32 %v125, %v261
    %v263 = vpop.f32.mrf.mxu0
    %v264 = vadd.f32 %v125, %v263
    %265 = vmatmul.bf16.gmra.mxu0 %v182
    %v266 = vpop.f32.mrf.mxu0
    %v267 = vadd.f32 %v125, %v266
    %v268 = vpop.f32.mrf.mxu0
    %v269 = vadd.f32 %v125, %v268
    %270 = vdwg.mxu0
    %271 = vmatpush.bf16.msra.mxu0 0
    %272 = vmatpush.bf16.msra.mxu0 0
    %273 = vmatpush.bf16.msra.mxu0 0
    %274 = vmatpush.bf16.msra.mxu0 0
    %275 = vmatpush.bf16.msra.mxu0 0
    %276 = vmatpush.bf16.msra.mxu0 0
    %277 = vmatpush.bf16.msra.mxu0 0
    %278 = vmatpush.bf16.msra.mxu0 %v166
    %279 = vmatmul.bf16.gmra.mxu0 %v173
    %v280 = vpop.f32.mrf.mxu0
    %v281 = vadd.f32 %v126, %v280
    %v282 = vpop.f32.mrf.mxu0
    %v283 = vadd.f32 %v126, %v282
    %284 = vmatmul.bf16.gmra.mxu0 %v176
    %v285 = vpop.f32.mrf.mxu0
    %v286 = vadd.f32 %v126, %v285
    %v287 = vpop.f32.mrf.mxu0
    %v288 = vadd.f32 %v126, %v287
    %289 = vmatmul.bf16.gmra.mxu0 %v179
    %v290 = vpop.f32.mrf.mxu0
    %v291 = vadd.f32 %v126, %v290
    %v292 = vpop.f32.mrf.mxu0
    %v293 = vadd.f32 %v126, %v292
    %294 = vmatmul.bf16.gmra.mxu0 %v182
    %v295 = vpop.f32.mrf.mxu0
    %v296 = vadd.f32 %v126, %v295
    %v297 = vpop.f32.mrf.mxu0
    %v298 = vadd.f32 %v126, %v297
    %299 = vdwg.mxu0
    %300 = vst [vmem:[#allocation4] sm:$0xff] %v194
    %301 = vst [vmem:[#allocation4 + $0x8] sm:$0xff] %v223
    %302 = vst [vmem:[#allocation4 + $0x10] sm:$0xff] %v252
    %303 = vst [vmem:[#allocation4 + $0x18] sm:$0xff] %v281
    %304 = vst [vmem:[#allocation4 + $0x20] sm:$0xff] %v196
    %305 = vst [vmem:[#allocation4 + $0x28] sm:$0xff] %v225
    %306 = vst [vmem:[#allocation4 + $0x30] sm:$0xff] %v254
    %307 = vst [vmem:[#allocation4 + $0x38] sm:$0xff] %v283
    %308 = vst [vmem:[#allocation4 + $0x40] sm:$0xff] %v199
    %309 = vst [vmem:[#allocation4 + $0x48] sm:$0xff] %v228
    %310 = vst [vmem:[#allocation4 + $0x50] sm:$0xff] %v257
    %311 = vst [vmem:[#allocation4 + $0x58] sm:$0xff] %v286
    %312 = vst [vmem:[#allocation4 + $0x60] sm:$0xff] %v201
    %313 = vst [vmem:[#allocation4 + $0x68] sm:$0xff] %v230
    %314 = vst [vmem:[#allocation4 + $0x70] sm:$0xff] %v259
    %315 = vst [vmem:[#allocation4 + $0x78] sm:$0xff] %v288
    %316 = vst [vmem:[#allocation4 + $0x80] sm:$0xff] %v204
    %317 = vst [vmem:[#allocation4 + $0x88] sm:$0xff] %v233
    %318 = vst [vmem:[#allocation4 + $0x90] sm:$0xff] %v262
    %319 = vst [vmem:[#allocation4 + $0x98] sm:$0xff] %v291
    %320 = vst [vmem:[#allocation4 + $0xa0] sm:$0xff] %v206
    %321 = vst [vmem:[#allocation4 + $0xa8] sm:$0xff] %v235
    %322 = vst [vmem:[#allocation4 + $0xb0] sm:$0xff] %v264
    %323 = vst [vmem:[#allocation4 + $0xb8] sm:$0xff] %v293
    %324 = vst [vmem:[#allocation4 + $0xc0] sm:$0xff] %v209
    %325 = vst [vmem:[#allocation4 + $0xc8] sm:$0xff] %v238
    %326 = vst [vmem:[#allocation4 + $0xd0] sm:$0xff] %v267
    %327 = vst [vmem:[#allocation4 + $0xd8] sm:$0xff] %v296
    %328 = vst [vmem:[#allocation4 + $0xe0] sm:$0xff] %v211
    %329 = vst [vmem:[#allocation4 + $0xe8] sm:$0xff] %v240
    %330 = vst [vmem:[#allocation4 + $0xf0] sm:$0xff] %v269
    %331 = vst [vmem:[#allocation4 + $0xf8] sm:$0xff] %v298
    %v332 = vld [vmem:[#allocation2] sm:$0xff]
    %v333 = vld [vmem:[#allocation3] sm:$0xff]
    %s334 = smul.u32 0, 4
    %s335 = smul.addr %s334, 8
    %s336 = scalar_lea.vmem [#allocation4], %s335
    %v337 = vld [vmem:[%s336] sm:$0xff]
    %v338 = vld [vmem:[%s336 + $0x8] sm:$0xff]
    %v339 = vld [vmem:[%s336 + $0x10] sm:$0xff]
    %v340 = vld [vmem:[%s336 + $0x18] sm:$0xff]
    %v341 = vpack.c.bf16 %v332, %v332
    %v342 = vld [vmem:[#allocation6] sm:$0xff]
    %v343 = vld [vmem:[#allocation6 + $0x8] sm:$0xff]
    %v344 = vld [vmem:[#allocation6 + $0x10] sm:$0xff]
    %v345 = vld [vmem:[#allocation6 + $0x18] sm:$0xff]
    %v346 = vld [vmem:[#allocation6 + $0x20] sm:$0xff]
    %v347 = vld [vmem:[#allocation6 + $0x28] sm:$0xff]
    %v348 = vld [vmem:[#allocation6 + $0x30] sm:$0xff]
    %v349 = vld [vmem:[#allocation6 + $0x38] sm:$0xff]
    %v350 = vld [vmem:[#allocation6 + $0x40] sm:$0xff]
    %v351 = vld [vmem:[#allocation6 + $0x48] sm:$0xff]
    %v352 = vld [vmem:[#allocation6 + $0x50] sm:$0xff]
    %v353 = vld [vmem:[#allocation6 + $0x58] sm:$0xff]
    %v354 = vld [vmem:[#allocation6 + $0x60] sm:$0xff]
    %v355 = vld [vmem:[#allocation6 + $0x68] sm:$0xff]
    %v356 = vld [vmem:[#allocation6 + $0x70] sm:$0xff]
    %v357 = vld [vmem:[#allocation6 + $0x78] sm:$0xff]
    %v358 = vld [vmem:[#allocation6 + $0x80] sm:$0xff]
    %v359 = vld [vmem:[#allocation6 + $0x88] sm:$0xff]
    %v360 = vld [vmem:[#allocation6 + $0x90] sm:$0xff]
    %v361 = vld [vmem:[#allocation6 + $0x98] sm:$0xff]
    %v362 = vld [vmem:[#allocation6 + $0xa0] sm:$0xff]
    %v363 = vld [vmem:[#allocation6 + $0xa8] sm:$0xff]
    %v364 = vld [vmem:[#allocation6 + $0xb0] sm:$0xff]
    %v365 = vld [vmem:[#allocation6 + $0xb8] sm:$0xff]
    %v366 = vld [vmem:[#allocation6 + $0xc0] sm:$0xff]
    %v367 = vld [vmem:[#allocation6 + $0xc8] sm:$0xff]
    %v368 = vld [vmem:[#allocation6 + $0xd0] sm:$0xff]
    %v369 = vld [vmem:[#allocation6 + $0xd8] sm:$0xff]
    %v370 = vld [vmem:[#allocation6 + $0xe0] sm:$0xff]
    %v371 = vld [vmem:[#allocation6 + $0xe8] sm:$0xff]
    %v372 = vld [vmem:[#allocation6 + $0xf0] sm:$0xff]
    %v373 = vld [vmem:[#allocation6 + $0xf8] sm:$0xff]
    %v406 = vunpack.c.l.b16 %v342
    %v407 = vunpack.c.h.b16 %v342
    %v408 = vunpack.c.l.b16 %v343
    %v409 = vunpack.c.h.b16 %v343
    %v410 = vunpack.c.l.b16 %v344
    %v411 = vunpack.c.h.b16 %v344
    %v412 = vunpack.c.l.b16 %v345
    %v413 = vunpack.c.h.b16 %v345
    %v414 = vunpack.c.l.b16 %v346
    %v415 = vunpack.c.h.b16 %v346
    %v416 = vunpack.c.l.b16 %v347
    %v417 = vunpack.c.h.b16 %v347
    %v418 = vunpack.c.l.b16 %v348
    %v419 = vunpack.c.h.b16 %v348
    %v420 = vunpack.c.l.b16 %v349
    %v421 = vunpack.c.h.b16 %v349
    %v422 = vunpack.c.l.b16 %v350
    %v423 = vunpack.c.h.b16 %v350
    %v424 = vunpack.c.l.b16 %v351
    %v425 = vunpack.c.h.b16 %v351
    %v426 = vunpack.c.l.b16 %v352
    %v427 = vunpack.c.h.b16 %v352
    %v428 = vunpack.c.l.b16 %v353
    %v429 = vunpack.c.h.b16 %v353
    %v430 = vunpack.c.l.b16 %v354
    %v431 = vunpack.c.h.b16 %v354
    %v432 = vunpack.c.l.b16 %v355
    %v433 = vunpack.c.h.b16 %v355
    %v434 = vunpack.c.l.b16 %v356
    %v435 = vunpack.c.h.b16 %v356
    %v436 = vunpack.c.l.b16 %v357
    %v437 = vunpack.c.h.b16 %v357
    %v438 = vunpack.c.l.b16 %v358
    %v439 = vunpack.c.h.b16 %v358
    %v440 = vunpack.c.l.b16 %v359
    %v441 = vunpack.c.h.b16 %v359
    %v442 = vunpack.c.l.b16 %v360
    %v443 = vunpack.c.h.b16 %v360
    %v444 = vunpack.c.l.b16 %v361
    %v445 = vunpack.c.h.b16 %v361
    %v446 = vunpack.c.l.b16 %v362
    %v447 = vunpack.c.h.b16 %v362
    %v448 = vunpack.c.l.b16 %v363
    %v449 = vunpack.c.h.b16 %v363
    %v450 = vunpack.c.l.b16 %v364
    %v451 = vunpack.c.h.b16 %v364
    %v452 = vunpack.c.l.b16 %v365
    %v453 = vunpack.c.h.b16 %v365
    %v454 = vunpack.c.l.b16 %v366
    %v455 = vunpack.c.h.b16 %v366
    %v456 = vunpack.c.l.b16 %v367
    %v457 = vunpack.c.h.b16 %v367
    %v458 = vunpack.c.l.b16 %v368
    %v459 = vunpack.c.h.b16 %v368
    %v460 = vunpack.c.l.b16 %v369
    %v461 = vunpack.c.h.b16 %v369
    %v462 = vunpack.c.l.b16 %v370
    %v463 = vunpack.c.h.b16 %v370
    %v464 = vunpack.c.l.b16 %v371
    %v465 = vunpack.c.h.b16 %v371
    %v466 = vunpack.c.l.b16 %v372
    %v467 = vunpack.c.h.b16 %v372
    %v468 = vunpack.c.l.b16 %v373
    %v469 = vunpack.c.h.b16 %v373
    %v470 = vpack.c.b16 %v410, %v406
    %v471 = vpack.c.b16 %v411, %v407
    %v472 = vpack.c.b16 %v412, %v408
    %v473 = vpack.c.b16 %v413, %v409
    %v474 = vpack.c.b16 %v418, %v414
    %v475 = vpack.c.b16 %v419, %v415
    %v476 = vpack.c.b16 %v420, %v416
    %v477 = vpack.c.b16 %v421, %v417
    %v478 = vpack.c.b16 %v426, %v422
    %v479 = vpack.c.b16 %v427, %v423
    %v480 = vpack.c.b16 %v428, %v424
    %v481 = vpack.c.b16 %v429, %v425
    %v482 = vpack.c.b16 %v434, %v430
    %v483 = vpack.c.b16 %v435, %v431
    %v484 = vpack.c.b16 %v436, %v432
    %v485 = vpack.c.b16 %v437, %v433
    %v486 = vpack.c.b16 %v442, %v438
    %v487 = vpack.c.b16 %v443, %v439
    %v488 = vpack.c.b16 %v444, %v440
    %v489 = vpack.c.b16 %v445, %v441
    %v490 = vpack.c.b16 %v450, %v446
    %v491 = vpack.c.b16 %v451, %v447
    %v492 = vpack.c.b16 %v452, %v448
    %v493 = vpack.c.b16 %v453, %v449
    %v494 = vpack.c.b16 %v458, %v454
    %v495 = vpack.c.b16 %v459, %v455
    %v496 = vpack.c.b16 %v460, %v456
    %v497 = vpack.c.b16 %v461, %v457
    %v498 = vpack.c.b16 %v466, %v462
    %v499 = vpack.c.b16 %v467, %v463
    %v500 = vpack.c.b16 %v468, %v464
    %v501 = vpack.c.b16 %v469, %v465
    %534 = vmatpush.bf16.msra.mxu0 %v498
    %535 = vmatpush.bf16.msra.mxu0 %v494
    %536 = vmatpush.bf16.msra.mxu0 %v490
    %537 = vmatpush.bf16.msra.mxu0 %v486
    %538 = vmatpush.bf16.msra.mxu0 %v482
    %539 = vmatpush.bf16.msra.mxu0 %v478
    %540 = vmatpush.bf16.msra.mxu0 %v474
    %541 = vmatpush.bf16.msra.mxu0 %v470
    %542 = vmatmul.bf16.gmra.mxu0 %v341
    %v543 = vpop.f32.mrf.mxu0
    %v544 = vadd.f32 0.0, %v543
    %v545 = vpop.f32.mrf.mxu0
    %546 = vdwg.mxu0
    %547 = vmatpush.bf16.msra.mxu0 %v499
    %548 = vmatpush.bf16.msra.mxu0 %v495
    %549 = vmatpush.bf16.msra.mxu0 %v491
    %550 = vmatpush.bf16.msra.mxu0 %v487
    %551 = vmatpush.bf16.msra.mxu0 %v483
    %552 = vmatpush.bf16.msra.mxu0 %v479
    %553 = vmatpush.bf16.msra.mxu0 %v475
    %554 = vmatpush.bf16.msra.mxu0 %v471
    %555 = vmatmul.bf16.gmra.mxu0 %v341
    %v556 = vpop.f32.mrf.mxu0
    %v557 = vadd.f32 0.0, %v556
    %v558 = vpop.f32.mrf.mxu0
    %559 = vdwg.mxu0
    %560 = vmatpush.bf16.msra.mxu0 %v500
    %561 = vmatpush.bf16.msra.mxu0 %v496
    %562 = vmatpush.bf16.msra.mxu0 %v492
    %563 = vmatpush.bf16.msra.mxu0 %v488
    %564 = vmatpush.bf16.msra.mxu0 %v484
    %565 = vmatpush.bf16.msra.mxu0 %v480
    %566 = vmatpush.bf16.msra.mxu0 %v476
    %567 = vmatpush.bf16.msra.mxu0 %v472
    %568 = vmatmul.bf16.gmra.mxu0 %v341
    %v569 = vpop.f32.mrf.mxu0
    %v570 = vadd.f32 0.0, %v569
    %v571 = vpop.f32.mrf.mxu0
    %572 = vdwg.mxu0
    %573 = vmatpush.bf16.msra.mxu0 %v501
    %574 = vmatpush.bf16.msra.mxu0 %v497
    %575 = vmatpush.bf16.msra.mxu0 %v493
    %576 = vmatpush.bf16.msra.mxu0 %v489
    %577 = vmatpush.bf16.msra.mxu0 %v485
    %578 = vmatpush.bf16.msra.mxu0 %v481
    %579 = vmatpush.bf16.msra.mxu0 %v477
    %580 = vmatpush.bf16.msra.mxu0 %v473
    %581 = vmatmul.bf16.gmra.mxu0 %v341
    %v582 = vpop.f32.mrf.mxu0
    %v583 = vadd.f32 0.0, %v582
    %v584 = vpop.f32.mrf.mxu0
    %585 = vdwg.mxu0
    %v586 = vadd.f32 %v337, %v544
    %v587 = vadd.f32 %v338, %v557
    %v588 = vadd.f32 %v339, %v570
    %v589 = vadd.f32 %v340, %v583
    %v590 = vxor.u32 %v586, 2147483648
    %v591 = vxor.u32 %v587, 2147483648
    %v592 = vxor.u32 %v588, 2147483648
    %v593 = vmul.f32 %v590, 1.442695
    %v594 = vpow.pop %v593
    %v595 = vmul.f32 %v591, 1.442695
    %v596 = vpow.pop %v595
    %v597 = vmul.f32 %v592, 1.442695
    %v598 = vpow.pop %v597
    %v599 = vadd.f32 %v594, 1.0
    %v600 = vadd.f32 %v596, 1.0
    %v601 = vadd.f32 %v598, 1.0
    %v602 = vrcp.pop %v599
    %v603 = vmul.f32 %v599, %v602
    %v604 = vsub.f32 1.0, %v603
    %v605 = vmul.f32 %v602, %v604
    %v606 = vadd.f32 %v602, %v605
    %vm607 = vweird.f32 %v599
    %vm608 = vweird.f32 %v602
    %vm609 = vmor %vm607, %vm608
    %v610 = vsel %vm609, %v602, %v606
    %v611 = vand.u32 2147483647, %v599
    %vm612 = vcmp.eq.f32.partialorder %v611, 8.507059e+37
    %v613 = vand.u32 %v599, 2147483648
    %v614 = vor.u32 1.1754944e-38, %v613
    %v615 = vsel %vm612, %v614, %v610
    %v616 = vmul.f32 1.0, %v615
    %v617 = vrcp.pop %v600
    %v618 = vmul.f32 %v600, %v617
    %v619 = vsub.f32 1.0, %v618
    %v620 = vmul.f32 %v617, %v619
    %v621 = vadd.f32 %v617, %v620
    %vm622 = vweird.f32 %v600
    %vm623 = vweird.f32 %v617
    %vm624 = vmor %vm622, %vm623
    %v625 = vsel %vm624, %v617, %v621
    %v626 = vand.u32 2147483647, %v600
    %vm627 = vcmp.eq.f32.partialorder %v626, 8.507059e+37
    %v628 = vand.u32 %v600, 2147483648
    %v629 = vor.u32 1.1754944e-38, %v628
    %v630 = vsel %vm627, %v629, %v625
    %v631 = vmul.f32 1.0, %v630
    %v632 = vrcp.pop %v601
    %v633 = vmul.f32 %v601, %v632
    %v634 = vsub.f32 1.0, %v633
    %v635 = vmul.f32 %v632, %v634
    %v636 = vadd.f32 %v632, %v635
    %vm637 = vweird.f32 %v601
    %vm638 = vweird.f32 %v632
    %vm639 = vmor %vm637, %vm638
    %v640 = vsel %vm639, %v632, %v636
    %v641 = vand.u32 2147483647, %v601
    %vm642 = vcmp.eq.f32.partialorder %v641, 8.507059e+37
    %v643 = vand.u32 %v601, 2147483648
    %v644 = vor.u32 1.1754944e-38, %v643
    %v645 = vsel %vm642, %v644, %v640
    %v646 = vmul.f32 1.0, %v645
    %v647 = vtanh.pop %v589
    %v648 = vmul.f32 %v631, %v333
    %v649 = vmul.f32 %v616, %v647
    %v650 = vadd.f32 %v648, %v649
    %v651 = vtanh.pop %v650
    %v652 = vmul.f32 %v646, %v651
    %653 = vst [vmem:[#allocation5] sm:$0xff] %v652
    %s654 = smul.u32 1, 4
    %s655 = smul.addr %s654, 8
    %s656 = scalar_lea.vmem [#allocation4], %s655
    %v657 = vld [vmem:[%s656] sm:$0xff]
    %v658 = vld [vmem:[%s656 + $0x8] sm:$0xff]
    %v659 = vld [vmem:[%s656 + $0x10] sm:$0xff]
    %v660 = vld [vmem:[%s656 + $0x18] sm:$0xff]
    %v661 = vpack.c.bf16 %v652, %v652
    %v662 = vld [vmem:[#allocation6] sm:$0xff]
    %v663 = vld [vmem:[#allocation6 + $0x8] sm:$0xff]
    %v664 = vld [vmem:[#allocation6 + $0x10] sm:$0xff]
    %v665 = vld [vmem:[#allocation6 + $0x18] sm:$0xff]
    %v666 = vld [vmem:[#allocation6 + $0x20] sm:$0xff]
    %v667 = vld [vmem:[#allocation6 + $0x28] sm:$0xff]
    %v668 = vld [vmem:[#allocation6 + $0x30] sm:$0xff]
    %v669 = vld [vmem:[#allocation6 + $0x38] sm:$0xff]
    %v670 = vld [vmem:[#allocation6 + $0x40] sm:$0xff]
    %v671 = vld [vmem:[#allocation6 + $0x48] sm:$0xff]
    %v672 = vld [vmem:[#allocation6 + $0x50] sm:$0xff]
    %v673 = vld [vmem:[#allocation6 + $0x58] sm:$0xff]
    %v674 = vld [vmem:[#allocation6 + $0x60] sm:$0xff]
    %v675 = vld [vmem:[#allocation6 + $0x68] sm:$0xff]
    %v676 = vld [vmem:[#allocation6 + $0x70] sm:$0xff]
    %v677 = vld [vmem:[#allocation6 + $0x78] sm:$0xff]
    %v678 = vld [vmem:[#allocation6 + $0x80] sm:$0xff]
    %v679 = vld [vmem:[#allocation6 + $0x88] sm:$0xff]
    %v680 = vld [vmem:[#allocation6 + $0x90] sm:$0xff]
    %v681 = vld [vmem:[#allocation6 + $0x98] sm:$0xff]
    %v682 = vld [vmem:[#allocation6 + $0xa0] sm:$0xff]
    %v683 = vld [vmem:[#allocation6 + $0xa8] sm:$0xff]
    %v684 = vld [vmem:[#allocation6 + $0xb0] sm:$0xff]
    %v685 = vld [vmem:[#allocation6 + $0xb8] sm:$0xff]
    %v686 = vld [vmem:[#allocation6 + $0xc0] sm:$0xff]
    %v687 = vld [vmem:[#allocation6 + $0xc8] sm:$0xff]
    %v688 = vld [vmem:[#allocation6 + $0xd0] sm:$0xff]
    %v689 = vld [vmem:[#allocation6 + $0xd8] sm:$0xff]
    %v690 = vld [vmem:[#allocation6 + $0xe0] sm:$0xff]
    %v691 = vld [vmem:[#allocation6 + $0xe8] sm:$0xff]
    %v692 = vld [vmem:[#allocation6 + $0xf0] sm:$0xff]
    %v693 = vld [vmem:[#allocation6 + $0xf8] sm:$0xff]
    %v726 = vunpack.c.l.b16 %v662
    %v727 = vunpack.c.h.b16 %v662
    %v728 = vunpack.c.l.b16 %v663
    %v729 = vunpack.c.h.b16 %v663
    %v730 = vunpack.c.l.b16 %v664
    %v731 = vunpack.c.h.b16 %v664
    %v732 = vunpack.c.l.b16 %v665
    %v733 = vunpack.c.h.b16 %v665
    %v734 = vunpack.c.l.b16 %v666
    %v735 = vunpack.c.h.b16 %v666
    %v736 = vunpack.c.l.b16 %v667
    %v737 = vunpack.c.h.b16 %v667
    %v738 = vunpack.c.l.b16 %v668
    %v739 = vunpack.c.h.b16 %v668
    %v740 = vunpack.c.l.b16 %v669
    %v741 = vunpack.c.h.b16 %v669
    %v742 = vunpack.c.l.b16 %v670
    %v743 = vunpack.c.h.b16 %v670
    %v744 = vunpack.c.l.b16 %v671
    %v745 = vunpack.c.h.b16 %v671
    %v746 = vunpack.c.l.b16 %v672
    %v747 = vunpack.c.h.b16 %v672
    %v748 = vunpack.c.l.b16 %v673
    %v749 = vunpack.c.h.b16 %v673
    %v750 = vunpack.c.l.b16 %v674
    %v751 = vunpack.c.h.b16 %v674
    %v752 = vunpack.c.l.b16 %v675
    %v753 = vunpack.c.h.b16 %v675
    %v754 = vunpack.c.l.b16 %v676
    %v755 = vunpack.c.h.b16 %v676
    %v756 = vunpack.c.l.b16 %v677
    %v757 = vunpack.c.h.b16 %v677
    %v758 = vunpack.c.l.b16 %v678
    %v759 = vunpack.c.h.b16 %v678
    %v760 = vunpack.c.l.b16 %v679
    %v761 = vunpack.c.h.b16 %v679
    %v762 = vunpack.c.l.b16 %v680
    %v763 = vunpack.c.h.b16 %v680
    %v764 = vunpack.c.l.b16 %v681
    %v765 = vunpack.c.h.b16 %v681
    %v766 = vunpack.c.l.b16 %v682
    %v767 = vunpack.c.h.b16 %v682
    %v768 = vunpack.c.l.b16 %v683
    %v769 = vunpack.c.h.b16 %v683
    %v770 = vunpack.c.l.b16 %v684
    %v771 = vunpack.c.h.b16 %v684
    %v772 = vunpack.c.l.b16 %v685
    %v773 = vunpack.c.h.b16 %v685
    %v774 = vunpack.c.l.b16 %v686
    %v775 = vunpack.c.h.b16 %v686
    %v776 = vunpack.c.l.b16 %v687
    %v777 = vunpack.c.h.b16 %v687
    %v778 = vunpack.c.l.b16 %v688
    %v779 = vunpack.c.h.b16 %v688
    %v780 = vunpack.c.l.b16 %v689
    %v781 = vunpack.c.h.b16 %v689
    %v782 = vunpack.c.l.b16 %v690
    %v783 = vunpack.c.h.b16 %v690
    %v784 = vunpack.c.l.b16 %v691
    %v785 = vunpack.c.h.b16 %v691
    %v786 = vunpack.c.l.b16 %v692
    %v787 = vunpack.c.h.b16 %v692
    %v788 = vunpack.c.l.b16 %v693
    %v789 = vunpack.c.h.b16 %v693
    %v790 = vpack.c.b16 %v730, %v726
    %v791 = vpack.c.b16 %v731, %v727
    %v792 = vpack.c.b16 %v732, %v728
    %v793 = vpack.c.b16 %v733, %v729
    %v794 = vpack.c.b16 %v738, %v734
    %v795 = vpack.c.b16 %v739, %v735
    %v796 = vpack.c.b16 %v740, %v736
    %v797 = vpack.c.b16 %v741, %v737
    %v798 = vpack.c.b16 %v746, %v742
    %v799 = vpack.c.b16 %v747, %v743
    %v800 = vpack.c.b16 %v748, %v744
    %v801 = vpack.c.b16 %v749, %v745
    %v802 = vpack.c.b16 %v754, %v750
    %v803 = vpack.c.b16 %v755, %v751
    %v804 = vpack.c.b16 %v756, %v752
    %v805 = vpack.c.b16 %v757, %v753
    %v806 = vpack.c.b16 %v762, %v758
    %v807 = vpack.c.b16 %v763, %v759
    %v808 = vpack.c.b16 %v764, %v760
    %v809 = vpack.c.b16 %v765, %v761
    %v810 = vpack.c.b16 %v770, %v766
    %v811 = vpack.c.b16 %v771, %v767
    %v812 = vpack.c.b16 %v772, %v768
    %v813 = vpack.c.b16 %v773, %v769
    %v814 = vpack.c.b16 %v778, %v774
    %v815 = vpack.c.b16 %v779, %v775
    %v816 = vpack.c.b16 %v780, %v776
    %v817 = vpack.c.b16 %v781, %v777
    %v818 = vpack.c.b16 %v786, %v782
    %v819 = vpack.c.b16 %v787, %v783
    %v820 = vpack.c.b16 %v788, %v784
    %v821 = vpack.c.b16 %v789, %v785
    %854 = vmatpush.bf16.msra.mxu0 %v818
    %855 = vmatpush.bf16.msra.mxu0 %v814
    %856 = vmatpush.bf16.msra.mxu0 %v810
    %857 = vmatpush.bf16.msra.mxu0 %v806
    %858 = vmatpush.bf16.msra.mxu0 %v802
    %859 = vmatpush.bf16.msra.mxu0 %v798
    %860 = vmatpush.bf16.msra.mxu0 %v794
    %861 = vmatpush.bf16.msra.mxu0 %v790
    %862 = vmatmul.bf16.gmra.mxu0 %v661
    %v863 = vpop.f32.mrf.mxu0
    %v864 = vadd.f32 0.0, %v863
    %v865 = vpop.f32.mrf.mxu0
    %866 = vdwg.mxu0
    %867 = vmatpush.bf16.msra.mxu0 %v819
    %868 = vmatpush.bf16.msra.mxu0 %v815
    %869 = vmatpush.bf16.msra.mxu0 %v811
    %870 = vmatpush.bf16.msra.mxu0 %v807
    %871 = vmatpush.bf16.msra.mxu0 %v803
    %872 = vmatpush.bf16.msra.mxu0 %v799
    %873 = vmatpush.bf16.msra.mxu0 %v795
    %874 = vmatpush.bf16.msra.mxu0 %v791
    %875 = vmatmul.bf16.gmra.mxu0 %v661
    %v876 = vpop.f32.mrf.mxu0
    %v877 = vadd.f32 0.0, %v876
    %v878 = vpop.f32.mrf.mxu0
    %879 = vdwg.mxu0
    %880 = vmatpush.bf16.msra.mxu0 %v820
    %881 = vmatpush.bf16.msra.mxu0 %v816
    %882 = vmatpush.bf16.msra.mxu0 %v812
    %883 = vmatpush.bf16.msra.mxu0 %v808
    %884 = vmatpush.bf16.msra.mxu0 %v804
    %885 = vmatpush.bf16.msra.mxu0 %v800
    %886 = vmatpush.bf16.msra.mxu0 %v796
    %887 = vmatpush.bf16.msra.mxu0 %v792
    %888 = vmatmul.bf16.gmra.mxu0 %v661
    %v889 = vpop.f32.mrf.mxu0
    %v890 = vadd.f32 0.0, %v889
    %v891 = vpop.f32.mrf.mxu0
    %892 = vdwg.mxu0
    %893 = vmatpush.bf16.msra.mxu0 %v821
    %894 = vmatpush.bf16.msra.mxu0 %v817
    %895 = vmatpush.bf16.msra.mxu0 %v813
    %896 = vmatpush.bf16.msra.mxu0 %v809
    %897 = vmatpush.bf16.msra.mxu0 %v805
    %898 = vmatpush.bf16.msra.mxu0 %v801
    %899 = vmatpush.bf16.msra.mxu0 %v797
    %900 = vmatpush.bf16.msra.mxu0 %v793
    %901 = vmatmul.bf16.gmra.mxu0 %v661
    %v902 = vpop.f32.mrf.mxu0
    %v903 = vadd.f32 0.0, %v902
    %v904 = vpop.f32.mrf.mxu0
    %905 = vdwg.mxu0
    %v906 = vadd.f32 %v657, %v864
    %v907 = vadd.f32 %v658, %v877
    %v908 = vadd.f32 %v659, %v890
    %v909 = vadd.f32 %v660, %v903
    %v910 = vxor.u32 %v906, 2147483648
    %v911 = vxor.u32 %v907, 2147483648
    %v912 = vxor.u32 %v908, 2147483648
    %v913 = vmul.f32 %v910, 1.442695
    %v914 = vpow.pop %v913
    %v915 = vmul.f32 %v911, 1.442695
    %v916 = vpow.pop %v915
    %v917 = vmul.f32 %v912, 1.442695
    %v918 = vpow.pop %v917
    %v919 = vadd.f32 %v914, 1.0
    %v920 = vadd.f32 %v916, 1.0
    %v921 = vadd.f32 %v918, 1.0
    %v922 = vrcp.pop %v919
    %v923 = vmul.f32 %v919, %v922
    %v924 = vsub.f32 1.0, %v923
    %v925 = vmul.f32 %v922, %v924
    %v926 = vadd.f32 %v922, %v925
    %vm927 = vweird.f32 %v919
    %vm928 = vweird.f32 %v922
    %vm929 = vmor %vm927, %vm928
    %v930 = vsel %vm929, %v922, %v926
    %v931 = vand.u32 2147483647, %v919
    %vm932 = vcmp.eq.f32.partialorder %v931, 8.507059e+37
    %v933 = vand.u32 %v919, 2147483648
    %v934 = vor.u32 1.1754944e-38, %v933
    %v935 = vsel %vm932, %v934, %v930
    %v936 = vmul.f32 1.0, %v935
    %v937 = vrcp.pop %v920
    %v938 = vmul.f32 %v920, %v937
    %v939 = vsub.f32 1.0, %v938
    %v940 = vmul.f32 %v937, %v939
    %v941 = vadd.f32 %v937, %v940
    %vm942 = vweird.f32 %v920
    %vm943 = vweird.f32 %v937
    %vm944 = vmor %vm942, %vm943
    %v945 = vsel %vm944, %v937, %v941
    %v946 = vand.u32 2147483647, %v920
    %vm947 = vcmp.eq.f32.partialorder %v946, 8.507059e+37
    %v948 = vand.u32 %v920, 2147483648
    %v949 = vor.u32 1.1754944e-38, %v948
    %v950 = vsel %vm947, %v949, %v945
    %v951 = vmul.f32 1.0, %v950
    %v952 = vrcp.pop %v921
    %v953 = vmul.f32 %v921, %v952
    %v954 = vsub.f32 1.0, %v953
    %v955 = vmul.f32 %v952, %v954
    %v956 = vadd.f32 %v952, %v955
    %vm957 = vweird.f32 %v921
    %vm958 = vweird.f32 %v952
    %vm959 = vmor %vm957, %vm958
    %v960 = vsel %vm959, %v952, %v956
    %v961 = vand.u32 2147483647, %v921
    %vm962 = vcmp.eq.f32.partialorder %v961, 8.507059e+37
    %v963 = vand.u32 %v921, 2147483648
    %v964 = vor.u32 1.1754944e-38, %v963
    %v965 = vsel %vm962, %v964, %v960
    %v966 = vmul.f32 1.0, %v965
    %v967 = vtanh.pop %v909
    %v968 = vmul.f32 %v951, %v650
    %v969 = vmul.f32 %v936, %v967
    %v970 = vadd.f32 %v968, %v969
    %v971 = vtanh.pop %v970
    %v972 = vmul.f32 %v966, %v971
    %s973 = scalar_lea.vmem [#allocation5], 8
    %974 = vst [vmem:[%s973] sm:$0xff] %v972
    %s975 = smul.u32 2, 4
    %s976 = smul.addr %s975, 8
    %s977 = scalar_lea.vmem [#allocation4], %s976
    %v978 = vld [vmem:[%s977] sm:$0xff]
    %v979 = vld [vmem:[%s977 + $0x8] sm:$0xff]
    %v980 = vld [vmem:[%s977 + $0x10] sm:$0xff]
    %v981 = vld [vmem:[%s977 + $0x18] sm:$0xff]
    %v982 = vpack.c.bf16 %v972, %v972
    %v983 = vld [vmem:[#allocation6] sm:$0xff]
    %v984 = vld [vmem:[#allocation6 + $0x8] sm:$0xff]
    %v985 = vld [vmem:[#allocation6 + $0x10] sm:$0xff]
    %v986 = vld [vmem:[#allocation6 + $0x18] sm:$0xff]
    %v987 = vld [vmem:[#allocation6 + $0x20] sm:$0xff]
    %v988 = vld [vmem:[#allocation6 + $0x28] sm:$0xff]
    %v989 = vld [vmem:[#allocation6 + $0x30] sm:$0xff]
    %v990 = vld [vmem:[#allocation6 + $0x38] sm:$0xff]
    %v991 = vld [vmem:[#allocation6 + $0x40] sm:$0xff]
    %v992 = vld [vmem:[#allocation6 + $0x48] sm:$0xff]
    %v993 = vld [vmem:[#allocation6 + $0x50] sm:$0xff]
    %v994 = vld [vmem:[#allocation6 + $0x58] sm:$0xff]
    %v995 = vld [vmem:[#allocation6 + $0x60] sm:$0xff]
    %v996 = vld [vmem:[#allocation6 + $0x68] sm:$0xff]
    %v997 = vld [vmem:[#allocation6 + $0x70] sm:$0xff]
    %v998 = vld [vmem:[#allocation6 + $0x78] sm:$0xff]
    %v999 = vld [vmem:[#allocation6 + $0x80] sm:$0xff]
    %v1000 = vld [vmem:[#allocation6 + $0x88] sm:$0xff]
    %v1001 = vld [vmem:[#allocation6 + $0x90] sm:$0xff]
    %v1002 = vld [vmem:[#allocation6 + $0x98] sm:$0xff]
    %v1003 = vld [vmem:[#allocation6 + $0xa0] sm:$0xff]
    %v1004 = vld [vmem:[#allocation6 + $0xa8] sm:$0xff]
    %v1005 = vld [vmem:[#allocation6 + $0xb0] sm:$0xff]
    %v1006 = vld [vmem:[#allocation6 + $0xb8] sm:$0xff]
    %v1007 = vld [vmem:[#allocation6 + $0xc0] sm:$0xff]
    %v1008 = vld [vmem:[#allocation6 + $0xc8] sm:$0xff]
    %v1009 = vld [vmem:[#allocation6 + $0xd0] sm:$0xff]
    %v1010 = vld [vmem:[#allocation6 + $0xd8] sm:$0xff]
    %v1011 = vld [vmem:[#allocation6 + $0xe0] sm:$0xff]
    %v1012 = vld [vmem:[#allocation6 + $0xe8] sm:$0xff]
    %v1013 = vld [vmem:[#allocation6 + $0xf0] sm:$0xff]
    %v1014 = vld [vmem:[#allocation6 + $0xf8] sm:$0xff]
    %v1047 = vunpack.c.l.b16 %v983
    %v1048 = vunpack.c.h.b16 %v983
    %v1049 = vunpack.c.l.b16 %v984
    %v1050 = vunpack.c.h.b16 %v984
    %v1051 = vunpack.c.l.b16 %v985
    %v1052 = vunpack.c.h.b16 %v985
    %v1053 = vunpack.c.l.b16 %v986
    %v1054 = vunpack.c.h.b16 %v986
    %v1055 = vunpack.c.l.b16 %v987
    %v1056 = vunpack.c.h.b16 %v987
    %v1057 = vunpack.c.l.b16 %v988
    %v1058 = vunpack.c.h.b16 %v988
    %v1059 = vunpack.c.l.b16 %v989
    %v1060 = vunpack.c.h.b16 %v989
    %v1061 = vunpack.c.l.b16 %v990
    %v1062 = vunpack.c.h.b16 %v990
    %v1063 = vunpack.c.l.b16 %v991
    %v1064 = vunpack.c.h.b16 %v991
    %v1065 = vunpack.c.l.b16 %v992
    %v1066 = vunpack.c.h.b16 %v992
    %v1067 = vunpack.c.l.b16 %v993
    %v1068 = vunpack.c.h.b16 %v993
    %v1069 = vunpack.c.l.b16 %v994
    %v1070 = vunpack.c.h.b16 %v994
    %v1071 = vunpack.c.l.b16 %v995
    %v1072 = vunpack.c.h.b16 %v995
    %v1073 = vunpack.c.l.b16 %v996
    %v1074 = vunpack.c.h.b16 %v996
    %v1075 = vunpack.c.l.b16 %v997
    %v1076 = vunpack.c.h.b16 %v997
    %v1077 = vunpack.c.l.b16 %v998
    %v1078 = vunpack.c.h.b16 %v998
    %v1079 = vunpack.c.l.b16 %v999
    %v1080 = vunpack.c.h.b16 %v999
    %v1081 = vunpack.c.l.b16 %v1000
    %v1082 = vunpack.c.h.b16 %v1000
    %v1083 = vunpack.c.l.b16 %v1001
    %v1084 = vunpack.c.h.b16 %v1001
    %v1085 = vunpack.c.l.b16 %v1002
    %v1086 = vunpack.c.h.b16 %v1002
    %v1087 = vunpack.c.l.b16 %v1003
    %v1088 = vunpack.c.h.b16 %v1003
    %v1089 = vunpack.c.l.b16 %v1004
    %v1090 = vunpack.c.h.b16 %v1004
    %v1091 = vunpack.c.l.b16 %v1005
    %v1092 = vunpack.c.h.b16 %v1005
    %v1093 = vunpack.c.l.b16 %v1006
    %v1094 = vunpack.c.h.b16 %v1006
    %v1095 = vunpack.c.l.b16 %v1007
    %v1096 = vunpack.c.h.b16 %v1007
    %v1097 = vunpack.c.l.b16 %v1008
    %v1098 = vunpack.c.h.b16 %v1008
    %v1099 = vunpack.c.l.b16 %v1009
    %v1100 = vunpack.c.h.b16 %v1009
    %v1101 = vunpack.c.l.b16 %v1010
    %v1102 = vunpack.c.h.b16 %v1010
    %v1103 = vunpack.c.l.b16 %v1011
    %v1104 = vunpack.c.h.b16 %v1011
    %v1105 = vunpack.c.l.b16 %v1012
    %v1106 = vunpack.c.h.b16 %v1012
    %v1107 = vunpack.c.l.b16 %v1013
    %v1108 = vunpack.c.h.b16 %v1013
    %v1109 = vunpack.c.l.b16 %v1014
    %v1110 = vunpack.c.h.b16 %v1014
    %v1111 = vpack.c.b16 %v1051, %v1047
    %v1112 = vpack.c.b16 %v1052, %v1048
    %v1113 = vpack.c.b16 %v1053, %v1049
    %v1114 = vpack.c.b16 %v1054, %v1050
    %v1115 = vpack.c.b16 %v1059, %v1055
    %v1116 = vpack.c.b16 %v1060, %v1056
    %v1117 = vpack.c.b16 %v1061, %v1057
    %v1118 = vpack.c.b16 %v1062, %v1058
    %v1119 = vpack.c.b16 %v1067, %v1063
    %v1120 = vpack.c.b16 %v1068, %v1064
    %v1121 = vpack.c.b16 %v1069, %v1065
    %v1122 = vpack.c.b16 %v1070, %v1066
    %v1123 = vpack.c.b16 %v1075, %v1071
    %v1124 = vpack.c.b16 %v1076, %v1072
    %v1125 = vpack.c.b16 %v1077, %v1073
    %v1126 = vpack.c.b16 %v1078, %v1074
    %v1127 = vpack.c.b16 %v1083, %v1079
    %v1128 = vpack.c.b16 %v1084, %v1080
    %v1129 = vpack.c.b16 %v1085, %v1081
    %v1130 = vpack.c.b16 %v1086, %v1082
    %v1131 = vpack.c.b16 %v1091, %v1087
    %v1132 = vpack.c.b16 %v1092, %v1088
    %v1133 = vpack.c.b16 %v1093, %v1089
    %v1134 = vpack.c.b16 %v1094, %v1090
    %v1135 = vpack.c.b16 %v1099, %v1095
    %v1136 = vpack.c.b16 %v1100, %v1096
    %v1137 = vpack.c.b16 %v1101, %v1097
    %v1138 = vpack.c.b16 %v1102, %v1098
    %v1139 = vpack.c.b16 %v1107, %v1103
    %v1140 = vpack.c.b16 %v1108, %v1104
    %v1141 = vpack.c.b16 %v1109, %v1105
    %v1142 = vpack.c.b16 %v1110, %v1106
    %1175 = vmatpush.bf16.msra.mxu0 %v1139
    %1176 = vmatpush.bf16.msra.mxu0 %v1135
    %1177 = vmatpush.bf16.msra.mxu0 %v1131
    %1178 = vmatpush.bf16.msra.mxu0 %v1127
    %1179 = vmatpush.bf16.msra.mxu0 %v1123
    %1180 = vmatpush.bf16.msra.mxu0 %v1119
    %1181 = vmatpush.bf16.msra.mxu0 %v1115
    %1182 = vmatpush.bf16.msra.mxu0 %v1111
    %1183 = vmatmul.bf16.gmra.mxu0 %v982
    %v1184 = vpop.f32.mrf.mxu0
    %v1185 = vadd.f32 0.0, %v1184
    %v1186 = vpop.f32.mrf.mxu0
    %1187 = vdwg.mxu0
    %1188 = vmatpush.bf16.msra.mxu0 %v1140
    %1189 = vmatpush.bf16.msra.mxu0 %v1136
    %1190 = vmatpush.bf16.msra.mxu0 %v1132
    %1191 = vmatpush.bf16.msra.mxu0 %v1128
    %1192 = vmatpush.bf16.msra.mxu0 %v1124
    %1193 = vmatpush.bf16.msra.mxu0 %v1120
    %1194 = vmatpush.bf16.msra.mxu0 %v1116
    %1195 = vmatpush.bf16.msra.mxu0 %v1112
    %1196 = vmatmul.bf16.gmra.mxu0 %v982
    %v1197 = vpop.f32.mrf.mxu0
    %v1198 = vadd.f32 0.0, %v1197
    %v1199 = vpop.f32.mrf.mxu0
    %1200 = vdwg.mxu0
    %1201 = vmatpush.bf16.msra.mxu0 %v1141
    %1202 = vmatpush.bf16.msra.mxu0 %v1137
    %1203 = vmatpush.bf16.msra.mxu0 %v1133
    %1204 = vmatpush.bf16.msra.mxu0 %v1129
    %1205 = vmatpush.bf16.msra.mxu0 %v1125
    %1206 = vmatpush.bf16.msra.mxu0 %v1121
    %1207 = vmatpush.bf16.msra.mxu0 %v1117
    %1208 = vmatpush.bf16.msra.mxu0 %v1113
    %1209 = vmatmul.bf16.gmra.mxu0 %v982
    %v1210 = vpop.f32.mrf.mxu0
    %v1211 = vadd.f32 0.0, %v1210
    %v1212 = vpop.f32.mrf.mxu0
    %1213 = vdwg.mxu0
    %1214 = vmatpush.bf16.msra.mxu0 %v1142
    %1215 = vmatpush.bf16.msra.mxu0 %v1138
    %1216 = vmatpush.bf16.msra.mxu0 %v1134
    %1217 = vmatpush.bf16.msra.mxu0 %v1130
    %1218 = vmatpush.bf16.msra.mxu0 %v1126
    %1219 = vmatpush.bf16.msra.mxu0 %v1122
    %1220 = vmatpush.bf16.msra.mxu0 %v1118
    %1221 = vmatpush.bf16.msra.mxu0 %v1114
    %1222 = vmatmul.bf16.gmra.mxu0 %v982
    %v1223 = vpop.f32.mrf.mxu0
    %v1224 = vadd.f32 0.0, %v1223
    %v1225 = vpop.f32.mrf.mxu0
    %1226 = vdwg.mxu0
    %v1227 = vadd.f32 %v978, %v1185
    %v1228 = vadd.f32 %v979, %v1198
    %v1229 = vadd.f32 %v980, %v1211
    %v1230 = vadd.f32 %v981, %v1224
    %v1231 = vxor.u32 %v1227, 2147483648
    %v1232 = vxor.u32 %v1228, 2147483648
    %v1233 = vxor.u32 %v1229, 2147483648
    %v1234 = vmul.f32 %v1231, 1.442695
    %v1235 = vpow.pop %v1234
    %v1236 = vmul.f32 %v1232, 1.442695
    %v1237 = vpow.pop %v1236
    %v1238 = vmul.f32 %v1233, 1.442695
    %v1239 = vpow.pop %v1238
    %v1240 = vadd.f32 %v1235, 1.0
    %v1241 = vadd.f32 %v1237, 1.0
    %v1242 = vadd.f32 %v1239, 1.0
    %v1243 = vrcp.pop %v1240
    %v1244 = vmul.f32 %v1240, %v1243
    %v1245 = vsub.f32 1.0, %v1244
    %v1246 = vmul.f32 %v1243, %v1245
    %v1247 = vadd.f32 %v1243, %v1246
    %vm1248 = vweird.f32 %v1240
    %vm1249 = vweird.f32 %v1243
    %vm1250 = vmor %vm1248, %vm1249
    %v1251 = vsel %vm1250, %v1243, %v1247
    %v1252 = vand.u32 2147483647, %v1240
    %vm1253 = vcmp.eq.f32.partialorder %v1252, 8.507059e+37
    %v1254 = vand.u32 %v1240, 2147483648
    %v1255 = vor.u32 1.1754944e-38, %v1254
    %v1256 = vsel %vm1253, %v1255, %v1251
    %v1257 = vmul.f32 1.0, %v1256
    %v1258 = vrcp.pop %v1241
    %v1259 = vmul.f32 %v1241, %v1258
    %v1260 = vsub.f32 1.0, %v1259
    %v1261 = vmul.f32 %v1258, %v1260
    %v1262 = vadd.f32 %v1258, %v1261
    %vm1263 = vweird.f32 %v1241
    %vm1264 = vweird.f32 %v1258
    %vm1265 = vmor %vm1263, %vm1264
    %v1266 = vsel %vm1265, %v1258, %v1262
    %v1267 = vand.u32 2147483647, %v1241
    %vm1268 = vcmp.eq.f32.partialorder %v1267, 8.507059e+37
    %v1269 = vand.u32 %v1241, 2147483648
    %v1270 = vor.u32 1.1754944e-38, %v1269
    %v1271 = vsel %vm1268, %v1270, %v1266
    %v1272 = vmul.f32 1.0, %v1271
    %v1273 = vrcp.pop %v1242
    %v1274 = vmul.f32 %v1242, %v1273
    %v1275 = vsub.f32 1.0, %v1274
    %v1276 = vmul.f32 %v1273, %v1275
    %v1277 = vadd.f32 %v1273, %v1276
    %vm1278 = vweird.f32 %v1242
    %vm1279 = vweird.f32 %v1273
    %vm1280 = vmor %vm1278, %vm1279
    %v1281 = vsel %vm1280, %v1273, %v1277
    %v1282 = vand.u32 2147483647, %v1242
    %vm1283 = vcmp.eq.f32.partialorder %v1282, 8.507059e+37
    %v1284 = vand.u32 %v1242, 2147483648
    %v1285 = vor.u32 1.1754944e-38, %v1284
    %v1286 = vsel %vm1283, %v1285, %v1281
    %v1287 = vmul.f32 1.0, %v1286
    %v1288 = vtanh.pop %v1230
    %v1289 = vmul.f32 %v1272, %v970
    %v1290 = vmul.f32 %v1257, %v1288
    %v1291 = vadd.f32 %v1289, %v1290
    %v1292 = vtanh.pop %v1291
    %v1293 = vmul.f32 %v1287, %v1292
    %s1294 = scalar_lea.vmem [#allocation5], 16
    %1295 = vst [vmem:[%s1294] sm:$0xff] %v1293
    %s1296 = smul.u32 3, 4
    %s1297 = smul.addr %s1296, 8
    %s1298 = scalar_lea.vmem [#allocation4], %s1297
    %v1299 = vld [vmem:[%s1298] sm:$0xff]
    %v1300 = vld [vmem:[%s1298 + $0x8] sm:$0xff]
    %v1301 = vld [vmem:[%s1298 + $0x10] sm:$0xff]
    %v1302 = vld [vmem:[%s1298 + $0x18] sm:$0xff]
    %v1303 = vpack.c.bf16 %v1293, %v1293
    %v1304 = vld [vmem:[#allocation6] sm:$0xff]
    %v1305 = vld [vmem:[#allocation6 + $0x8] sm:$0xff]
    %v1306 = vld [vmem:[#allocation6 + $0x10] sm:$0xff]
    %v1307 = vld [vmem:[#allocation6 + $0x18] sm:$0xff]
    %v1308 = vld [vmem:[#allocation6 + $0x20] sm:$0xff]
    %v1309 = vld [vmem:[#allocation6 + $0x28] sm:$0xff]
    %v1310 = vld [vmem:[#allocation6 + $0x30] sm:$0xff]
    %v1311 = vld [vmem:[#allocation6 + $0x38] sm:$0xff]
    %v1312 = vld [vmem:[#allocation6 + $0x40] sm:$0xff]
    %v1313 = vld [vmem:[#allocation6 + $0x48] sm:$0xff]
    %v1314 = vld [vmem:[#allocation6 + $0x50] sm:$0xff]
    %v1315 = vld [vmem:[#allocation6 + $0x58] sm:$0xff]
    %v1316 = vld [vmem:[#allocation6 + $0x60] sm:$0xff]
    %v1317 = vld [vmem:[#allocation6 + $0x68] sm:$0xff]
    %v1318 = vld [vmem:[#allocation6 + $0x70] sm:$0xff]
    %v1319 = vld [vmem:[#allocation6 + $0x78] sm:$0xff]
    %v1320 = vld [vmem:[#allocation6 + $0x80] sm:$0xff]
    %v1321 = vld [vmem:[#allocation6 + $0x88] sm:$0xff]
    %v1322 = vld [vmem:[#allocation6 + $0x90] sm:$0xff]
    %v1323 = vld [vmem:[#allocation6 + $0x98] sm:$0xff]
    %v1324 = vld [vmem:[#allocation6 + $0xa0] sm:$0xff]
    %v1325 = vld [vmem:[#allocation6 + $0xa8] sm:$0xff]
    %v1326 = vld [vmem:[#allocation6 + $0xb0] sm:$0xff]
    %v1327 = vld [vmem:[#allocation6 + $0xb8] sm:$0xff]
    %v1328 = vld [vmem:[#allocation6 + $0xc0] sm:$0xff]
    %v1329 = vld [vmem:[#allocation6 + $0xc8] sm:$0xff]
    %v1330 = vld [vmem:[#allocation6 + $0xd0] sm:$0xff]
    %v1331 = vld [vmem:[#allocation6 + $0xd8] sm:$0xff]
    %v1332 = vld [vmem:[#allocation6 + $0xe0] sm:$0xff]
    %v1333 = vld [vmem:[#allocation6 + $0xe8] sm:$0xff]
    %v1334 = vld [vmem:[#allocation6 + $0xf0] sm:$0xff]
    %v1335 = vld [vmem:[#allocation6 + $0xf8] sm:$0xff]
    %v1368 = vunpack.c.l.b16 %v1304
    %v1369 = vunpack.c.h.b16 %v1304
    %v1370 = vunpack.c.l.b16 %v1305
    %v1371 = vunpack.c.h.b16 %v1305
    %v1372 = vunpack.c.l.b16 %v1306
    %v1373 = vunpack.c.h.b16 %v1306
    %v1374 = vunpack.c.l.b16 %v1307
    %v1375 = vunpack.c.h.b16 %v1307
    %v1376 = vunpack.c.l.b16 %v1308
    %v1377 = vunpack.c.h.b16 %v1308
    %v1378 = vunpack.c.l.b16 %v1309
    %v1379 = vunpack.c.h.b16 %v1309
    %v1380 = vunpack.c.l.b16 %v1310
    %v1381 = vunpack.c.h.b16 %v1310
    %v1382 = vunpack.c.l.b16 %v1311
    %v1383 = vunpack.c.h.b16 %v1311
    %v1384 = vunpack.c.l.b16 %v1312
    %v1385 = vunpack.c.h.b16 %v1312
    %v1386 = vunpack.c.l.b16 %v1313
    %v1387 = vunpack.c.h.b16 %v1313
    %v1388 = vunpack.c.l.b16 %v1314
    %v1389 = vunpack.c.h.b16 %v1314
    %v1390 = vunpack.c.l.b16 %v1315
    %v1391 = vunpack.c.h.b16 %v1315
    %v1392 = vunpack.c.l.b16 %v1316
    %v1393 = vunpack.c.h.b16 %v1316
    %v1394 = vunpack.c.l.b16 %v1317
    %v1395 = vunpack.c.h.b16 %v1317
    %v1396 = vunpack.c.l.b16 %v1318
    %v1397 = vunpack.c.h.b16 %v1318
    %v1398 = vunpack.c.l.b16 %v1319
    %v1399 = vunpack.c.h.b16 %v1319
    %v1400 = vunpack.c.l.b16 %v1320
    %v1401 = vunpack.c.h.b16 %v1320
    %v1402 = vunpack.c.l.b16 %v1321
    %v1403 = vunpack.c.h.b16 %v1321
    %v1404 = vunpack.c.l.b16 %v1322
    %v1405 = vunpack.c.h.b16 %v1322
    %v1406 = vunpack.c.l.b16 %v1323
    %v1407 = vunpack.c.h.b16 %v1323
    %v1408 = vunpack.c.l.b16 %v1324
    %v1409 = vunpack.c.h.b16 %v1324
    %v1410 = vunpack.c.l.b16 %v1325
    %v1411 = vunpack.c.h.b16 %v1325
    %v1412 = vunpack.c.l.b16 %v1326
    %v1413 = vunpack.c.h.b16 %v1326
    %v1414 = vunpack.c.l.b16 %v1327
    %v1415 = vunpack.c.h.b16 %v1327
    %v1416 = vunpack.c.l.b16 %v1328
    %v1417 = vunpack.c.h.b16 %v1328
    %v1418 = vunpack.c.l.b16 %v1329
    %v1419 = vunpack.c.h.b16 %v1329
    %v1420 = vunpack.c.l.b16 %v1330
    %v1421 = vunpack.c.h.b16 %v1330
    %v1422 = vunpack.c.l.b16 %v1331
    %v1423 = vunpack.c.h.b16 %v1331
    %v1424 = vunpack.c.l.b16 %v1332
    %v1425 = vunpack.c.h.b16 %v1332
    %v1426 = vunpack.c.l.b16 %v1333
    %v1427 = vunpack.c.h.b16 %v1333
    %v1428 = vunpack.c.l.b16 %v1334
    %v1429 = vunpack.c.h.b16 %v1334
    %v1430 = vunpack.c.l.b16 %v1335
    %v1431 = vunpack.c.h.b16 %v1335
    %v1432 = vpack.c.b16 %v1372, %v1368
    %v1433 = vpack.c.b16 %v1373, %v1369
    %v1434 = vpack.c.b16 %v1374, %v1370
    %v1435 = vpack.c.b16 %v1375, %v1371
    %v1436 = vpack.c.b16 %v1380, %v1376
    %v1437 = vpack.c.b16 %v1381, %v1377
    %v1438 = vpack.c.b16 %v1382, %v1378
    %v1439 = vpack.c.b16 %v1383, %v1379
    %v1440 = vpack.c.b16 %v1388, %v1384
    %v1441 = vpack.c.b16 %v1389, %v1385
    %v1442 = vpack.c.b16 %v1390, %v1386
    %v1443 = vpack.c.b16 %v1391, %v1387
    %v1444 = vpack.c.b16 %v1396, %v1392
    %v1445 = vpack.c.b16 %v1397, %v1393
    %v1446 = vpack.c.b16 %v1398, %v1394
    %v1447 = vpack.c.b16 %v1399, %v1395
    %v1448 = vpack.c.b16 %v1404, %v1400
    %v1449 = vpack.c.b16 %v1405, %v1401
    %v1450 = vpack.c.b16 %v1406, %v1402
    %v1451 = vpack.c.b16 %v1407, %v1403
    %v1452 = vpack.c.b16 %v1412, %v1408
    %v1453 = vpack.c.b16 %v1413, %v1409
    %v1454 = vpack.c.b16 %v1414, %v1410
    %v1455 = vpack.c.b16 %v1415, %v1411
    %v1456 = vpack.c.b16 %v1420, %v1416
    %v1457 = vpack.c.b16 %v1421, %v1417
    %v1458 = vpack.c.b16 %v1422, %v1418
    %v1459 = vpack.c.b16 %v1423, %v1419
    %v1460 = vpack.c.b16 %v1428, %v1424
    %v1461 = vpack.c.b16 %v1429, %v1425
    %v1462 = vpack.c.b16 %v1430, %v1426
    %v1463 = vpack.c.b16 %v1431, %v1427
    %1496 = vmatpush.bf16.msra.mxu0 %v1460
    %1497 = vmatpush.bf16.msra.mxu0 %v1456
    %1498 = vmatpush.bf16.msra.mxu0 %v1452
    %1499 = vmatpush.bf16.msra.mxu0 %v1448
    %1500 = vmatpush.bf16.msra.mxu0 %v1444
    %1501 = vmatpush.bf16.msra.mxu0 %v1440
    %1502 = vmatpush.bf16.msra.mxu0 %v1436
    %1503 = vmatpush.bf16.msra.mxu0 %v1432
    %1504 = vmatmul.bf16.gmra.mxu0 %v1303
    %v1505 = vpop.f32.mrf.mxu0
    %v1506 = vadd.f32 0.0, %v1505
    %v1507 = vpop.f32.mrf.mxu0
    %1508 = vdwg.mxu0
    %1509 = vmatpush.bf16.msra.mxu0 %v1461
    %1510 = vmatpush.bf16.msra.mxu0 %v1457
    %1511 = vmatpush.bf16.msra.mxu0 %v1453
    %1512 = vmatpush.bf16.msra.mxu0 %v1449
    %1513 = vmatpush.bf16.msra.mxu0 %v1445
    %1514 = vmatpush.bf16.msra.mxu0 %v1441
    %1515 = vmatpush.bf16.msra.mxu0 %v1437
    %1516 = vmatpush.bf16.msra.mxu0 %v1433
    %1517 = vmatmul.bf16.gmra.mxu0 %v1303
    %v1518 = vpop.f32.mrf.mxu0
    %v1519 = vadd.f32 0.0, %v1518
    %v1520 = vpop.f32.mrf.mxu0
    %1521 = vdwg.mxu0
    %1522 = vmatpush.bf16.msra.mxu0 %v1462
    %1523 = vmatpush.bf16.msra.mxu0 %v1458
    %1524 = vmatpush.bf16.msra.mxu0 %v1454
    %1525 = vmatpush.bf16.msra.mxu0 %v1450
    %1526 = vmatpush.bf16.msra.mxu0 %v1446
    %1527 = vmatpush.bf16.msra.mxu0 %v1442
    %1528 = vmatpush.bf16.msra.mxu0 %v1438
    %1529 = vmatpush.bf16.msra.mxu0 %v1434
    %1530 = vmatmul.bf16.gmra.mxu0 %v1303
    %v1531 = vpop.f32.mrf.mxu0
    %v1532 = vadd.f32 0.0, %v1531
    %v1533 = vpop.f32.mrf.mxu0
    %1534 = vdwg.mxu0
    %1535 = vmatpush.bf16.msra.mxu0 %v1463
    %1536 = vmatpush.bf16.msra.mxu0 %v1459
    %1537 = vmatpush.bf16.msra.mxu0 %v1455
    %1538 = vmatpush.bf16.msra.mxu0 %v1451
    %1539 = vmatpush.bf16.msra.mxu0 %v1447
    %1540 = vmatpush.bf16.msra.mxu0 %v1443
    %1541 = vmatpush.bf16.msra.mxu0 %v1439
    %1542 = vmatpush.bf16.msra.mxu0 %v1435
    %1543 = vmatmul.bf16.gmra.mxu0 %v1303
    %v1544 = vpop.f32.mrf.mxu0
    %v1545 = vadd.f32 0.0, %v1544
    %v1546 = vpop.f32.mrf.mxu0
    %1547 = vdwg.mxu0
    %v1548 = vadd.f32 %v1299, %v1506
    %v1549 = vadd.f32 %v1300, %v1519
    %v1550 = vadd.f32 %v1301, %v1532
    %v1551 = vadd.f32 %v1302, %v1545
    %v1552 = vxor.u32 %v1548, 2147483648
    %v1553 = vxor.u32 %v1549, 2147483648
    %v1554 = vxor.u32 %v1550, 2147483648
    %v1555 = vmul.f32 %v1552, 1.442695
    %v1556 = vpow.pop %v1555
    %v1557 = vmul.f32 %v1553, 1.442695
    %v1558 = vpow.pop %v1557
    %v1559 = vmul.f32 %v1554, 1.442695
    %v1560 = vpow.pop %v1559
    %v1561 = vadd.f32 %v1556, 1.0
    %v1562 = vadd.f32 %v1558, 1.0
    %v1563 = vadd.f32 %v1560, 1.0
    %v1564 = vrcp.pop %v1561
    %v1565 = vmul.f32 %v1561, %v1564
    %v1566 = vsub.f32 1.0, %v1565
    %v1567 = vmul.f32 %v1564, %v1566
    %v1568 = vadd.f32 %v1564, %v1567
    %vm1569 = vweird.f32 %v1561
    %vm1570 = vweird.f32 %v1564
    %vm1571 = vmor %vm1569, %vm1570
    %v1572 = vsel %vm1571, %v1564, %v1568
    %v1573 = vand.u32 2147483647, %v1561
    %vm1574 = vcmp.eq.f32.partialorder %v1573, 8.507059e+37
    %v1575 = vand.u32 %v1561, 2147483648
    %v1576 = vor.u32 1.1754944e-38, %v1575
    %v1577 = vsel %vm1574, %v1576, %v1572
    %v1578 = vmul.f32 1.0, %v1577
    %v1579 = vrcp.pop %v1562
    %v1580 = vmul.f32 %v1562, %v1579
    %v1581 = vsub.f32 1.0, %v1580
    %v1582 = vmul.f32 %v1579, %v1581
    %v1583 = vadd.f32 %v1579, %v1582
    %vm1584 = vweird.f32 %v1562
    %vm1585 = vweird.f32 %v1579
    %vm1586 = vmor %vm1584, %vm1585
    %v1587 = vsel %vm1586, %v1579, %v1583
    %v1588 = vand.u32 2147483647, %v1562
    %vm1589 = vcmp.eq.f32.partialorder %v1588, 8.507059e+37
    %v1590 = vand.u32 %v1562, 2147483648
    %v1591 = vor.u32 1.1754944e-38, %v1590
    %v1592 = vsel %vm1589, %v1591, %v1587
    %v1593 = vmul.f32 1.0, %v1592
    %v1594 = vrcp.pop %v1563
    %v1595 = vmul.f32 %v1563, %v1594
    %v1596 = vsub.f32 1.0, %v1595
    %v1597 = vmul.f32 %v1594, %v1596
    %v1598 = vadd.f32 %v1594, %v1597
    %vm1599 = vweird.f32 %v1563
    %vm1600 = vweird.f32 %v1594
    %vm1601 = vmor %vm1599, %vm1600
    %v1602 = vsel %vm1601, %v1594, %v1598
    %v1603 = vand.u32 2147483647, %v1563
    %vm1604 = vcmp.eq.f32.partialorder %v1603, 8.507059e+37
    %v1605 = vand.u32 %v1563, 2147483648
    %v1606 = vor.u32 1.1754944e-38, %v1605
    %v1607 = vsel %vm1604, %v1606, %v1602
    %v1608 = vmul.f32 1.0, %v1607
    %v1609 = vtanh.pop %v1551
    %v1610 = vmul.f32 %v1593, %v1291
    %v1611 = vmul.f32 %v1578, %v1609
    %v1612 = vadd.f32 %v1610, %v1611
    %v1613 = vtanh.pop %v1612
    %v1614 = vmul.f32 %v1608, %v1613
    %s1615 = scalar_lea.vmem [#allocation5], 24
    %1616 = vst [vmem:[%s1615] sm:$0xff] %v1614
    %s1617 = smul.u32 4, 4
    %s1618 = smul.addr %s1617, 8
    %s1619 = scalar_lea.vmem [#allocation4], %s1618
    %v1620 = vld [vmem:[%s1619] sm:$0xff]
    %v1621 = vld [vmem:[%s1619 + $0x8] sm:$0xff]
    %v1622 = vld [vmem:[%s1619 + $0x10] sm:$0xff]
    %v1623 = vld [vmem:[%s1619 + $0x18] sm:$0xff]
    %v1624 = vpack.c.bf16 %v1614, %v1614
    %v1625 = vld [vmem:[#allocation6] sm:$0xff]
    %v1626 = vld [vmem:[#allocation6 + $0x8] sm:$0xff]
    %v1627 = vld [vmem:[#allocation6 + $0x10] sm:$0xff]
    %v1628 = vld [vmem:[#allocation6 + $0x18] sm:$0xff]
    %v1629 = vld [vmem:[#allocation6 + $0x20] sm:$0xff]
    %v1630 = vld [vmem:[#allocation6 + $0x28] sm:$0xff]
    %v1631 = vld [vmem:[#allocation6 + $0x30] sm:$0xff]
    %v1632 = vld [vmem:[#allocation6 + $0x38] sm:$0xff]
    %v1633 = vld [vmem:[#allocation6 + $0x40] sm:$0xff]
    %v1634 = vld [vmem:[#allocation6 + $0x48] sm:$0xff]
    %v1635 = vld [vmem:[#allocation6 + $0x50] sm:$0xff]
    %v1636 = vld [vmem:[#allocation6 + $0x58] sm:$0xff]
    %v1637 = vld [vmem:[#allocation6 + $0x60] sm:$0xff]
    %v1638 = vld [vmem:[#allocation6 + $0x68] sm:$0xff]
    %v1639 = vld [vmem:[#allocation6 + $0x70] sm:$0xff]
    %v1640 = vld [vmem:[#allocation6 + $0x78] sm:$0xff]
    %v1641 = vld [vmem:[#allocation6 + $0x80] sm:$0xff]
    %v1642 = vld [vmem:[#allocation6 + $0x88] sm:$0xff]
    %v1643 = vld [vmem:[#allocation6 + $0x90] sm:$0xff]
    %v1644 = vld [vmem:[#allocation6 + $0x98] sm:$0xff]
    %v1645 = vld [vmem:[#allocation6 + $0xa0] sm:$0xff]
    %v1646 = vld [vmem:[#allocation6 + $0xa8] sm:$0xff]
    %v1647 = vld [vmem:[#allocation6 + $0xb0] sm:$0xff]
    %v1648 = vld [vmem:[#allocation6 + $0xb8] sm:$0xff]
    %v1649 = vld [vmem:[#allocation6 + $0xc0] sm:$0xff]
    %v1650 = vld [vmem:[#allocation6 + $0xc8] sm:$0xff]
    %v1651 = vld [vmem:[#allocation6 + $0xd0] sm:$0xff]
    %v1652 = vld [vmem:[#allocation6 + $0xd8] sm:$0xff]
    %v1653 = vld [vmem:[#allocation6 + $0xe0] sm:$0xff]
    %v1654 = vld [vmem:[#allocation6 + $0xe8] sm:$0xff]
    %v1655 = vld [vmem:[#allocation6 + $0xf0] sm:$0xff]
    %v1656 = vld [vmem:[#allocation6 + $0xf8] sm:$0xff]
    %v1689 = vunpack.c.l.b16 %v1625
    %v1690 = vunpack.c.h.b16 %v1625
    %v1691 = vunpack.c.l.b16 %v1626
    %v1692 = vunpack.c.h.b16 %v1626
    %v1693 = vunpack.c.l.b16 %v1627
    %v1694 = vunpack.c.h.b16 %v1627
    %v1695 = vunpack.c.l.b16 %v1628
    %v1696 = vunpack.c.h.b16 %v1628
    %v1697 = vunpack.c.l.b16 %v1629
    %v1698 = vunpack.c.h.b16 %v1629
    %v1699 = vunpack.c.l.b16 %v1630
    %v1700 = vunpack.c.h.b16 %v1630
    %v1701 = vunpack.c.l.b16 %v1631
    %v1702 = vunpack.c.h.b16 %v1631
    %v1703 = vunpack.c.l.b16 %v1632
    %v1704 = vunpack.c.h.b16 %v1632
    %v1705 = vunpack.c.l.b16 %v1633
    %v1706 = vunpack.c.h.b16 %v1633
    %v1707 = vunpack.c.l.b16 %v1634
    %v1708 = vunpack.c.h.b16 %v1634
    %v1709 = vunpack.c.l.b16 %v1635
    %v1710 = vunpack.c.h.b16 %v1635
    %v1711 = vunpack.c.l.b16 %v1636
    %v1712 = vunpack.c.h.b16 %v1636
    %v1713 = vunpack.c.l.b16 %v1637
    %v1714 = vunpack.c.h.b16 %v1637
    %v1715 = vunpack.c.l.b16 %v1638
    %v1716 = vunpack.c.h.b16 %v1638
    %v1717 = vunpack.c.l.b16 %v1639
    %v1718 = vunpack.c.h.b16 %v1639
    %v1719 = vunpack.c.l.b16 %v1640
    %v1720 = vunpack.c.h.b16 %v1640
    %v1721 = vunpack.c.l.b16 %v1641
    %v1722 = vunpack.c.h.b16 %v1641
    %v1723 = vunpack.c.l.b16 %v1642
    %v1724 = vunpack.c.h.b16 %v1642
    %v1725 = vunpack.c.l.b16 %v1643
    %v1726 = vunpack.c.h.b16 %v1643
    %v1727 = vunpack.c.l.b16 %v1644
    %v1728 = vunpack.c.h.b16 %v1644
    %v1729 = vunpack.c.l.b16 %v1645
    %v1730 = vunpack.c.h.b16 %v1645
    %v1731 = vunpack.c.l.b16 %v1646
    %v1732 = vunpack.c.h.b16 %v1646
    %v1733 = vunpack.c.l.b16 %v1647
    %v1734 = vunpack.c.h.b16 %v1647
    %v1735 = vunpack.c.l.b16 %v1648
    %v1736 = vunpack.c.h.b16 %v1648
    %v1737 = vunpack.c.l.b16 %v1649
    %v1738 = vunpack.c.h.b16 %v1649
    %v1739 = vunpack.c.l.b16 %v1650
    %v1740 = vunpack.c.h.b16 %v1650
    %v1741 = vunpack.c.l.b16 %v1651
    %v1742 = vunpack.c.h.b16 %v1651
    %v1743 = vunpack.c.l.b16 %v1652
    %v1744 = vunpack.c.h.b16 %v1652
    %v1745 = vunpack.c.l.b16 %v1653
    %v1746 = vunpack.c.h.b16 %v1653
    %v1747 = vunpack.c.l.b16 %v1654
    %v1748 = vunpack.c.h.b16 %v1654
    %v1749 = vunpack.c.l.b16 %v1655
    %v1750 = vunpack.c.h.b16 %v1655
    %v1751 = vunpack.c.l.b16 %v1656
    %v1752 = vunpack.c.h.b16 %v1656
    %v1753 = vpack.c.b16 %v1693, %v1689
    %v1754 = vpack.c.b16 %v1694, %v1690
    %v1755 = vpack.c.b16 %v1695, %v1691
    %v1756 = vpack.c.b16 %v1696, %v1692
    %v1757 = vpack.c.b16 %v1701, %v1697
    %v1758 = vpack.c.b16 %v1702, %v1698
    %v1759 = vpack.c.b16 %v1703, %v1699
    %v1760 = vpack.c.b16 %v1704, %v1700
    %v1761 = vpack.c.b16 %v1709, %v1705
    %v1762 = vpack.c.b16 %v1710, %v1706
    %v1763 = vpack.c.b16 %v1711, %v1707
    %v1764 = vpack.c.b16 %v1712, %v1708
    %v1765 = vpack.c.b16 %v1717, %v1713
    %v1766 = vpack.c.b16 %v1718, %v1714
    %v1767 = vpack.c.b16 %v1719, %v1715
    %v1768 = vpack.c.b16 %v1720, %v1716
    %v1769 = vpack.c.b16 %v1725, %v1721
    %v1770 = vpack.c.b16 %v1726, %v1722
    %v1771 = vpack.c.b16 %v1727, %v1723
    %v1772 = vpack.c.b16 %v1728, %v1724
    %v1773 = vpack.c.b16 %v1733, %v1729
    %v1774 = vpack.c.b16 %v1734, %v1730
    %v1775 = vpack.c.b16 %v1735, %v1731
    %v1776 = vpack.c.b16 %v1736, %v1732
    %v1777 = vpack.c.b16 %v1741, %v1737
    %v1778 = vpack.c.b16 %v1742, %v1738
    %v1779 = vpack.c.b16 %v1743, %v1739
    %v1780 = vpack.c.b16 %v1744, %v1740
    %v1781 = vpack.c.b16 %v1749, %v1745
    %v1782 = vpack.c.b16 %v1750, %v1746
    %v1783 = vpack.c.b16 %v1751, %v1747
    %v1784 = vpack.c.b16 %v1752, %v1748
    %1817 = vmatpush.bf16.msra.mxu0 %v1781
    %1818 = vmatpush.bf16.msra.mxu0 %v1777
    %1819 = vmatpush.bf16.msra.mxu0 %v1773
    %1820 = vmatpush.bf16.msra.mxu0 %v1769
    %1821 = vmatpush.bf16.msra.mxu0 %v1765
    %1822 = vmatpush.bf16.msra.mxu0 %v1761
    %1823 = vmatpush.bf16.msra.mxu0 %v1757
    %1824 = vmatpush.bf16.msra.mxu0 %v1753
    %1825 = vmatmul.bf16.gmra.mxu0 %v1624
    %v1826 = vpop.f32.mrf.mxu0
    %v1827 = vadd.f32 0.0, %v1826
    %v1828 = vpop.f32.mrf.mxu0
    %1829 = vdwg.mxu0
    %1830 = vmatpush.bf16.msra.mxu0 %v1782
    %1831 = vmatpush.bf16.msra.mxu0 %v1778
    %1832 = vmatpush.bf16.msra.mxu0 %v1774
    %1833 = vmatpush.bf16.msra.mxu0 %v1770
    %1834 = vmatpush.bf16.msra.mxu0 %v1766
    %1835 = vmatpush.bf16.msra.mxu0 %v1762
    %1836 = vmatpush.bf16.msra.mxu0 %v1758
    %1837 = vmatpush.bf16.msra.mxu0 %v1754
    %1838 = vmatmul.bf16.gmra.mxu0 %v1624
    %v1839 = vpop.f32.mrf.mxu0
    %v1840 = vadd.f32 0.0, %v1839
    %v1841 = vpop.f32.mrf.mxu0
    %1842 = vdwg.mxu0
    %1843 = vmatpush.bf16.msra.mxu0 %v1783
    %1844 = vmatpush.bf16.msra.mxu0 %v1779
    %1845 = vmatpush.bf16.msra.mxu0 %v1775
    %1846 = vmatpush.bf16.msra.mxu0 %v1771
    %1847 = vmatpush.bf16.msra.mxu0 %v1767
    %1848 = vmatpush.bf16.msra.mxu0 %v1763
    %1849 = vmatpush.bf16.msra.mxu0 %v1759
    %1850 = vmatpush.bf16.msra.mxu0 %v1755
    %1851 = vmatmul.bf16.gmra.mxu0 %v1624
    %v1852 = vpop.f32.mrf.mxu0
    %v1853 = vadd.f32 0.0, %v1852
    %v1854 = vpop.f32.mrf.mxu0
    %1855 = vdwg.mxu0
    %1856 = vmatpush.bf16.msra.mxu0 %v1784
    %1857 = vmatpush.bf16.msra.mxu0 %v1780
    %1858 = vmatpush.bf16.msra.mxu0 %v1776
    %1859 = vmatpush.bf16.msra.mxu0 %v1772
    %1860 = vmatpush.bf16.msra.mxu0 %v1768
    %1861 = vmatpush.bf16.msra.mxu0 %v1764
    %1862 = vmatpush.bf16.msra.mxu0 %v1760
    %1863 = vmatpush.bf16.msra.mxu0 %v1756
    %1864 = vmatmul.bf16.gmra.mxu0 %v1624
    %v1865 = vpop.f32.mrf.mxu0
    %v1866 = vadd.f32 0.0, %v1865
    %v1867 = vpop.f32.mrf.mxu0
    %1868 = vdwg.mxu0
    %v1869 = vadd.f32 %v1620, %v1827
    %v1870 = vadd.f32 %v1621, %v1840
    %v1871 = vadd.f32 %v1622, %v1853
    %v1872 = vadd.f32 %v1623, %v1866
    %v1873 = vxor.u32 %v1869, 2147483648
    %v1874 = vxor.u32 %v1870, 2147483648
    %v1875 = vxor.u32 %v1871, 2147483648
    %v1876 = vmul.f32 %v1873, 1.442695
    %v1877 = vpow.pop %v1876
    %v1878 = vmul.f32 %v1874, 1.442695
    %v1879 = vpow.pop %v1878
    %v1880 = vmul.f32 %v1875, 1.442695
    %v1881 = vpow.pop %v1880
    %v1882 = vadd.f32 %v1877, 1.0
    %v1883 = vadd.f32 %v1879, 1.0
    %v1884 = vadd.f32 %v1881, 1.0
    %v1885 = vrcp.pop %v1882
    %v1886 = vmul.f32 %v1882, %v1885
    %v1887 = vsub.f32 1.0, %v1886
    %v1888 = vmul.f32 %v1885, %v1887
    %v1889 = vadd.f32 %v1885, %v1888
    %vm1890 = vweird.f32 %v1882
    %vm1891 = vweird.f32 %v1885
    %vm1892 = vmor %vm1890, %vm1891
    %v1893 = vsel %vm1892, %v1885, %v1889
    %v1894 = vand.u32 2147483647, %v1882
    %vm1895 = vcmp.eq.f32.partialorder %v1894, 8.507059e+37
    %v1896 = vand.u32 %v1882, 2147483648
    %v1897 = vor.u32 1.1754944e-38, %v1896
    %v1898 = vsel %vm1895, %v1897, %v1893
    %v1899 = vmul.f32 1.0, %v1898
    %v1900 = vrcp.pop %v1883
    %v1901 = vmul.f32 %v1883, %v1900
    %v1902 = vsub.f32 1.0, %v1901
    %v1903 = vmul.f32 %v1900, %v1902
    %v1904 = vadd.f32 %v1900, %v1903
    %vm1905 = vweird.f32 %v1883
    %vm1906 = vweird.f32 %v1900
    %vm1907 = vmor %vm1905, %vm1906
    %v1908 = vsel %vm1907, %v1900, %v1904
    %v1909 = vand.u32 2147483647, %v1883
    %vm1910 = vcmp.eq.f32.partialorder %v1909, 8.507059e+37
    %v1911 = vand.u32 %v1883, 2147483648
    %v1912 = vor.u32 1.1754944e-38, %v1911
    %v1913 = vsel %vm1910, %v1912, %v1908
    %v1914 = vmul.f32 1.0, %v1913
    %v1915 = vrcp.pop %v1884
    %v1916 = vmul.f32 %v1884, %v1915
    %v1917 = vsub.f32 1.0, %v1916
    %v1918 = vmul.f32 %v1915, %v1917
    %v1919 = vadd.f32 %v1915, %v1918
    %vm1920 = vweird.f32 %v1884
    %vm1921 = vweird.f32 %v1915
    %vm1922 = vmor %vm1920, %vm1921
    %v1923 = vsel %vm1922, %v1915, %v1919
    %v1924 = vand.u32 2147483647, %v1884
    %vm1925 = vcmp.eq.f32.partialorder %v1924, 8.507059e+37
    %v1926 = vand.u32 %v1884, 2147483648
    %v1927 = vor.u32 1.1754944e-38, %v1926
    %v1928 = vsel %vm1925, %v1927, %v1923
    %v1929 = vmul.f32 1.0, %v1928
    %v1930 = vtanh.pop %v1872
    %v1931 = vmul.f32 %v1914, %v1612
    %v1932 = vmul.f32 %v1899, %v1930
    %v1933 = vadd.f32 %v1931, %v1932
    %v1934 = vtanh.pop %v1933
    %v1935 = vmul.f32 %v1929, %v1934
    %s1936 = scalar_lea.vmem [#allocation5], 32
    %1937 = vst [vmem:[%s1936] sm:$0xff] %v1935
    %s1938 = smul.u32 5, 4
    %s1939 = smul.addr %s1938, 8
    %s1940 = scalar_lea.vmem [#allocation4], %s1939
    %v1941 = vld [vmem:[%s1940] sm:$0xff]
    %v1942 = vld [vmem:[%s1940 + $0x8] sm:$0xff]
    %v1943 = vld [vmem:[%s1940 + $0x10] sm:$0xff]
    %v1944 = vld [vmem:[%s1940 + $0x18] sm:$0xff]
    %v1945 = vpack.c.bf16 %v1935, %v1935
    %v1946 = vld [vmem:[#allocation6] sm:$0xff]
    %v1947 = vld [vmem:[#allocation6 + $0x8] sm:$0xff]
    %v1948 = vld [vmem:[#allocation6 + $0x10] sm:$0xff]
    %v1949 = vld [vmem:[#allocation6 + $0x18] sm:$0xff]
    %v1950 = vld [vmem:[#allocation6 + $0x20] sm:$0xff]
    %v1951 = vld [vmem:[#allocation6 + $0x28] sm:$0xff]
    %v1952 = vld [vmem:[#allocation6 + $0x30] sm:$0xff]
    %v1953 = vld [vmem:[#allocation6 + $0x38] sm:$0xff]
    %v1954 = vld [vmem:[#allocation6 + $0x40] sm:$0xff]
    %v1955 = vld [vmem:[#allocation6 + $0x48] sm:$0xff]
    %v1956 = vld [vmem:[#allocation6 + $0x50] sm:$0xff]
    %v1957 = vld [vmem:[#allocation6 + $0x58] sm:$0xff]
    %v1958 = vld [vmem:[#allocation6 + $0x60] sm:$0xff]
    %v1959 = vld [vmem:[#allocation6 + $0x68] sm:$0xff]
    %v1960 = vld [vmem:[#allocation6 + $0x70] sm:$0xff]
    %v1961 = vld [vmem:[#allocation6 + $0x78] sm:$0xff]
    %v1962 = vld [vmem:[#allocation6 + $0x80] sm:$0xff]
    %v1963 = vld [vmem:[#allocation6 + $0x88] sm:$0xff]
    %v1964 = vld [vmem:[#allocation6 + $0x90] sm:$0xff]
    %v1965 = vld [vmem:[#allocation6 + $0x98] sm:$0xff]
    %v1966 = vld [vmem:[#allocation6 + $0xa0] sm:$0xff]
    %v1967 = vld [vmem:[#allocation6 + $0xa8] sm:$0xff]
    %v1968 = vld [vmem:[#allocation6 + $0xb0] sm:$0xff]
    %v1969 = vld [vmem:[#allocation6 + $0xb8] sm:$0xff]
    %v1970 = vld [vmem:[#allocation6 + $0xc0] sm:$0xff]
    %v1971 = vld [vmem:[#allocation6 + $0xc8] sm:$0xff]
    %v1972 = vld [vmem:[#allocation6 + $0xd0] sm:$0xff]
    %v1973 = vld [vmem:[#allocation6 + $0xd8] sm:$0xff]
    %v1974 = vld [vmem:[#allocation6 + $0xe0] sm:$0xff]
    %v1975 = vld [vmem:[#allocation6 + $0xe8] sm:$0xff]
    %v1976 = vld [vmem:[#allocation6 + $0xf0] sm:$0xff]
    %v1977 = vld [vmem:[#allocation6 + $0xf8] sm:$0xff]
    %v2010 = vunpack.c.l.b16 %v1946
    %v2011 = vunpack.c.h.b16 %v1946
    %v2012 = vunpack.c.l.b16 %v1947
    %v2013 = vunpack.c.h.b16 %v1947
    %v2014 = vunpack.c.l.b16 %v1948
    %v2015 = vunpack.c.h.b16 %v1948
    %v2016 = vunpack.c.l.b16 %v1949
    %v2017 = vunpack.c.h.b16 %v1949
    %v2018 = vunpack.c.l.b16 %v1950
    %v2019 = vunpack.c.h.b16 %v1950
    %v2020 = vunpack.c.l.b16 %v1951
    %v2021 = vunpack.c.h.b16 %v1951
    %v2022 = vunpack.c.l.b16 %v1952
    %v2023 = vunpack.c.h.b16 %v1952
    %v2024 = vunpack.c.l.b16 %v1953
    %v2025 = vunpack.c.h.b16 %v1953
    %v2026 = vunpack.c.l.b16 %v1954
    %v2027 = vunpack.c.h.b16 %v1954
    %v2028 = vunpack.c.l.b16 %v1955
    %v2029 = vunpack.c.h.b16 %v1955
    %v2030 = vunpack.c.l.b16 %v1956
    %v2031 = vunpack.c.h.b16 %v1956
    %v2032 = vunpack.c.l.b16 %v1957
    %v2033 = vunpack.c.h.b16 %v1957
    %v2034 = vunpack.c.l.b16 %v1958
    %v2035 = vunpack.c.h.b16 %v1958
    %v2036 = vunpack.c.l.b16 %v1959
    %v2037 = vunpack.c.h.b16 %v1959
    %v2038 = vunpack.c.l.b16 %v1960
    %v2039 = vunpack.c.h.b16 %v1960
    %v2040 = vunpack.c.l.b16 %v1961
    %v2041 = vunpack.c.h.b16 %v1961
    %v2042 = vunpack.c.l.b16 %v1962
    %v2043 = vunpack.c.h.b16 %v1962
    %v2044 = vunpack.c.l.b16 %v1963
    %v2045 = vunpack.c.h.b16 %v1963
    %v2046 = vunpack.c.l.b16 %v1964
    %v2047 = vunpack.c.h.b16 %v1964
    %v2048 = vunpack.c.l.b16 %v1965
    %v2049 = vunpack.c.h.b16 %v1965
    %v2050 = vunpack.c.l.b16 %v1966
    %v2051 = vunpack.c.h.b16 %v1966
    %v2052 = vunpack.c.l.b16 %v1967
    %v2053 = vunpack.c.h.b16 %v1967
    %v2054 = vunpack.c.l.b16 %v1968
    %v2055 = vunpack.c.h.b16 %v1968
    %v2056 = vunpack.c.l.b16 %v1969
    %v2057 = vunpack.c.h.b16 %v1969
    %v2058 = vunpack.c.l.b16 %v1970
    %v2059 = vunpack.c.h.b16 %v1970
    %v2060 = vunpack.c.l.b16 %v1971
    %v2061 = vunpack.c.h.b16 %v1971
    %v2062 = vunpack.c.l.b16 %v1972
    %v2063 = vunpack.c.h.b16 %v1972
    %v2064 = vunpack.c.l.b16 %v1973
    %v2065 = vunpack.c.h.b16 %v1973
    %v2066 = vunpack.c.l.b16 %v1974
    %v2067 = vunpack.c.h.b16 %v1974
    %v2068 = vunpack.c.l.b16 %v1975
    %v2069 = vunpack.c.h.b16 %v1975
    %v2070 = vunpack.c.l.b16 %v1976
    %v2071 = vunpack.c.h.b16 %v1976
    %v2072 = vunpack.c.l.b16 %v1977
    %v2073 = vunpack.c.h.b16 %v1977
    %v2074 = vpack.c.b16 %v2014, %v2010
    %v2075 = vpack.c.b16 %v2015, %v2011
    %v2076 = vpack.c.b16 %v2016, %v2012
    %v2077 = vpack.c.b16 %v2017, %v2013
    %v2078 = vpack.c.b16 %v2022, %v2018
    %v2079 = vpack.c.b16 %v2023, %v2019
    %v2080 = vpack.c.b16 %v2024, %v2020
    %v2081 = vpack.c.b16 %v2025, %v2021
    %v2082 = vpack.c.b16 %v2030, %v2026
    %v2083 = vpack.c.b16 %v2031, %v2027
    %v2084 = vpack.c.b16 %v2032, %v2028
    %v2085 = vpack.c.b16 %v2033, %v2029
    %v2086 = vpack.c.b16 %v2038, %v2034
    %v2087 = vpack.c.b16 %v2039, %v2035
    %v2088 = vpack.c.b16 %v2040, %v2036
    %v2089 = vpack.c.b16 %v2041, %v2037
    %v2090 = vpack.c.b16 %v2046, %v2042
    %v2091 = vpack.c.b16 %v2047, %v2043
    %v2092 = vpack.c.b16 %v2048, %v2044
    %v2093 = vpack.c.b16 %v2049, %v2045
    %v2094 = vpack.c.b16 %v2054, %v2050
    %v2095 = vpack.c.b16 %v2055, %v2051
    %v2096 = vpack.c.b16 %v2056, %v2052
    %v2097 = vpack.c.b16 %v2057, %v2053
    %v2098 = vpack.c.b16 %v2062, %v2058
    %v2099 = vpack.c.b16 %v2063, %v2059
    %v2100 = vpack.c.b16 %v2064, %v2060
    %v2101 = vpack.c.b16 %v2065, %v2061
    %v2102 = vpack.c.b16 %v2070, %v2066
    %v2103 = vpack.c.b16 %v2071, %v2067
    %v2104 = vpack.c.b16 %v2072, %v2068
    %v2105 = vpack.c.b16 %v2073, %v2069
    %2138 = vmatpush.bf16.msra.mxu0 %v2102
    %2139 = vmatpush.bf16.msra.mxu0 %v2098
    %2140 = vmatpush.bf16.msra.mxu0 %v2094
    %2141 = vmatpush.bf16.msra.mxu0 %v2090
    %2142 = vmatpush.bf16.msra.mxu0 %v2086
    %2143 = vmatpush.bf16.msra.mxu0 %v2082
    %2144 = vmatpush.bf16.msra.mxu0 %v2078
    %2145 = vmatpush.bf16.msra.mxu0 %v2074
    %2146 = vmatmul.bf16.gmra.mxu0 %v1945
    %v2147 = vpop.f32.mrf.mxu0
    %v2148 = vadd.f32 0.0, %v2147
    %v2149 = vpop.f32.mrf.mxu0
    %2150 = vdwg.mxu0
    %2151 = vmatpush.bf16.msra.mxu0 %v2103
    %2152 = vmatpush.bf16.msra.mxu0 %v2099
    %2153 = vmatpush.bf16.msra.mxu0 %v2095
    %2154 = vmatpush.bf16.msra.mxu0 %v2091
    %2155 = vmatpush.bf16.msra.mxu0 %v2087
    %2156 = vmatpush.bf16.msra.mxu0 %v2083
    %2157 = vmatpush.bf16.msra.mxu0 %v2079
    %2158 = vmatpush.bf16.msra.mxu0 %v2075
    %2159 = vmatmul.bf16.gmra.mxu0 %v1945
    %v2160 = vpop.f32.mrf.mxu0
    %v2161 = vadd.f32 0.0, %v2160
    %v2162 = vpop.f32.mrf.mxu0
    %2163 = vdwg.mxu0
    %2164 = vmatpush.bf16.msra.mxu0 %v2104
    %2165 = vmatpush.bf16.msra.mxu0 %v2100
    %2166 = vmatpush.bf16.msra.mxu0 %v2096
    %2167 = vmatpush.bf16.msra.mxu0 %v2092
    %2168 = vmatpush.bf16.msra.mxu0 %v2088
    %2169 = vmatpush.bf16.msra.mxu0 %v2084
    %2170 = vmatpush.bf16.msra.mxu0 %v2080
    %2171 = vmatpush.bf16.msra.mxu0 %v2076
    %2172 = vmatmul.bf16.gmra.mxu0 %v1945
    %v2173 = vpop.f32.mrf.mxu0
    %v2174 = vadd.f32 0.0, %v2173
    %v2175 = vpop.f32.mrf.mxu0
    %2176 = vdwg.mxu0
    %2177 = vmatpush.bf16.msra.mxu0 %v2105
    %2178 = vmatpush.bf16.msra.mxu0 %v2101
    %2179 = vmatpush.bf16.msra.mxu0 %v2097
    %2180 = vmatpush.bf16.msra.mxu0 %v2093
    %2181 = vmatpush.bf16.msra.mxu0 %v2089
    %2182 = vmatpush.bf16.msra.mxu0 %v2085
    %2183 = vmatpush.bf16.msra.mxu0 %v2081
    %2184 = vmatpush.bf16.msra.mxu0 %v2077
    %2185 = vmatmul.bf16.gmra.mxu0 %v1945
    %v2186 = vpop.f32.mrf.mxu0
    %v2187 = vadd.f32 0.0, %v2186
    %v2188 = vpop.f32.mrf.mxu0
    %2189 = vdwg.mxu0
    %v2190 = vadd.f32 %v1941, %v2148
    %v2191 = vadd.f32 %v1942, %v2161
    %v2192 = vadd.f32 %v1943, %v2174
    %v2193 = vadd.f32 %v1944, %v2187
    %v2194 = vxor.u32 %v2190, 2147483648
    %v2195 = vxor.u32 %v2191, 2147483648
    %v2196 = vxor.u32 %v2192, 2147483648
    %v2197 = vmul.f32 %v2194, 1.442695
    %v2198 = vpow.pop %v2197
    %v2199 = vmul.f32 %v2195, 1.442695
    %v2200 = vpow.pop %v2199
    %v2201 = vmul.f32 %v2196, 1.442695
    %v2202 = vpow.pop %v2201
    %v2203 = vadd.f32 %v2198, 1.0
    %v2204 = vadd.f32 %v2200, 1.0
    %v2205 = vadd.f32 %v2202, 1.0
    %v2206 = vrcp.pop %v2203
    %v2207 = vmul.f32 %v2203, %v2206
    %v2208 = vsub.f32 1.0, %v2207
    %v2209 = vmul.f32 %v2206, %v2208
    %v2210 = vadd.f32 %v2206, %v2209
    %vm2211 = vweird.f32 %v2203
    %vm2212 = vweird.f32 %v2206
    %vm2213 = vmor %vm2211, %vm2212
    %v2214 = vsel %vm2213, %v2206, %v2210
    %v2215 = vand.u32 2147483647, %v2203
    %vm2216 = vcmp.eq.f32.partialorder %v2215, 8.507059e+37
    %v2217 = vand.u32 %v2203, 2147483648
    %v2218 = vor.u32 1.1754944e-38, %v2217
    %v2219 = vsel %vm2216, %v2218, %v2214
    %v2220 = vmul.f32 1.0, %v2219
    %v2221 = vrcp.pop %v2204
    %v2222 = vmul.f32 %v2204, %v2221
    %v2223 = vsub.f32 1.0, %v2222
    %v2224 = vmul.f32 %v2221, %v2223
    %v2225 = vadd.f32 %v2221, %v2224
    %vm2226 = vweird.f32 %v2204
    %vm2227 = vweird.f32 %v2221
    %vm2228 = vmor %vm2226, %vm2227
    %v2229 = vsel %vm2228, %v2221, %v2225
    %v2230 = vand.u32 2147483647, %v2204
    %vm2231 = vcmp.eq.f32.partialorder %v2230, 8.507059e+37
    %v2232 = vand.u32 %v2204, 2147483648
    %v2233 = vor.u32 1.1754944e-38, %v2232
    %v2234 = vsel %vm2231, %v2233, %v2229
    %v2235 = vmul.f32 1.0, %v2234
    %v2236 = vrcp.pop %v2205
    %v2237 = vmul.f32 %v2205, %v2236
    %v2238 = vsub.f32 1.0, %v2237
    %v2239 = vmul.f32 %v2236, %v2238
    %v2240 = vadd.f32 %v2236, %v2239
    %vm2241 = vweird.f32 %v2205
    %vm2242 = vweird.f32 %v2236
    %vm2243 = vmor %vm2241, %vm2242
    %v2244 = vsel %vm2243, %v2236, %v2240
    %v2245 = vand.u32 2147483647, %v2205
    %vm2246 = vcmp.eq.f32.partialorder %v2245, 8.507059e+37
    %v2247 = vand.u32 %v2205, 2147483648
    %v2248 = vor.u32 1.1754944e-38, %v2247
    %v2249 = vsel %vm2246, %v2248, %v2244
    %v2250 = vmul.f32 1.0, %v2249
    %v2251 = vtanh.pop %v2193
    %v2252 = vmul.f32 %v2235, %v1933
    %v2253 = vmul.f32 %v2220, %v2251
    %v2254 = vadd.f32 %v2252, %v2253
    %v2255 = vtanh.pop %v2254
    %v2256 = vmul.f32 %v2250, %v2255
    %s2257 = scalar_lea.vmem [#allocation5], 40
    %2258 = vst [vmem:[%s2257] sm:$0xff] %v2256
    %s2259 = smul.u32 6, 4
    %s2260 = smul.addr %s2259, 8
    %s2261 = scalar_lea.vmem [#allocation4], %s2260
    %v2262 = vld [vmem:[%s2261] sm:$0xff]
    %v2263 = vld [vmem:[%s2261 + $0x8] sm:$0xff]
    %v2264 = vld [vmem:[%s2261 + $0x10] sm:$0xff]
    %v2265 = vld [vmem:[%s2261 + $0x18] sm:$0xff]
    %v2266 = vpack.c.bf16 %v2256, %v2256
    %v2267 = vld [vmem:[#allocation6] sm:$0xff]
    %v2268 = vld [vmem:[#allocation6 + $0x8] sm:$0xff]
    %v2269 = vld [vmem:[#allocation6 + $0x10] sm:$0xff]
    %v2270 = vld [vmem:[#allocation6 + $0x18] sm:$0xff]
    %v2271 = vld [vmem:[#allocation6 + $0x20] sm:$0xff]
    %v2272 = vld [vmem:[#allocation6 + $0x28] sm:$0xff]
    %v2273 = vld [vmem:[#allocation6 + $0x30] sm:$0xff]
    %v2274 = vld [vmem:[#allocation6 + $0x38] sm:$0xff]
    %v2275 = vld [vmem:[#allocation6 + $0x40] sm:$0xff]
    %v2276 = vld [vmem:[#allocation6 + $0x48] sm:$0xff]
    %v2277 = vld [vmem:[#allocation6 + $0x50] sm:$0xff]
    %v2278 = vld [vmem:[#allocation6 + $0x58] sm:$0xff]
    %v2279 = vld [vmem:[#allocation6 + $0x60] sm:$0xff]
    %v2280 = vld [vmem:[#allocation6 + $0x68] sm:$0xff]
    %v2281 = vld [vmem:[#allocation6 + $0x70] sm:$0xff]
    %v2282 = vld [vmem:[#allocation6 + $0x78] sm:$0xff]
    %v2283 = vld [vmem:[#allocation6 + $0x80] sm:$0xff]
    %v2284 = vld [vmem:[#allocation6 + $0x88] sm:$0xff]
    %v2285 = vld [vmem:[#allocation6 + $0x90] sm:$0xff]
    %v2286 = vld [vmem:[#allocation6 + $0x98] sm:$0xff]
    %v2287 = vld [vmem:[#allocation6 + $0xa0] sm:$0xff]
    %v2288 = vld [vmem:[#allocation6 + $0xa8] sm:$0xff]
    %v2289 = vld [vmem:[#allocation6 + $0xb0] sm:$0xff]
    %v2290 = vld [vmem:[#allocation6 + $0xb8] sm:$0xff]
    %v2291 = vld [vmem:[#allocation6 + $0xc0] sm:$0xff]
    %v2292 = vld [vmem:[#allocation6 + $0xc8] sm:$0xff]
    %v2293 = vld [vmem:[#allocation6 + $0xd0] sm:$0xff]
    %v2294 = vld [vmem:[#allocation6 + $0xd8] sm:$0xff]
    %v2295 = vld [vmem:[#allocation6 + $0xe0] sm:$0xff]
    %v2296 = vld [vmem:[#allocation6 + $0xe8] sm:$0xff]
    %v2297 = vld [vmem:[#allocation6 + $0xf0] sm:$0xff]
    %v2298 = vld [vmem:[#allocation6 + $0xf8] sm:$0xff]
    %v2331 = vunpack.c.l.b16 %v2267
    %v2332 = vunpack.c.h.b16 %v2267
    %v2333 = vunpack.c.l.b16 %v2268
    %v2334 = vunpack.c.h.b16 %v2268
    %v2335 = vunpack.c.l.b16 %v2269
    %v2336 = vunpack.c.h.b16 %v2269
    %v2337 = vunpack.c.l.b16 %v2270
    %v2338 = vunpack.c.h.b16 %v2270
    %v2339 = vunpack.c.l.b16 %v2271
    %v2340 = vunpack.c.h.b16 %v2271
    %v2341 = vunpack.c.l.b16 %v2272
    %v2342 = vunpack.c.h.b16 %v2272
    %v2343 = vunpack.c.l.b16 %v2273
    %v2344 = vunpack.c.h.b16 %v2273
    %v2345 = vunpack.c.l.b16 %v2274
    %v2346 = vunpack.c.h.b16 %v2274
    %v2347 = vunpack.c.l.b16 %v2275
    %v2348 = vunpack.c.h.b16 %v2275
    %v2349 = vunpack.c.l.b16 %v2276
    %v2350 = vunpack.c.h.b16 %v2276
    %v2351 = vunpack.c.l.b16 %v2277
    %v2352 = vunpack.c.h.b16 %v2277
    %v2353 = vunpack.c.l.b16 %v2278
    %v2354 = vunpack.c.h.b16 %v2278
    %v2355 = vunpack.c.l.b16 %v2279
    %v2356 = vunpack.c.h.b16 %v2279
    %v2357 = vunpack.c.l.b16 %v2280
    %v2358 = vunpack.c.h.b16 %v2280
    %v2359 = vunpack.c.l.b16 %v2281
    %v2360 = vunpack.c.h.b16 %v2281
    %v2361 = vunpack.c.l.b16 %v2282
    %v2362 = vunpack.c.h.b16 %v2282
    %v2363 = vunpack.c.l.b16 %v2283
    %v2364 = vunpack.c.h.b16 %v2283
    %v2365 = vunpack.c.l.b16 %v2284
    %v2366 = vunpack.c.h.b16 %v2284
    %v2367 = vunpack.c.l.b16 %v2285
    %v2368 = vunpack.c.h.b16 %v2285
    %v2369 = vunpack.c.l.b16 %v2286
    %v2370 = vunpack.c.h.b16 %v2286
    %v2371 = vunpack.c.l.b16 %v2287
    %v2372 = vunpack.c.h.b16 %v2287
    %v2373 = vunpack.c.l.b16 %v2288
    %v2374 = vunpack.c.h.b16 %v2288
    %v2375 = vunpack.c.l.b16 %v2289
    %v2376 = vunpack.c.h.b16 %v2289
    %v2377 = vunpack.c.l.b16 %v2290
    %v2378 = vunpack.c.h.b16 %v2290
    %v2379 = vunpack.c.l.b16 %v2291
    %v2380 = vunpack.c.h.b16 %v2291
    %v2381 = vunpack.c.l.b16 %v2292
    %v2382 = vunpack.c.h.b16 %v2292
    %v2383 = vunpack.c.l.b16 %v2293
    %v2384 = vunpack.c.h.b16 %v2293
    %v2385 = vunpack.c.l.b16 %v2294
    %v2386 = vunpack.c.h.b16 %v2294
    %v2387 = vunpack.c.l.b16 %v2295
    %v2388 = vunpack.c.h.b16 %v2295
    %v2389 = vunpack.c.l.b16 %v2296
    %v2390 = vunpack.c.h.b16 %v2296
    %v2391 = vunpack.c.l.b16 %v2297
    %v2392 = vunpack.c.h.b16 %v2297
    %v2393 = vunpack.c.l.b16 %v2298
    %v2394 = vunpack.c.h.b16 %v2298
    %v2395 = vpack.c.b16 %v2335, %v2331
    %v2396 = vpack.c.b16 %v2336, %v2332
    %v2397 = vpack.c.b16 %v2337, %v2333
    %v2398 = vpack.c.b16 %v2338, %v2334
    %v2399 = vpack.c.b16 %v2343, %v2339
    %v2400 = vpack.c.b16 %v2344, %v2340
    %v2401 = vpack.c.b16 %v2345, %v2341
    %v2402 = vpack.c.b16 %v2346, %v2342
    %v2403 = vpack.c.b16 %v2351, %v2347
    %v2404 = vpack.c.b16 %v2352, %v2348
    %v2405 = vpack.c.b16 %v2353, %v2349
    %v2406 = vpack.c.b16 %v2354, %v2350
    %v2407 = vpack.c.b16 %v2359, %v2355
    %v2408 = vpack.c.b16 %v2360, %v2356
    %v2409 = vpack.c.b16 %v2361, %v2357
    %v2410 = vpack.c.b16 %v2362, %v2358
    %v2411 = vpack.c.b16 %v2367, %v2363
    %v2412 = vpack.c.b16 %v2368, %v2364
    %v2413 = vpack.c.b16 %v2369, %v2365
    %v2414 = vpack.c.b16 %v2370, %v2366
    %v2415 = vpack.c.b16 %v2375, %v2371
    %v2416 = vpack.c.b16 %v2376, %v2372
    %v2417 = vpack.c.b16 %v2377, %v2373
    %v2418 = vpack.c.b16 %v2378, %v2374
    %v2419 = vpack.c.b16 %v2383, %v2379
    %v2420 = vpack.c.b16 %v2384, %v2380
    %v2421 = vpack.c.b16 %v2385, %v2381
    %v2422 = vpack.c.b16 %v2386, %v2382
    %v2423 = vpack.c.b16 %v2391, %v2387
    %v2424 = vpack.c.b16 %v2392, %v2388
    %v2425 = vpack.c.b16 %v2393, %v2389
    %v2426 = vpack.c.b16 %v2394, %v2390
    %2459 = vmatpush.bf16.msra.mxu0 %v2423
    %2460 = vmatpush.bf16.msra.mxu0 %v2419
    %2461 = vmatpush.bf16.msra.mxu0 %v2415
    %2462 = vmatpush.bf16.msra.mxu0 %v2411
    %2463 = vmatpush.bf16.msra.mxu0 %v2407
    %2464 = vmatpush.bf16.msra.mxu0 %v2403
    %2465 = vmatpush.bf16.msra.mxu0 %v2399
    %2466 = vmatpush.bf16.msra.mxu0 %v2395
    %2467 = vmatmul.bf16.gmra.mxu0 %v2266
    %v2468 = vpop.f32.mrf.mxu0
    %v2469 = vadd.f32 0.0, %v2468
    %v2470 = vpop.f32.mrf.mxu0
    %2471 = vdwg.mxu0
    %2472 = vmatpush.bf16.msra.mxu0 %v2424
    %2473 = vmatpush.bf16.msra.mxu0 %v2420
    %2474 = vmatpush.bf16.msra.mxu0 %v2416
    %2475 = vmatpush.bf16.msra.mxu0 %v2412
    %2476 = vmatpush.bf16.msra.mxu0 %v2408
    %2477 = vmatpush.bf16.msra.mxu0 %v2404
    %2478 = vmatpush.bf16.msra.mxu0 %v2400
    %2479 = vmatpush.bf16.msra.mxu0 %v2396
    %2480 = vmatmul.bf16.gmra.mxu0 %v2266
    %v2481 = vpop.f32.mrf.mxu0
    %v2482 = vadd.f32 0.0, %v2481
    %v2483 = vpop.f32.mrf.mxu0
    %2484 = vdwg.mxu0
    %2485 = vmatpush.bf16.msra.mxu0 %v2425
    %2486 = vmatpush.bf16.msra.mxu0 %v2421
    %2487 = vmatpush.bf16.msra.mxu0 %v2417
    %2488 = vmatpush.bf16.msra.mxu0 %v2413
    %2489 = vmatpush.bf16.msra.mxu0 %v2409
    %2490 = vmatpush.bf16.msra.mxu0 %v2405
    %2491 = vmatpush.bf16.msra.mxu0 %v2401
    %2492 = vmatpush.bf16.msra.mxu0 %v2397
    %2493 = vmatmul.bf16.gmra.mxu0 %v2266
    %v2494 = vpop.f32.mrf.mxu0
    %v2495 = vadd.f32 0.0, %v2494
    %v2496 = vpop.f32.mrf.mxu0
    %2497 = vdwg.mxu0
    %2498 = vmatpush.bf16.msra.mxu0 %v2426
    %2499 = vmatpush.bf16.msra.mxu0 %v2422
    %2500 = vmatpush.bf16.msra.mxu0 %v2418
    %2501 = vmatpush.bf16.msra.mxu0 %v2414
    %2502 = vmatpush.bf16.msra.mxu0 %v2410
    %2503 = vmatpush.bf16.msra.mxu0 %v2406
    %2504 = vmatpush.bf16.msra.mxu0 %v2402
    %2505 = vmatpush.bf16.msra.mxu0 %v2398
    %2506 = vmatmul.bf16.gmra.mxu0 %v2266
    %v2507 = vpop.f32.mrf.mxu0
    %v2508 = vadd.f32 0.0, %v2507
    %v2509 = vpop.f32.mrf.mxu0
    %2510 = vdwg.mxu0
    %v2511 = vadd.f32 %v2262, %v2469
    %v2512 = vadd.f32 %v2263, %v2482
    %v2513 = vadd.f32 %v2264, %v2495
    %v2514 = vadd.f32 %v2265, %v2508
    %v2515 = vxor.u32 %v2511, 2147483648
    %v2516 = vxor.u32 %v2512, 2147483648
    %v2517 = vxor.u32 %v2513, 2147483648
    %v2518 = vmul.f32 %v2515, 1.442695
    %v2519 = vpow.pop %v2518
    %v2520 = vmul.f32 %v2516, 1.442695
    %v2521 = vpow.pop %v2520
    %v2522 = vmul.f32 %v2517, 1.442695
    %v2523 = vpow.pop %v2522
    %v2524 = vadd.f32 %v2519, 1.0
    %v2525 = vadd.f32 %v2521, 1.0
    %v2526 = vadd.f32 %v2523, 1.0
    %v2527 = vrcp.pop %v2524
    %v2528 = vmul.f32 %v2524, %v2527
    %v2529 = vsub.f32 1.0, %v2528
    %v2530 = vmul.f32 %v2527, %v2529
    %v2531 = vadd.f32 %v2527, %v2530
    %vm2532 = vweird.f32 %v2524
    %vm2533 = vweird.f32 %v2527
    %vm2534 = vmor %vm2532, %vm2533
    %v2535 = vsel %vm2534, %v2527, %v2531
    %v2536 = vand.u32 2147483647, %v2524
    %vm2537 = vcmp.eq.f32.partialorder %v2536, 8.507059e+37
    %v2538 = vand.u32 %v2524, 2147483648
    %v2539 = vor.u32 1.1754944e-38, %v2538
    %v2540 = vsel %vm2537, %v2539, %v2535
    %v2541 = vmul.f32 1.0, %v2540
    %v2542 = vrcp.pop %v2525
    %v2543 = vmul.f32 %v2525, %v2542
    %v2544 = vsub.f32 1.0, %v2543
    %v2545 = vmul.f32 %v2542, %v2544
    %v2546 = vadd.f32 %v2542, %v2545
    %vm2547 = vweird.f32 %v2525
    %vm2548 = vweird.f32 %v2542
    %vm2549 = vmor %vm2547, %vm2548
    %v2550 = vsel %vm2549, %v2542, %v2546
    %v2551 = vand.u32 2147483647, %v2525
    %vm2552 = vcmp.eq.f32.partialorder %v2551, 8.507059e+37
    %v2553 = vand.u32 %v2525, 2147483648
    %v2554 = vor.u32 1.1754944e-38, %v2553
    %v2555 = vsel %vm2552, %v2554, %v2550
    %v2556 = vmul.f32 1.0, %v2555
    %v2557 = vrcp.pop %v2526
    %v2558 = vmul.f32 %v2526, %v2557
    %v2559 = vsub.f32 1.0, %v2558
    %v2560 = vmul.f32 %v2557, %v2559
    %v2561 = vadd.f32 %v2557, %v2560
    %vm2562 = vweird.f32 %v2526
    %vm2563 = vweird.f32 %v2557
    %vm2564 = vmor %vm2562, %vm2563
    %v2565 = vsel %vm2564, %v2557, %v2561
    %v2566 = vand.u32 2147483647, %v2526
    %vm2567 = vcmp.eq.f32.partialorder %v2566, 8.507059e+37
    %v2568 = vand.u32 %v2526, 2147483648
    %v2569 = vor.u32 1.1754944e-38, %v2568
    %v2570 = vsel %vm2567, %v2569, %v2565
    %v2571 = vmul.f32 1.0, %v2570
    %v2572 = vtanh.pop %v2514
    %v2573 = vmul.f32 %v2556, %v2254
    %v2574 = vmul.f32 %v2541, %v2572
    %v2575 = vadd.f32 %v2573, %v2574
    %v2576 = vtanh.pop %v2575
    %v2577 = vmul.f32 %v2571, %v2576
    %s2578 = scalar_lea.vmem [#allocation5], 48
    %2579 = vst [vmem:[%s2578] sm:$0xff] %v2577
    %s2580 = smul.u32 7, 4
    %s2581 = smul.addr %s2580, 8
    %s2582 = scalar_lea.vmem [#allocation4], %s2581
    %v2583 = vld [vmem:[%s2582] sm:$0xff]
    %v2584 = vld [vmem:[%s2582 + $0x8] sm:$0xff]
    %v2585 = vld [vmem:[%s2582 + $0x10] sm:$0xff]
    %v2586 = vld [vmem:[%s2582 + $0x18] sm:$0xff]
    %v2587 = vpack.c.bf16 %v2577, %v2577
    %v2588 = vld [vmem:[#allocation6] sm:$0xff]
    %v2589 = vld [vmem:[#allocation6 + $0x8] sm:$0xff]
    %v2590 = vld [vmem:[#allocation6 + $0x10] sm:$0xff]
    %v2591 = vld [vmem:[#allocation6 + $0x18] sm:$0xff]
    %v2592 = vld [vmem:[#allocation6 + $0x20] sm:$0xff]
    %v2593 = vld [vmem:[#allocation6 + $0x28] sm:$0xff]
    %v2594 = vld [vmem:[#allocation6 + $0x30] sm:$0xff]
    %v2595 = vld [vmem:[#allocation6 + $0x38] sm:$0xff]
    %v2596 = vld [vmem:[#allocation6 + $0x40] sm:$0xff]
    %v2597 = vld [vmem:[#allocation6 + $0x48] sm:$0xff]
    %v2598 = vld [vmem:[#allocation6 + $0x50] sm:$0xff]
    %v2599 = vld [vmem:[#allocation6 + $0x58] sm:$0xff]
    %v2600 = vld [vmem:[#allocation6 + $0x60] sm:$0xff]
    %v2601 = vld [vmem:[#allocation6 + $0x68] sm:$0xff]
    %v2602 = vld [vmem:[#allocation6 + $0x70] sm:$0xff]
    %v2603 = vld [vmem:[#allocation6 + $0x78] sm:$0xff]
    %v2604 = vld [vmem:[#allocation6 + $0x80] sm:$0xff]
    %v2605 = vld [vmem:[#allocation6 + $0x88] sm:$0xff]
    %v2606 = vld [vmem:[#allocation6 + $0x90] sm:$0xff]
    %v2607 = vld [vmem:[#allocation6 + $0x98] sm:$0xff]
    %v2608 = vld [vmem:[#allocation6 + $0xa0] sm:$0xff]
    %v2609 = vld [vmem:[#allocation6 + $0xa8] sm:$0xff]
    %v2610 = vld [vmem:[#allocation6 + $0xb0] sm:$0xff]
    %v2611 = vld [vmem:[#allocation6 + $0xb8] sm:$0xff]
    %v2612 = vld [vmem:[#allocation6 + $0xc0] sm:$0xff]
    %v2613 = vld [vmem:[#allocation6 + $0xc8] sm:$0xff]
    %v2614 = vld [vmem:[#allocation6 + $0xd0] sm:$0xff]
    %v2615 = vld [vmem:[#allocation6 + $0xd8] sm:$0xff]
    %v2616 = vld [vmem:[#allocation6 + $0xe0] sm:$0xff]
    %v2617 = vld [vmem:[#allocation6 + $0xe8] sm:$0xff]
    %v2618 = vld [vmem:[#allocation6 + $0xf0] sm:$0xff]
    %v2619 = vld [vmem:[#allocation6 + $0xf8] sm:$0xff]
    %v2652 = vunpack.c.l.b16 %v2588
    %v2653 = vunpack.c.h.b16 %v2588
    %v2654 = vunpack.c.l.b16 %v2589
    %v2655 = vunpack.c.h.b16 %v2589
    %v2656 = vunpack.c.l.b16 %v2590
    %v2657 = vunpack.c.h.b16 %v2590
    %v2658 = vunpack.c.l.b16 %v2591
    %v2659 = vunpack.c.h.b16 %v2591
    %v2660 = vunpack.c.l.b16 %v2592
    %v2661 = vunpack.c.h.b16 %v2592
    %v2662 = vunpack.c.l.b16 %v2593
    %v2663 = vunpack.c.h.b16 %v2593
    %v2664 = vunpack.c.l.b16 %v2594
    %v2665 = vunpack.c.h.b16 %v2594
    %v2666 = vunpack.c.l.b16 %v2595
    %v2667 = vunpack.c.h.b16 %v2595
    %v2668 = vunpack.c.l.b16 %v2596
    %v2669 = vunpack.c.h.b16 %v2596
    %v2670 = vunpack.c.l.b16 %v2597
    %v2671 = vunpack.c.h.b16 %v2597
    %v2672 = vunpack.c.l.b16 %v2598
    %v2673 = vunpack.c.h.b16 %v2598
    %v2674 = vunpack.c.l.b16 %v2599
    %v2675 = vunpack.c.h.b16 %v2599
    %v2676 = vunpack.c.l.b16 %v2600
    %v2677 = vunpack.c.h.b16 %v2600
    %v2678 = vunpack.c.l.b16 %v2601
    %v2679 = vunpack.c.h.b16 %v2601
    %v2680 = vunpack.c.l.b16 %v2602
    %v2681 = vunpack.c.h.b16 %v2602
    %v2682 = vunpack.c.l.b16 %v2603
    %v2683 = vunpack.c.h.b16 %v2603
    %v2684 = vunpack.c.l.b16 %v2604
    %v2685 = vunpack.c.h.b16 %v2604
    %v2686 = vunpack.c.l.b16 %v2605
    %v2687 = vunpack.c.h.b16 %v2605
    %v2688 = vunpack.c.l.b16 %v2606
    %v2689 = vunpack.c.h.b16 %v2606
    %v2690 = vunpack.c.l.b16 %v2607
    %v2691 = vunpack.c.h.b16 %v2607
    %v2692 = vunpack.c.l.b16 %v2608
    %v2693 = vunpack.c.h.b16 %v2608
    %v2694 = vunpack.c.l.b16 %v2609
    %v2695 = vunpack.c.h.b16 %v2609
    %v2696 = vunpack.c.l.b16 %v2610
    %v2697 = vunpack.c.h.b16 %v2610
    %v2698 = vunpack.c.l.b16 %v2611
    %v2699 = vunpack.c.h.b16 %v2611
    %v2700 = vunpack.c.l.b16 %v2612
    %v2701 = vunpack.c.h.b16 %v2612
    %v2702 = vunpack.c.l.b16 %v2613
    %v2703 = vunpack.c.h.b16 %v2613
    %v2704 = vunpack.c.l.b16 %v2614
    %v2705 = vunpack.c.h.b16 %v2614
    %v2706 = vunpack.c.l.b16 %v2615
    %v2707 = vunpack.c.h.b16 %v2615
    %v2708 = vunpack.c.l.b16 %v2616
    %v2709 = vunpack.c.h.b16 %v2616
    %v2710 = vunpack.c.l.b16 %v2617
    %v2711 = vunpack.c.h.b16 %v2617
    %v2712 = vunpack.c.l.b16 %v2618
    %v2713 = vunpack.c.h.b16 %v2618
    %v2714 = vunpack.c.l.b16 %v2619
    %v2715 = vunpack.c.h.b16 %v2619
    %v2716 = vpack.c.b16 %v2656, %v2652
    %v2717 = vpack.c.b16 %v2657, %v2653
    %v2718 = vpack.c.b16 %v2658, %v2654
    %v2719 = vpack.c.b16 %v2659, %v2655
    %v2720 = vpack.c.b16 %v2664, %v2660
    %v2721 = vpack.c.b16 %v2665, %v2661
    %v2722 = vpack.c.b16 %v2666, %v2662
    %v2723 = vpack.c.b16 %v2667, %v2663
    %v2724 = vpack.c.b16 %v2672, %v2668
    %v2725 = vpack.c.b16 %v2673, %v2669
    %v2726 = vpack.c.b16 %v2674, %v2670
    %v2727 = vpack.c.b16 %v2675, %v2671
    %v2728 = vpack.c.b16 %v2680, %v2676
    %v2729 = vpack.c.b16 %v2681, %v2677
    %v2730 = vpack.c.b16 %v2682, %v2678
    %v2731 = vpack.c.b16 %v2683, %v2679
    %v2732 = vpack.c.b16 %v2688, %v2684
    %v2733 = vpack.c.b16 %v2689, %v2685
    %v2734 = vpack.c.b16 %v2690, %v2686
    %v2735 = vpack.c.b16 %v2691, %v2687
    %v2736 = vpack.c.b16 %v2696, %v2692
    %v2737 = vpack.c.b16 %v2697, %v2693
    %v2738 = vpack.c.b16 %v2698, %v2694
    %v2739 = vpack.c.b16 %v2699, %v2695
    %v2740 = vpack.c.b16 %v2704, %v2700
    %v2741 = vpack.c.b16 %v2705, %v2701
    %v2742 = vpack.c.b16 %v2706, %v2702
    %v2743 = vpack.c.b16 %v2707, %v2703
    %v2744 = vpack.c.b16 %v2712, %v2708
    %v2745 = vpack.c.b16 %v2713, %v2709
    %v2746 = vpack.c.b16 %v2714, %v2710
    %v2747 = vpack.c.b16 %v2715, %v2711
    %2780 = vmatpush.bf16.msra.mxu0 %v2744
    %2781 = vmatpush.bf16.msra.mxu0 %v2740
    %2782 = vmatpush.bf16.msra.mxu0 %v2736
    %2783 = vmatpush.bf16.msra.mxu0 %v2732
    %2784 = vmatpush.bf16.msra.mxu0 %v2728
    %2785 = vmatpush.bf16.msra.mxu0 %v2724
    %2786 = vmatpush.bf16.msra.mxu0 %v2720
    %2787 = vmatpush.bf16.msra.mxu0 %v2716
    %2788 = vmatmul.bf16.gmra.mxu0 %v2587
    %v2789 = vpop.f32.mrf.mxu0
    %v2790 = vadd.f32 0.0, %v2789
    %v2791 = vpop.f32.mrf.mxu0
    %2792 = vdwg.mxu0
    %2793 = vmatpush.bf16.msra.mxu0 %v2745
    %2794 = vmatpush.bf16.msra.mxu0 %v2741
    %2795 = vmatpush.bf16.msra.mxu0 %v2737
    %2796 = vmatpush.bf16.msra.mxu0 %v2733
    %2797 = vmatpush.bf16.msra.mxu0 %v2729
    %2798 = vmatpush.bf16.msra.mxu0 %v2725
    %2799 = vmatpush.bf16.msra.mxu0 %v2721
    %2800 = vmatpush.bf16.msra.mxu0 %v2717
    %2801 = vmatmul.bf16.gmra.mxu0 %v2587
    %v2802 = vpop.f32.mrf.mxu0
    %v2803 = vadd.f32 0.0, %v2802
    %v2804 = vpop.f32.mrf.mxu0
    %2805 = vdwg.mxu0
    %2806 = vmatpush.bf16.msra.mxu0 %v2746
    %2807 = vmatpush.bf16.msra.mxu0 %v2742
    %2808 = vmatpush.bf16.msra.mxu0 %v2738
    %2809 = vmatpush.bf16.msra.mxu0 %v2734
    %2810 = vmatpush.bf16.msra.mxu0 %v2730
    %2811 = vmatpush.bf16.msra.mxu0 %v2726
    %2812 = vmatpush.bf16.msra.mxu0 %v2722
    %2813 = vmatpush.bf16.msra.mxu0 %v2718
    %2814 = vmatmul.bf16.gmra.mxu0 %v2587
    %v2815 = vpop.f32.mrf.mxu0
    %v2816 = vadd.f32 0.0, %v2815
    %v2817 = vpop.f32.mrf.mxu0
    %2818 = vdwg.mxu0
    %2819 = vmatpush.bf16.msra.mxu0 %v2747
    %2820 = vmatpush.bf16.msra.mxu0 %v2743
    %2821 = vmatpush.bf16.msra.mxu0 %v2739
    %2822 = vmatpush.bf16.msra.mxu0 %v2735
    %2823 = vmatpush.bf16.msra.mxu0 %v2731
    %2824 = vmatpush.bf16.msra.mxu0 %v2727
    %2825 = vmatpush.bf16.msra.mxu0 %v2723
    %2826 = vmatpush.bf16.msra.mxu0 %v2719
    %2827 = vmatmul.bf16.gmra.mxu0 %v2587
    %v2828 = vpop.f32.mrf.mxu0
    %v2829 = vadd.f32 0.0, %v2828
    %v2830 = vpop.f32.mrf.mxu0
    %2831 = vdwg.mxu0
    %v2832 = vadd.f32 %v2583, %v2790
    %v2833 = vadd.f32 %v2584, %v2803
    %v2834 = vadd.f32 %v2585, %v2816
    %v2835 = vadd.f32 %v2586, %v2829
    %v2836 = vxor.u32 %v2832, 2147483648
    %v2837 = vxor.u32 %v2833, 2147483648
    %v2838 = vxor.u32 %v2834, 2147483648
    %v2839 = vmul.f32 %v2836, 1.442695
    %v2840 = vpow.pop %v2839
    %v2841 = vmul.f32 %v2837, 1.442695
    %v2842 = vpow.pop %v2841
    %v2843 = vmul.f32 %v2838, 1.442695
    %v2844 = vpow.pop %v2843
    %v2845 = vadd.f32 %v2840, 1.0
    %v2846 = vadd.f32 %v2842, 1.0
    %v2847 = vadd.f32 %v2844, 1.0
    %v2848 = vrcp.pop %v2845
    %v2849 = vmul.f32 %v2845, %v2848
    %v2850 = vsub.f32 1.0, %v2849
    %v2851 = vmul.f32 %v2848, %v2850
    %v2852 = vadd.f32 %v2848, %v2851
    %vm2853 = vweird.f32 %v2845
    %vm2854 = vweird.f32 %v2848
    %vm2855 = vmor %vm2853, %vm2854
    %v2856 = vsel %vm2855, %v2848, %v2852
    %v2857 = vand.u32 2147483647, %v2845
    %vm2858 = vcmp.eq.f32.partialorder %v2857, 8.507059e+37
    %v2859 = vand.u32 %v2845, 2147483648
    %v2860 = vor.u32 1.1754944e-38, %v2859
    %v2861 = vsel %vm2858, %v2860, %v2856
    %v2862 = vmul.f32 1.0, %v2861
    %v2863 = vrcp.pop %v2846
    %v2864 = vmul.f32 %v2846, %v2863
    %v2865 = vsub.f32 1.0, %v2864
    %v2866 = vmul.f32 %v2863, %v2865
    %v2867 = vadd.f32 %v2863, %v2866
    %vm2868 = vweird.f32 %v2846
    %vm2869 = vweird.f32 %v2863
    %vm2870 = vmor %vm2868, %vm2869
    %v2871 = vsel %vm2870, %v2863, %v2867
    %v2872 = vand.u32 2147483647, %v2846
    %vm2873 = vcmp.eq.f32.partialorder %v2872, 8.507059e+37
    %v2874 = vand.u32 %v2846, 2147483648
    %v2875 = vor.u32 1.1754944e-38, %v2874
    %v2876 = vsel %vm2873, %v2875, %v2871
    %v2877 = vmul.f32 1.0, %v2876
    %v2878 = vrcp.pop %v2847
    %v2879 = vmul.f32 %v2847, %v2878
    %v2880 = vsub.f32 1.0, %v2879
    %v2881 = vmul.f32 %v2878, %v2880
    %v2882 = vadd.f32 %v2878, %v2881
    %vm2883 = vweird.f32 %v2847
    %vm2884 = vweird.f32 %v2878
    %vm2885 = vmor %vm2883, %vm2884
    %v2886 = vsel %vm2885, %v2878, %v2882
    %v2887 = vand.u32 2147483647, %v2847
    %vm2888 = vcmp.eq.f32.partialorder %v2887, 8.507059e+37
    %v2889 = vand.u32 %v2847, 2147483648
    %v2890 = vor.u32 1.1754944e-38, %v2889
    %v2891 = vsel %vm2888, %v2890, %v2886
    %v2892 = vmul.f32 1.0, %v2891
    %v2893 = vtanh.pop %v2835
    %v2894 = vmul.f32 %v2877, %v2575
    %v2895 = vmul.f32 %v2862, %v2893
    %v2896 = vadd.f32 %v2894, %v2895
    %v2897 = vtanh.pop %v2896
    %v2898 = vmul.f32 %v2892, %v2897
    %s2899 = scalar_lea.vmem [#allocation5], 56
    %2900 = vst [vmem:[%s2899] sm:$0xff] %v2898
    %2901 = vst [vmem:[#allocation2] sm:$0xff] %v2898
    %2902 = vst [vmem:[#allocation3] sm:$0xff] %v2896
    %v2903 = vld [vmem:[#allocation5] sm:$0xff]
    %v2904 = vld [vmem:[#allocation5 + $0x8] sm:$0xff]
    %v2905 = vld [vmem:[#allocation5 + $0x10] sm:$0xff]
    %v2906 = vld [vmem:[#allocation5 + $0x18] sm:$0xff]
    %v2907 = vld [vmem:[#allocation5 + $0x20] sm:$0xff]
    %v2908 = vld [vmem:[#allocation5 + $0x28] sm:$0xff]
    %v2909 = vld [vmem:[#allocation5 + $0x30] sm:$0xff]
    %v2910 = vld [vmem:[#allocation5 + $0x38] sm:$0xff]
    %v2911 = vpack.c.bf16 %v2904, %v2903
    %v2912 = vpack.c.bf16 %v2906, %v2905
    %v2913 = vpack.c.bf16 %v2908, %v2907
    %v2914 = vpack.c.bf16 %v2910, %v2909
    %v2915 = vld [vmem:[#allocation9] sm:$0xff]
    %v2916 = vld [vmem:[#allocation9 + $0x8] sm:$0xff]
    %v2917 = vld [vmem:[#allocation9 + $0x10] sm:$0xff]
    %v2918 = vld [vmem:[#allocation9 + $0x18] sm:$0xff]
    %v2919 = vld [vmem:[#allocation9 + $0x20] sm:$0xff]
    %v2920 = vld [vmem:[#allocation9 + $0x28] sm:$0xff]
    %v2921 = vld [vmem:[#allocation9 + $0x30] sm:$0xff]
    %v2922 = vld [vmem:[#allocation9 + $0x38] sm:$0xff]
    %v2923 = vld [vmem:[#allocation9 + $0x40] sm:$0xff]
    %v2924 = vld [vmem:[#allocation9 + $0x48] sm:$0xff]
    %v2925 = vld [vmem:[#allocation9 + $0x50] sm:$0xff]
    %v2926 = vld [vmem:[#allocation9 + $0x58] sm:$0xff]
    %v2927 = vld [vmem:[#allocation9 + $0x60] sm:$0xff]
    %v2928 = vld [vmem:[#allocation9 + $0x68] sm:$0xff]
    %v2929 = vld [vmem:[#allocation9 + $0x70] sm:$0xff]
    %v2930 = vld [vmem:[#allocation9 + $0x78] sm:$0xff]
    %v2931 = vld [vmem:[#allocation9 + $0x80] sm:$0xff]
    %v2932 = vld [vmem:[#allocation9 + $0x88] sm:$0xff]
    %v2933 = vld [vmem:[#allocation9 + $0x90] sm:$0xff]
    %v2934 = vld [vmem:[#allocation9 + $0x98] sm:$0xff]
    %v2935 = vld [vmem:[#allocation9 + $0xa0] sm:$0xff]
    %v2936 = vld [vmem:[#allocation9 + $0xa8] sm:$0xff]
    %v2937 = vld [vmem:[#allocation9 + $0xb0] sm:$0xff]
    %v2938 = vld [vmem:[#allocation9 + $0xb8] sm:$0xff]
    %v2939 = vld [vmem:[#allocation9 + $0xc0] sm:$0xff]
    %v2940 = vld [vmem:[#allocation9 + $0xc8] sm:$0xff]
    %v2941 = vld [vmem:[#allocation9 + $0xd0] sm:$0xff]
    %v2942 = vld [vmem:[#allocation9 + $0xd8] sm:$0xff]
    %v2943 = vld [vmem:[#allocation9 + $0xe0] sm:$0xff]
    %v2944 = vld [vmem:[#allocation9 + $0xe8] sm:$0xff]
    %v2945 = vld [vmem:[#allocation9 + $0xf0] sm:$0xff]
    %v2946 = vld [vmem:[#allocation9 + $0xf8] sm:$0xff]
    %v2947 = vld [vmem:[%s6] sm:$0xf]
    %v2949 = vperm.slane %v2947, 0
    %v2950 = vperm.slane %v2947, 1
    %v2951 = vperm.slane %v2947, 2
    %v2952 = vperm.slane %v2947, 3
    %v2989 = vunpack.c.l.b16 %v2915
    %v2990 = vunpack.c.h.b16 %v2915
    %v2991 = vunpack.c.l.b16 %v2916
    %v2992 = vunpack.c.h.b16 %v2916
    %v2993 = vunpack.c.l.b16 %v2917
    %v2994 = vunpack.c.h.b16 %v2917
    %v2995 = vunpack.c.l.b16 %v2918
    %v2996 = vunpack.c.h.b16 %v2918
    %v2997 = vunpack.c.l.b16 %v2919
    %v2998 = vunpack.c.h.b16 %v2919
    %v2999 = vunpack.c.l.b16 %v2920
    %v3000 = vunpack.c.h.b16 %v2920
    %v3001 = vunpack.c.l.b16 %v2921
    %v3002 = vunpack.c.h.b16 %v2921
    %v3003 = vunpack.c.l.b16 %v2922
    %v3004 = vunpack.c.h.b16 %v2922
    %v3005 = vunpack.c.l.b16 %v2923
    %v3006 = vunpack.c.h.b16 %v2923
    %v3007 = vunpack.c.l.b16 %v2924
    %v3008 = vunpack.c.h.b16 %v2924
    %v3009 = vunpack.c.l.b16 %v2925
    %v3010 = vunpack.c.h.b16 %v2925
    %v3011 = vunpack.c.l.b16 %v2926
    %v3012 = vunpack.c.h.b16 %v2926
    %v3013 = vunpack.c.l.b16 %v2927
    %v3014 = vunpack.c.h.b16 %v2927
    %v3015 = vunpack.c.l.b16 %v2928
    %v3016 = vunpack.c.h.b16 %v2928
    %v3017 = vunpack.c.l.b16 %v2929
    %v3018 = vunpack.c.h.b16 %v2929
    %v3019 = vunpack.c.l.b16 %v2930
    %v3020 = vunpack.c.h.b16 %v2930
    %v3021 = vunpack.c.l.b16 %v2931
    %v3022 = vunpack.c.h.b16 %v2931
    %v3023 = vunpack.c.l.b16 %v2932
    %v3024 = vunpack.c.h.b16 %v2932
    %v3025 = vunpack.c.l.b16 %v2933
    %v3026 = vunpack.c.h.b16 %v2933
    %v3027 = vunpack.c.l.b16 %v2934
    %v3028 = vunpack.c.h.b16 %v2934
    %v3029 = vunpack.c.l.b16 %v2935
    %v3030 = vunpack.c.h.b16 %v2935
    %v3031 = vunpack.c.l.b16 %v2936
    %v3032 = vunpack.c.h.b16 %v2936
    %v3033 = vunpack.c.l.b16 %v2937
    %v3034 = vunpack.c.h.b16 %v2937
    %v3035 = vunpack.c.l.b16 %v2938
    %v3036 = vunpack.c.h.b16 %v2938
    %v3037 = vunpack.c.l.b16 %v2939
    %v3038 = vunpack.c.h.b16 %v2939
    %v3039 = vunpack.c.l.b16 %v2940
    %v3040 = vunpack.c.h.b16 %v2940
    %v3041 = vunpack.c.l.b16 %v2941
    %v3042 = vunpack.c.h.b16 %v2941
    %v3043 = vunpack.c.l.b16 %v2942
    %v3044 = vunpack.c.h.b16 %v2942
    %v3045 = vunpack.c.l.b16 %v2943
    %v3046 = vunpack.c.h.b16 %v2943
    %v3047 = vunpack.c.l.b16 %v2944
    %v3048 = vunpack.c.h.b16 %v2944
    %v3049 = vunpack.c.l.b16 %v2945
    %v3050 = vunpack.c.h.b16 %v2945
    %v3051 = vunpack.c.l.b16 %v2946
    %v3052 = vunpack.c.h.b16 %v2946
    %v3053 = vpack.c.b16 %v2993, %v2989
    %v3054 = vpack.c.b16 %v2994, %v2990
    %v3055 = vpack.c.b16 %v2995, %v2991
    %v3056 = vpack.c.b16 %v2996, %v2992
    %v3057 = vpack.c.b16 %v3001, %v2997
    %v3058 = vpack.c.b16 %v3002, %v2998
    %v3059 = vpack.c.b16 %v3003, %v2999
    %v3060 = vpack.c.b16 %v3004, %v3000
    %v3061 = vpack.c.b16 %v3009, %v3005
    %v3062 = vpack.c.b16 %v3010, %v3006
    %v3063 = vpack.c.b16 %v3011, %v3007
    %v3064 = vpack.c.b16 %v3012, %v3008
    %v3065 = vpack.c.b16 %v3017, %v3013
    %v3066 = vpack.c.b16 %v3018, %v3014
    %v3067 = vpack.c.b16 %v3019, %v3015
    %v3068 = vpack.c.b16 %v3020, %v3016
    %v3069 = vpack.c.b16 %v3025, %v3021
    %v3070 = vpack.c.b16 %v3026, %v3022
    %v3071 = vpack.c.b16 %v3027, %v3023
    %v3072 = vpack.c.b16 %v3028, %v3024
    %v3073 = vpack.c.b16 %v3033, %v3029
    %v3074 = vpack.c.b16 %v3034, %v3030
    %v3075 = vpack.c.b16 %v3035, %v3031
    %v3076 = vpack.c.b16 %v3036, %v3032
    %v3077 = vpack.c.b16 %v3041, %v3037
    %v3078 = vpack.c.b16 %v3042, %v3038
    %v3079 = vpack.c.b16 %v3043, %v3039
    %v3080 = vpack.c.b16 %v3044, %v3040
    %v3081 = vpack.c.b16 %v3049, %v3045
    %v3082 = vpack.c.b16 %v3050, %v3046
    %v3083 = vpack.c.b16 %v3051, %v3047
    %v3084 = vpack.c.b16 %v3052, %v3048
    %3117 = vmatpush.bf16.msra.mxu0 %v3081
    %3118 = vmatpush.bf16.msra.mxu0 %v3077
    %3119 = vmatpush.bf16.msra.mxu0 %v3073
    %3120 = vmatpush.bf16.msra.mxu0 %v3069
    %3121 = vmatpush.bf16.msra.mxu0 %v3065
    %3122 = vmatpush.bf16.msra.mxu0 %v3061
    %3123 = vmatpush.bf16.msra.mxu0 %v3057
    %3124 = vmatpush.bf16.msra.mxu0 %v3053
    %3125 = vmatmul.bf16.gmra.mxu0 %v2911
    %v3126 = vpop.f32.mrf.mxu0
    %v3127 = vadd.f32 %v2949, %v3126
    %v3128 = vpop.f32.mrf.mxu0
    %v3129 = vadd.f32 %v2949, %v3128
    %3130 = vmatmul.bf16.gmra.mxu0 %v2912
    %v3131 = vpop.f32.mrf.mxu0
    %v3132 = vadd.f32 %v2949, %v3131
    %v3133 = vpop.f32.mrf.mxu0
    %v3134 = vadd.f32 %v2949, %v3133
    %3135 = vmatmul.bf16.gmra.mxu0 %v2913
    %v3136 = vpop.f32.mrf.mxu0
    %v3137 = vadd.f32 %v2949, %v3136
    %v3138 = vpop.f32.mrf.mxu0
    %v3139 = vadd.f32 %v2949, %v3138
    %3140 = vmatmul.bf16.gmra.mxu0 %v2914
    %v3141 = vpop.f32.mrf.mxu0
    %v3142 = vadd.f32 %v2949, %v3141
    %v3143 = vpop.f32.mrf.mxu0
    %v3144 = vadd.f32 %v2949, %v3143
    %3145 = vdwg.mxu0
    %3146 = vmatpush.bf16.msra.mxu0 %v3082
    %3147 = vmatpush.bf16.msra.mxu0 %v3078
    %3148 = vmatpush.bf16.msra.mxu0 %v3074
    %3149 = vmatpush.bf16.msra.mxu0 %v3070
    %3150 = vmatpush.bf16.msra.mxu0 %v3066
    %3151 = vmatpush.bf16.msra.mxu0 %v3062
    %3152 = vmatpush.bf16.msra.mxu0 %v3058
    %3153 = vmatpush.bf16.msra.mxu0 %v3054
    %3154 = vmatmul.bf16.gmra.mxu0 %v2911
    %v3155 = vpop.f32.mrf.mxu0
    %v3156 = vadd.f32 %v2950, %v3155
    %v3157 = vpop.f32.mrf.mxu0
    %v3158 = vadd.f32 %v2950, %v3157
    %3159 = vmatmul.bf16.gmra.mxu0 %v2912
    %v3160 = vpop.f32.mrf.mxu0
    %v3161 = vadd.f32 %v2950, %v3160
    %v3162 = vpop.f32.mrf.mxu0
    %v3163 = vadd.f32 %v2950, %v3162
    %3164 = vmatmul.bf16.gmra.mxu0 %v2913
    %v3165 = vpop.f32.mrf.mxu0
    %v3166 = vadd.f32 %v2950, %v3165
    %v3167 = vpop.f32.mrf.mxu0
    %v3168 = vadd.f32 %v2950, %v3167
    %3169 = vmatmul.bf16.gmra.mxu0 %v2914
    %v3170 = vpop.f32.mrf.mxu0
    %v3171 = vadd.f32 %v2950, %v3170
    %v3172 = vpop.f32.mrf.mxu0
    %v3173 = vadd.f32 %v2950, %v3172
    %3174 = vdwg.mxu0
    %3175 = vmatpush.bf16.msra.mxu0 %v3083
    %3176 = vmatpush.bf16.msra.mxu0 %v3079
    %3177 = vmatpush.bf16.msra.mxu0 %v3075
    %3178 = vmatpush.bf16.msra.mxu0 %v3071
    %3179 = vmatpush.bf16.msra.mxu0 %v3067
    %3180 = vmatpush.bf16.msra.mxu0 %v3063
    %3181 = vmatpush.bf16.msra.mxu0 %v3059
    %3182 = vmatpush.bf16.msra.mxu0 %v3055
    %3183 = vmatmul.bf16.gmra.mxu0 %v2911
    %v3184 = vpop.f32.mrf.mxu0
    %v3185 = vadd.f32 %v2951, %v3184
    %v3186 = vpop.f32.mrf.mxu0
    %v3187 = vadd.f32 %v2951, %v3186
    %3188 = vmatmul.bf16.gmra.mxu0 %v2912
    %v3189 = vpop.f32.mrf.mxu0
    %v3190 = vadd.f32 %v2951, %v3189
    %v3191 = vpop.f32.mrf.mxu0
    %v3192 = vadd.f32 %v2951, %v3191
    %3193 = vmatmul.bf16.gmra.mxu0 %v2913
    %v3194 = vpop.f32.mrf.mxu0
    %v3195 = vadd.f32 %v2951, %v3194
    %v3196 = vpop.f32.mrf.mxu0
    %v3197 = vadd.f32 %v2951, %v3196
    %3198 = vmatmul.bf16.gmra.mxu0 %v2914
    %v3199 = vpop.f32.mrf.mxu0
    %v3200 = vadd.f32 %v2951, %v3199
    %v3201 = vpop.f32.mrf.mxu0
    %v3202 = vadd.f32 %v2951, %v3201
    %3203 = vdwg.mxu0
    %3204 = vmatpush.bf16.msra.mxu0 %v3084
    %3205 = vmatpush.bf16.msra.mxu0 %v3080
    %3206 = vmatpush.bf16.msra.mxu0 %v3076
    %3207 = vmatpush.bf16.msra.mxu0 %v3072
    %3208 = vmatpush.bf16.msra.mxu0 %v3068
    %3209 = vmatpush.bf16.msra.mxu0 %v3064
    %3210 = vmatpush.bf16.msra.mxu0 %v3060
    %3211 = vmatpush.bf16.msra.mxu0 %v3056
    %3212 = vmatmul.bf16.gmra.mxu0 %v2911
    %v3213 = vpop.f32.mrf.mxu0
    %v3214 = vadd.f32 %v2952, %v3213
    %v3215 = vpop.f32.mrf.mxu0
    %v3216 = vadd.f32 %v2952, %v3215
    %3217 = vmatmul.bf16.gmra.mxu0 %v2912
    %v3218 = vpop.f32.mrf.mxu0
    %v3219 = vadd.f32 %v2952, %v3218
    %v3220 = vpop.f32.mrf.mxu0
    %v3221 = vadd.f32 %v2952, %v3220
    %3222 = vmatmul.bf16.gmra.mxu0 %v2913
    %v3223 = vpop.f32.mrf.mxu0
    %v3224 = vadd.f32 %v2952, %v3223
    %v3225 = vpop.f32.mrf.mxu0
    %v3226 = vadd.f32 %v2952, %v3225
    %3227 = vmatmul.bf16.gmra.mxu0 %v2914
    %v3228 = vpop.f32.mrf.mxu0
    %v3229 = vadd.f32 %v2952, %v3228
    %v3230 = vpop.f32.mrf.mxu0
    %v3231 = vadd.f32 %v2952, %v3230
    %3232 = vdwg.mxu0
    %3233 = vst [vmem:[#allocation4] sm:$0xff] %v3127
    %3234 = vst [vmem:[#allocation4 + $0x8] sm:$0xff] %v3156
    %3235 = vst [vmem:[#allocation4 + $0x10] sm:$0xff] %v3185
    %3236 = vst [vmem:[#allocation4 + $0x18] sm:$0xff] %v3214
    %3237 = vst [vmem:[#allocation4 + $0x20] sm:$0xff] %v3129
    %3238 = vst [vmem:[#allocation4 + $0x28] sm:$0xff] %v3158
    %3239 = vst [vmem:[#allocation4 + $0x30] sm:$0xff] %v3187
    %3240 = vst [vmem:[#allocation4 + $0x38] sm:$0xff] %v3216
    %3241 = vst [vmem:[#allocation4 + $0x40] sm:$0xff] %v3132
    %3242 = vst [vmem:[#allocation4 + $0x48] sm:$0xff] %v3161
    %3243 = vst [vmem:[#allocation4 + $0x50] sm:$0xff] %v3190
    %3244 = vst [vmem:[#allocation4 + $0x58] sm:$0xff] %v3219
    %3245 = vst [vmem:[#allocation4 + $0x60] sm:$0xff] %v3134
    %3246 = vst [vmem:[#allocation4 + $0x68] sm:$0xff] %v3163
    %3247 = vst [vmem:[#allocation4 + $0x70] sm:$0xff] %v3192
    %3248 = vst [vmem:[#allocation4 + $0x78] sm:$0xff] %v3221
    %3249 = vst [vmem:[#allocation4 + $0x80] sm:$0xff] %v3137
    %3250 = vst [vmem:[#allocation4 + $0x88] sm:$0xff] %v3166
    %3251 = vst [vmem:[#allocation4 + $0x90] sm:$0xff] %v3195
    %3252 = vst [vmem:[#allocation4 + $0x98] sm:$0xff] %v3224
    %3253 = vst [vmem:[#allocation4 + $0xa0] sm:$0xff] %v3139
    %3254 = vst [vmem:[#allocation4 + $0xa8] sm:$0xff] %v3168
    %3255 = vst [vmem:[#allocation4 + $0xb0] sm:$0xff] %v3197
    %3256 = vst [vmem:[#allocation4 + $0xb8] sm:$0xff] %v3226
    %3257 = vst [vmem:[#allocation4 + $0xc0] sm:$0xff] %v3142
    %3258 = vst [vmem:[#allocation4 + $0xc8] sm:$0xff] %v3171
    %3259 = vst [vmem:[#allocation4 + $0xd0] sm:$0xff] %v3200
    %3260 = vst [vmem:[#allocation4 + $0xd8] sm:$0xff] %v3229
    %3261 = vst [vmem:[#allocation4 + $0xe0] sm:$0xff] %v3144
    %3262 = vst [vmem:[#allocation4 + $0xe8] sm:$0xff] %v3173
    %3263 = vst [vmem:[#allocation4 + $0xf0] sm:$0xff] %v3202
    %3264 = vst [vmem:[#allocation4 + $0xf8] sm:$0xff] %v3231
    %s3265 = scalar_lea.vmem [#allocation2], 8
    %v3266 = vld [vmem:[%s3265] sm:$0xff]
    %s3267 = scalar_lea.vmem [#allocation3], 8
    %v3268 = vld [vmem:[%s3267] sm:$0xff]
    %v3269 = vld [vmem:[%s336] sm:$0xff]
    %v3270 = vld [vmem:[%s336 + $0x8] sm:$0xff]
    %v3271 = vld [vmem:[%s336 + $0x10] sm:$0xff]
    %v3272 = vld [vmem:[%s336 + $0x18] sm:$0xff]
    %v3273 = vpack.c.bf16 %v3266, %v3266
    %v3274 = vld [vmem:[#allocation11] sm:$0xff]
    %v3275 = vld [vmem:[#allocation11 + $0x8] sm:$0xff]
    %v3276 = vld [vmem:[#allocation11 + $0x10] sm:$0xff]
    %v3277 = vld [vmem:[#allocation11 + $0x18] sm:$0xff]
    %v3278 = vld [vmem:[#allocation11 + $0x20] sm:$0xff]
    %v3279 = vld [vmem:[#allocation11 + $0x28] sm:$0xff]
    %v3280 = vld [vmem:[#allocation11 + $0x30] sm:$0xff]
    %v3281 = vld [vmem:[#allocation11 + $0x38] sm:$0xff]
    %v3282 = vld [vmem:[#allocation11 + $0x40] sm:$0xff]
    %v3283 = vld [vmem:[#allocation11 + $0x48] sm:$0xff]
    %v3284 = vld [vmem:[#allocation11 + $0x50] sm:$0xff]
    %v3285 = vld [vmem:[#allocation11 + $0x58] sm:$0xff]
    %v3286 = vld [vmem:[#allocation11 + $0x60] sm:$0xff]
    %v3287 = vld [vmem:[#allocation11 + $0x68] sm:$0xff]
    %v3288 = vld [vmem:[#allocation11 + $0x70] sm:$0xff]
    %v3289 = vld [vmem:[#allocation11 + $0x78] sm:$0xff]
    %v3290 = vld [vmem:[#allocation11 + $0x80] sm:$0xff]
    %v3291 = vld [vmem:[#allocation11 + $0x88] sm:$0xff]
    %v3292 = vld [vmem:[#allocation11 + $0x90] sm:$0xff]
    %v3293 = vld [vmem:[#allocation11 + $0x98] sm:$0xff]
    %v3294 = vld [vmem:[#allocation11 + $0xa0] sm:$0xff]
    %v3295 = vld [vmem:[#allocation11 + $0xa8] sm:$0xff]
    %v3296 = vld [vmem:[#allocation11 + $0xb0] sm:$0xff]
    %v3297 = vld [vmem:[#allocation11 + $0xb8] sm:$0xff]
    %v3298 = vld [vmem:[#allocation11 + $0xc0] sm:$0xff]
    %v3299 = vld [vmem:[#allocation11 + $0xc8] sm:$0xff]
    %v3300 = vld [vmem:[#allocation11 + $0xd0] sm:$0xff]
    %v3301 = vld [vmem:[#allocation11 + $0xd8] sm:$0xff]
    %v3302 = vld [vmem:[#allocation11 + $0xe0] sm:$0xff]
    %v3303 = vld [vmem:[#allocation11 + $0xe8] sm:$0xff]
    %v3304 = vld [vmem:[#allocation11 + $0xf0] sm:$0xff]
    %v3305 = vld [vmem:[#allocation11 + $0xf8] sm:$0xff]
    %v3338 = vunpack.c.l.b16 %v3274
    %v3339 = vunpack.c.h.b16 %v3274
    %v3340 = vunpack.c.l.b16 %v3275
    %v3341 = vunpack.c.h.b16 %v3275
    %v3342 = vunpack.c.l.b16 %v3276
    %v3343 = vunpack.c.h.b16 %v3276
    %v3344 = vunpack.c.l.b16 %v3277
    %v3345 = vunpack.c.h.b16 %v3277
    %v3346 = vunpack.c.l.b16 %v3278
    %v3347 = vunpack.c.h.b16 %v3278
    %v3348 = vunpack.c.l.b16 %v3279
    %v3349 = vunpack.c.h.b16 %v3279
    %v3350 = vunpack.c.l.b16 %v3280
    %v3351 = vunpack.c.h.b16 %v3280
    %v3352 = vunpack.c.l.b16 %v3281
    %v3353 = vunpack.c.h.b16 %v3281
    %v3354 = vunpack.c.l.b16 %v3282
    %v3355 = vunpack.c.h.b16 %v3282
    %v3356 = vunpack.c.l.b16 %v3283
    %v3357 = vunpack.c.h.b16 %v3283
    %v3358 = vunpack.c.l.b16 %v3284
    %v3359 = vunpack.c.h.b16 %v3284
    %v3360 = vunpack.c.l.b16 %v3285
    %v3361 = vunpack.c.h.b16 %v3285
    %v3362 = vunpack.c.l.b16 %v3286
    %v3363 = vunpack.c.h.b16 %v3286
    %v3364 = vunpack.c.l.b16 %v3287
    %v3365 = vunpack.c.h.b16 %v3287
    %v3366 = vunpack.c.l.b16 %v3288
    %v3367 = vunpack.c.h.b16 %v3288
    %v3368 = vunpack.c.l.b16 %v3289
    %v3369 = vunpack.c.h.b16 %v3289
    %v3370 = vunpack.c.l.b16 %v3290
    %v3371 = vunpack.c.h.b16 %v3290
    %v3372 = vunpack.c.l.b16 %v3291
    %v3373 = vunpack.c.h.b16 %v3291
    %v3374 = vunpack.c.l.b16 %v3292
    %v3375 = vunpack.c.h.b16 %v3292
    %v3376 = vunpack.c.l.b16 %v3293
    %v3377 = vunpack.c.h.b16 %v3293
    %v3378 = vunpack.c.l.b16 %v3294
    %v3379 = vunpack.c.h.b16 %v3294
    %v3380 = vunpack.c.l.b16 %v3295
    %v3381 = vunpack.c.h.b16 %v3295
    %v3382 = vunpack.c.l.b16 %v3296
    %v3383 = vunpack.c.h.b16 %v3296
    %v3384 = vunpack.c.l.b16 %v3297
    %v3385 = vunpack.c.h.b16 %v3297
    %v3386 = vunpack.c.l.b16 %v3298
    %v3387 = vunpack.c.h.b16 %v3298
    %v3388 = vunpack.c.l.b16 %v3299
    %v3389 = vunpack.c.h.b16 %v3299
    %v3390 = vunpack.c.l.b16 %v3300
    %v3391 = vunpack.c.h.b16 %v3300
    %v3392 = vunpack.c.l.b16 %v3301
    %v3393 = vunpack.c.h.b16 %v3301
    %v3394 = vunpack.c.l.b16 %v3302
    %v3395 = vunpack.c.h.b16 %v3302
    %v3396 = vunpack.c.l.b16 %v3303
    %v3397 = vunpack.c.h.b16 %v3303
    %v3398 = vunpack.c.l.b16 %v3304
    %v3399 = vunpack.c.h.b16 %v3304
    %v3400 = vunpack.c.l.b16 %v3305
    %v3401 = vunpack.c.h.b16 %v3305
    %v3402 = vpack.c.b16 %v3342, %v3338
    %v3403 = vpack.c.b16 %v3343, %v3339
    %v3404 = vpack.c.b16 %v3344, %v3340
    %v3405 = vpack.c.b16 %v3345, %v3341
    %v3406 = vpack.c.b16 %v3350, %v3346
    %v3407 = vpack.c.b16 %v3351, %v3347
    %v3408 = vpack.c.b16 %v3352, %v3348
    %v3409 = vpack.c.b16 %v3353, %v3349
    %v3410 = vpack.c.b16 %v3358, %v3354
    %v3411 = vpack.c.b16 %v3359, %v3355
    %v3412 = vpack.c.b16 %v3360, %v3356
    %v3413 = vpack.c.b16 %v3361, %v3357
    %v3414 = vpack.c.b16 %v3366, %v3362
    %v3415 = vpack.c.b16 %v3367, %v3363
    %v3416 = vpack.c.b16 %v3368, %v3364
    %v3417 = vpack.c.b16 %v3369, %v3365
    %v3418 = vpack.c.b16 %v3374, %v3370
    %v3419 = vpack.c.b16 %v3375, %v3371
    %v3420 = vpack.c.b16 %v3376, %v3372
    %v3421 = vpack.c.b16 %v3377, %v3373
    %v3422 = vpack.c.b16 %v3382, %v3378
    %v3423 = vpack.c.b16 %v3383, %v3379
    %v3424 = vpack.c.b16 %v3384, %v3380
    %v3425 = vpack.c.b16 %v3385, %v3381
    %v3426 = vpack.c.b16 %v3390, %v3386
    %v3427 = vpack.c.b16 %v3391, %v3387
    %v3428 = vpack.c.b16 %v3392, %v3388
    %v3429 = vpack.c.b16 %v3393, %v3389
    %v3430 = vpack.c.b16 %v3398, %v3394
    %v3431 = vpack.c.b16 %v3399, %v3395
    %v3432 = vpack.c.b16 %v3400, %v3396
    %v3433 = vpack.c.b16 %v3401, %v3397
    %3466 = vmatpush.bf16.msra.mxu0 %v3430
    %3467 = vmatpush.bf16.msra.mxu0 %v3426
    %3468 = vmatpush.bf16.msra.mxu0 %v3422
    %3469 = vmatpush.bf16.msra.mxu0 %v3418
    %3470 = vmatpush.bf16.msra.mxu0 %v3414
    %3471 = vmatpush.bf16.msra.mxu0 %v3410
    %3472 = vmatpush.bf16.msra.mxu0 %v3406
    %3473 = vmatpush.bf16.msra.mxu0 %v3402
    %3474 = vmatmul.bf16.gmra.mxu0 %v3273
    %v3475 = vpop.f32.mrf.mxu0
    %v3476 = vadd.f32 0.0, %v3475
    %v3477 = vpop.f32.mrf.mxu0
    %3478 = vdwg.mxu0
    %3479 = vmatpush.bf16.msra.mxu0 %v3431
    %3480 = vmatpush.bf16.msra.mxu0 %v3427
    %3481 = vmatpush.bf16.msra.mxu0 %v3423
    %3482 = vmatpush.bf16.msra.mxu0 %v3419
    %3483 = vmatpush.bf16.msra.mxu0 %v3415
    %3484 = vmatpush.bf16.msra.mxu0 %v3411
    %3485 = vmatpush.bf16.msra.mxu0 %v3407
    %3486 = vmatpush.bf16.msra.mxu0 %v3403
    %3487 = vmatmul.bf16.gmra.mxu0 %v3273
    %v3488 = vpop.f32.mrf.mxu0
    %v3489 = vadd.f32 0.0, %v3488
    %v3490 = vpop.f32.mrf.mxu0
    %3491 = vdwg.mxu0
    %3492 = vmatpush.bf16.msra.mxu0 %v3432
    %3493 = vmatpush.bf16.msra.mxu0 %v3428
    %3494 = vmatpush.bf16.msra.mxu0 %v3424
    %3495 = vmatpush.bf16.msra.mxu0 %v3420
    %3496 = vmatpush.bf16.msra.mxu0 %v3416
    %3497 = vmatpush.bf16.msra.mxu0 %v3412
    %3498 = vmatpush.bf16.msra.mxu0 %v3408
    %3499 = vmatpush.bf16.msra.mxu0 %v3404
    %3500 = vmatmul.bf16.gmra.mxu0 %v3273
    %v3501 = vpop.f32.mrf.mxu0
    %v3502 = vadd.f32 0.0, %v3501
    %v3503 = vpop.f32.mrf.mxu0
    %3504 = vdwg.mxu0
    %3505 = vmatpush.bf16.msra.mxu0 %v3433
    %3506 = vmatpush.bf16.msra.mxu0 %v3429
    %3507 = vmatpush.bf16.msra.mxu0 %v3425
    %3508 = vmatpush.bf16.msra.mxu0 %v3421
    %3509 = vmatpush.bf16.msra.mxu0 %v3417
    %3510 = vmatpush.bf16.msra.mxu0 %v3413
    %3511 = vmatpush.bf16.msra.mxu0 %v3409
    %3512 = vmatpush.bf16.msra.mxu0 %v3405
    %3513 = vmatmul.bf16.gmra.mxu0 %v3273
    %v3514 = vpop.f32.mrf.mxu0
    %v3515 = vadd.f32 0.0, %v3514
    %v3516 = vpop.f32.mrf.mxu0
    %3517 = vdwg.mxu0
    %v3518 = vadd.f32 %v3269, %v3476
    %v3519 = vadd.f32 %v3270, %v3489
    %v3520 = vadd.f32 %v3271, %v3502
    %v3521 = vadd.f32 %v3272, %v3515
    %v3522 = vxor.u32 %v3518, 2147483648
    %v3523 = vxor.u32 %v3519, 2147483648
    %v3524 = vxor.u32 %v3520, 2147483648
    %v3525 = vmul.f32 %v3522, 1.442695
    %v3526 = vpow.pop %v3525
    %v3527 = vmul.f32 %v3523, 1.442695
    %v3528 = vpow.pop %v3527
    %v3529 = vmul.f32 %v3524, 1.442695
    %v3530 = vpow.pop %v3529
    %v3531 = vadd.f32 %v3526, 1.0
    %v3532 = vadd.f32 %v3528, 1.0
    %v3533 = vadd.f32 %v3530, 1.0
    %v3534 = vrcp.pop %v3531
    %v3535 = vmul.f32 %v3531, %v3534
    %v3536 = vsub.f32 1.0, %v3535
    %v3537 = vmul.f32 %v3534, %v3536
    %v3538 = vadd.f32 %v3534, %v3537
    %vm3539 = vweird.f32 %v3531
    %vm3540 = vweird.f32 %v3534
    %vm3541 = vmor %vm3539, %vm3540
    %v3542 = vsel %vm3541, %v3534, %v3538
    %v3543 = vand.u32 2147483647, %v3531
    %vm3544 = vcmp.eq.f32.partialorder %v3543, 8.507059e+37
    %v3545 = vand.u32 %v3531, 2147483648
    %v3546 = vor.u32 1.1754944e-38, %v3545
    %v3547 = vsel %vm3544, %v3546, %v3542
    %v3548 = vmul.f32 1.0, %v3547
    %v3549 = vrcp.pop %v3532
    %v3550 = vmul.f32 %v3532, %v3549
    %v3551 = vsub.f32 1.0, %v3550
    %v3552 = vmul.f32 %v3549, %v3551
    %v3553 = vadd.f32 %v3549, %v3552
    %vm3554 = vweird.f32 %v3532
    %vm3555 = vweird.f32 %v3549
    %vm3556 = vmor %vm3554, %vm3555
    %v3557 = vsel %vm3556, %v3549, %v3553
    %v3558 = vand.u32 2147483647, %v3532
    %vm3559 = vcmp.eq.f32.partialorder %v3558, 8.507059e+37
    %v3560 = vand.u32 %v3532, 2147483648
    %v3561 = vor.u32 1.1754944e-38, %v3560
    %v3562 = vsel %vm3559, %v3561, %v3557
    %v3563 = vmul.f32 1.0, %v3562
    %v3564 = vrcp.pop %v3533
    %v3565 = vmul.f32 %v3533, %v3564
    %v3566 = vsub.f32 1.0, %v3565
    %v3567 = vmul.f32 %v3564, %v3566
    %v3568 = vadd.f32 %v3564, %v3567
    %vm3569 = vweird.f32 %v3533
    %vm3570 = vweird.f32 %v3564
    %vm3571 = vmor %vm3569, %vm3570
    %v3572 = vsel %vm3571, %v3564, %v3568
    %v3573 = vand.u32 2147483647, %v3533
    %vm3574 = vcmp.eq.f32.partialorder %v3573, 8.507059e+37
    %v3575 = vand.u32 %v3533, 2147483648
    %v3576 = vor.u32 1.1754944e-38, %v3575
    %v3577 = vsel %vm3574, %v3576, %v3572
    %v3578 = vmul.f32 1.0, %v3577
    %v3579 = vtanh.pop %v3521
    %v3580 = vmul.f32 %v3563, %v3268
    %v3581 = vmul.f32 %v3548, %v3579
    %v3582 = vadd.f32 %v3580, %v3581
    %v3583 = vtanh.pop %v3582
    %v3584 = vmul.f32 %v3578, %v3583
    %v3585 = vld [vmem:[%s656] sm:$0xff]
    %v3586 = vld [vmem:[%s656 + $0x8] sm:$0xff]
    %v3587 = vld [vmem:[%s656 + $0x10] sm:$0xff]
    %v3588 = vld [vmem:[%s656 + $0x18] sm:$0xff]
    %v3589 = vpack.c.bf16 %v3584, %v3584
    %3590 = vmatpush.bf16.msra.mxu0 %v3430
    %3591 = vmatpush.bf16.msra.mxu0 %v3426
    %3592 = vmatpush.bf16.msra.mxu0 %v3422
    %3593 = vmatpush.bf16.msra.mxu0 %v3418
    %3594 = vmatpush.bf16.msra.mxu0 %v3414
    %3595 = vmatpush.bf16.msra.mxu0 %v3410
    %3596 = vmatpush.bf16.msra.mxu0 %v3406
    %3597 = vmatpush.bf16.msra.mxu0 %v3402
    %3598 = vmatmul.bf16.gmra.mxu0 %v3589
    %v3599 = vpop.f32.mrf.mxu0
    %v3600 = vadd.f32 0.0, %v3599
    %v3601 = vpop.f32.mrf.mxu0
    %3602 = vdwg.mxu0
    %3603 = vmatpush.bf16.msra.mxu0 %v3431
    %3604 = vmatpush.bf16.msra.mxu0 %v3427
    %3605 = vmatpush.bf16.msra.mxu0 %v3423
    %3606 = vmatpush.bf16.msra.mxu0 %v3419
    %3607 = vmatpush.bf16.msra.mxu0 %v3415
    %3608 = vmatpush.bf16.msra.mxu0 %v3411
    %3609 = vmatpush.bf16.msra.mxu0 %v3407
    %3610 = vmatpush.bf16.msra.mxu0 %v3403
    %3611 = vmatmul.bf16.gmra.mxu0 %v3589
    %v3612 = vpop.f32.mrf.mxu0
    %v3613 = vadd.f32 0.0, %v3612
    %v3614 = vpop.f32.mrf.mxu0
    %3615 = vdwg.mxu0
    %3616 = vmatpush.bf16.msra.mxu0 %v3432
    %3617 = vmatpush.bf16.msra.mxu0 %v3428
    %3618 = vmatpush.bf16.msra.mxu0 %v3424
    %3619 = vmatpush.bf16.msra.mxu0 %v3420
    %3620 = vmatpush.bf16.msra.mxu0 %v3416
    %3621 = vmatpush.bf16.msra.mxu0 %v3412
    %3622 = vmatpush.bf16.msra.mxu0 %v3408
    %3623 = vmatpush.bf16.msra.mxu0 %v3404
    %3624 = vmatmul.bf16.gmra.mxu0 %v3589
    %v3625 = vpop.f32.mrf.mxu0
    %v3626 = vadd.f32 0.0, %v3625
    %v3627 = vpop.f32.mrf.mxu0
    %3628 = vdwg.mxu0
    %3629 = vmatpush.bf16.msra.mxu0 %v3433
    %3630 = vmatpush.bf16.msra.mxu0 %v3429
    %3631 = vmatpush.bf16.msra.mxu0 %v3425
    %3632 = vmatpush.bf16.msra.mxu0 %v3421
    %3633 = vmatpush.bf16.msra.mxu0 %v3417
    %3634 = vmatpush.bf16.msra.mxu0 %v3413
    %3635 = vmatpush.bf16.msra.mxu0 %v3409
    %3636 = vmatpush.bf16.msra.mxu0 %v3405
    %3637 = vmatmul.bf16.gmra.mxu0 %v3589
    %v3638 = vpop.f32.mrf.mxu0
    %v3639 = vadd.f32 0.0, %v3638
    %v3640 = vpop.f32.mrf.mxu0
    %3641 = vdwg.mxu0
    %v3642 = vadd.f32 %v3585, %v3600
    %v3643 = vadd.f32 %v3586, %v3613
    %v3644 = vadd.f32 %v3587, %v3626
    %v3645 = vadd.f32 %v3588, %v3639
    %v3646 = vxor.u32 %v3642, 2147483648
    %v3647 = vxor.u32 %v3643, 2147483648
    %v3648 = vxor.u32 %v3644, 2147483648
    %v3649 = vmul.f32 %v3646, 1.442695
    %v3650 = vpow.pop %v3649
    %v3651 = vmul.f32 %v3647, 1.442695
    %v3652 = vpow.pop %v3651
    %v3653 = vmul.f32 %v3648, 1.442695
    %v3654 = vpow.pop %v3653
    %v3655 = vadd.f32 %v3650, 1.0
    %v3656 = vadd.f32 %v3652, 1.0
    %v3657 = vadd.f32 %v3654, 1.0
    %v3658 = vrcp.pop %v3655
    %v3659 = vmul.f32 %v3655, %v3658
    %v3660 = vsub.f32 1.0, %v3659
    %v3661 = vmul.f32 %v3658, %v3660
    %v3662 = vadd.f32 %v3658, %v3661
    %vm3663 = vweird.f32 %v3655
    %vm3664 = vweird.f32 %v3658
    %vm3665 = vmor %vm3663, %vm3664
    %v3666 = vsel %vm3665, %v3658, %v3662
    %v3667 = vand.u32 2147483647, %v3655
    %vm3668 = vcmp.eq.f32.partialorder %v3667, 8.507059e+37
    %v3669 = vand.u32 %v3655, 2147483648
    %v3670 = vor.u32 1.1754944e-38, %v3669
    %v3671 = vsel %vm3668, %v3670, %v3666
    %v3672 = vmul.f32 1.0, %v3671
    %v3673 = vrcp.pop %v3656
    %v3674 = vmul.f32 %v3656, %v3673
    %v3675 = vsub.f32 1.0, %v3674
    %v3676 = vmul.f32 %v3673, %v3675
    %v3677 = vadd.f32 %v3673, %v3676
    %vm3678 = vweird.f32 %v3656
    %vm3679 = vweird.f32 %v3673
    %vm3680 = vmor %vm3678, %vm3679
    %v3681 = vsel %vm3680, %v3673, %v3677
    %v3682 = vand.u32 2147483647, %v3656
    %vm3683 = vcmp.eq.f32.partialorder %v3682, 8.507059e+37
    %v3684 = vand.u32 %v3656, 2147483648
    %v3685 = vor.u32 1.1754944e-38, %v3684
    %v3686 = vsel %vm3683, %v3685, %v3681
    %v3687 = vmul.f32 1.0, %v3686
    %v3688 = vrcp.pop %v3657
    %v3689 = vmul.f32 %v3657, %v3688
    %v3690 = vsub.f32 1.0, %v3689
    %v3691 = vmul.f32 %v3688, %v3690
    %v3692 = vadd.f32 %v3688, %v3691
    %vm3693 = vweird.f32 %v3657
    %vm3694 = vweird.f32 %v3688
    %vm3695 = vmor %vm3693, %vm3694
    %v3696 = vsel %vm3695, %v3688, %v3692
    %v3697 = vand.u32 2147483647, %v3657
    %vm3698 = vcmp.eq.f32.partialorder %v3697, 8.507059e+37
    %v3699 = vand.u32 %v3657, 2147483648
    %v3700 = vor.u32 1.1754944e-38, %v3699
    %v3701 = vsel %vm3698, %v3700, %v3696
    %v3702 = vmul.f32 1.0, %v3701
    %v3703 = vtanh.pop %v3645
    %v3704 = vmul.f32 %v3687, %v3582
    %v3705 = vmul.f32 %v3672, %v3703
    %v3706 = vadd.f32 %v3704, %v3705
    %v3707 = vtanh.pop %v3706
    %v3708 = vmul.f32 %v3702, %v3707
    %v3709 = vld [vmem:[%s977] sm:$0xff]
    %v3710 = vld [vmem:[%s977 + $0x8] sm:$0xff]
    %v3711 = vld [vmem:[%s977 + $0x10] sm:$0xff]
    %v3712 = vld [vmem:[%s977 + $0x18] sm:$0xff]
    %v3713 = vpack.c.bf16 %v3708, %v3708
    %3714 = vmatpush.bf16.msra.mxu0 %v3430
    %3715 = vmatpush.bf16.msra.mxu0 %v3426
    %3716 = vmatpush.bf16.msra.mxu0 %v3422
    %3717 = vmatpush.bf16.msra.mxu0 %v3418
    %3718 = vmatpush.bf16.msra.mxu0 %v3414
    %3719 = vmatpush.bf16.msra.mxu0 %v3410
    %3720 = vmatpush.bf16.msra.mxu0 %v3406
    %3721 = vmatpush.bf16.msra.mxu0 %v3402
    %3722 = vmatmul.bf16.gmra.mxu0 %v3713
    %v3723 = vpop.f32.mrf.mxu0
    %v3724 = vadd.f32 0.0, %v3723
    %v3725 = vpop.f32.mrf.mxu0
    %3726 = vdwg.mxu0
    %3727 = vmatpush.bf16.msra.mxu0 %v3431
    %3728 = vmatpush.bf16.msra.mxu0 %v3427
    %3729 = vmatpush.bf16.msra.mxu0 %v3423
    %3730 = vmatpush.bf16.msra.mxu0 %v3419
    %3731 = vmatpush.bf16.msra.mxu0 %v3415
    %3732 = vmatpush.bf16.msra.mxu0 %v3411
    %3733 = vmatpush.bf16.msra.mxu0 %v3407
    %3734 = vmatpush.bf16.msra.mxu0 %v3403
    %3735 = vmatmul.bf16.gmra.mxu0 %v3713
    %v3736 = vpop.f32.mrf.mxu0
    %v3737 = vadd.f32 0.0, %v3736
    %v3738 = vpop.f32.mrf.mxu0
    %3739 = vdwg.mxu0
    %3740 = vmatpush.bf16.msra.mxu0 %v3432
    %3741 = vmatpush.bf16.msra.mxu0 %v3428
    %3742 = vmatpush.bf16.msra.mxu0 %v3424
    %3743 = vmatpush.bf16.msra.mxu0 %v3420
    %3744 = vmatpush.bf16.msra.mxu0 %v3416
    %3745 = vmatpush.bf16.msra.mxu0 %v3412
    %3746 = vmatpush.bf16.msra.mxu0 %v3408
    %3747 = vmatpush.bf16.msra.mxu0 %v3404
    %3748 = vmatmul.bf16.gmra.mxu0 %v3713
    %v3749 = vpop.f32.mrf.mxu0
    %v3750 = vadd.f32 0.0, %v3749
    %v3751 = vpop.f32.mrf.mxu0
    %3752 = vdwg.mxu0
    %3753 = vmatpush.bf16.msra.mxu0 %v3433
    %3754 = vmatpush.bf16.msra.mxu0 %v3429
    %3755 = vmatpush.bf16.msra.mxu0 %v3425
    %3756 = vmatpush.bf16.msra.mxu0 %v3421
    %3757 = vmatpush.bf16.msra.mxu0 %v3417
    %3758 = vmatpush.bf16.msra.mxu0 %v3413
    %3759 = vmatpush.bf16.msra.mxu0 %v3409
    %3760 = vmatpush.bf16.msra.mxu0 %v3405
    %3761 = vmatmul.bf16.gmra.mxu0 %v3713
    %v3762 = vpop.f32.mrf.mxu0
    %v3763 = vadd.f32 0.0, %v3762
    %v3764 = vpop.f32.mrf.mxu0
    %3765 = vdwg.mxu0
    %v3766 = vadd.f32 %v3709, %v3724
    %v3767 = vadd.f32 %v3710, %v3737
    %v3768 = vadd.f32 %v3711, %v3750
    %v3769 = vadd.f32 %v3712, %v3763
    %v3770 = vxor.u32 %v3766, 2147483648
    %v3771 = vxor.u32 %v3767, 2147483648
    %v3772 = vxor.u32 %v3768, 2147483648
    %v3773 = vmul.f32 %v3770, 1.442695
    %v3774 = vpow.pop %v3773
    %v3775 = vmul.f32 %v3771, 1.442695
    %v3776 = vpow.pop %v3775
    %v3777 = vmul.f32 %v3772, 1.442695
    %v3778 = vpow.pop %v3777
    %v3779 = vadd.f32 %v3774, 1.0
    %v3780 = vadd.f32 %v3776, 1.0
    %v3781 = vadd.f32 %v3778, 1.0
    %v3782 = vrcp.pop %v3779
    %v3783 = vmul.f32 %v3779, %v3782
    %v3784 = vsub.f32 1.0, %v3783
    %v3785 = vmul.f32 %v3782, %v3784
    %v3786 = vadd.f32 %v3782, %v3785
    %vm3787 = vweird.f32 %v3779
    %vm3788 = vweird.f32 %v3782
    %vm3789 = vmor %vm3787, %vm3788
    %v3790 = vsel %vm3789, %v3782, %v3786
    %v3791 = vand.u32 2147483647, %v3779
    %vm3792 = vcmp.eq.f32.partialorder %v3791, 8.507059e+37
    %v3793 = vand.u32 %v3779, 2147483648
    %v3794 = vor.u32 1.1754944e-38, %v3793
    %v3795 = vsel %vm3792, %v3794, %v3790
    %v3796 = vmul.f32 1.0, %v3795
    %v3797 = vrcp.pop %v3780
    %v3798 = vmul.f32 %v3780, %v3797
    %v3799 = vsub.f32 1.0, %v3798
    %v3800 = vmul.f32 %v3797, %v3799
    %v3801 = vadd.f32 %v3797, %v3800
    %vm3802 = vweird.f32 %v3780
    %vm3803 = vweird.f32 %v3797
    %vm3804 = vmor %vm3802, %vm3803
    %v3805 = vsel %vm3804, %v3797, %v3801
    %v3806 = vand.u32 2147483647, %v3780
    %vm3807 = vcmp.eq.f32.partialorder %v3806, 8.507059e+37
    %v3808 = vand.u32 %v3780, 2147483648
    %v3809 = vor.u32 1.1754944e-38, %v3808
    %v3810 = vsel %vm3807, %v3809, %v3805
    %v3811 = vmul.f32 1.0, %v3810
    %v3812 = vrcp.pop %v3781
    %v3813 = vmul.f32 %v3781, %v3812
    %v3814 = vsub.f32 1.0, %v3813
    %v3815 = vmul.f32 %v3812, %v3814
    %v3816 = vadd.f32 %v3812, %v3815
    %vm3817 = vweird.f32 %v3781
    %vm3818 = vweird.f32 %v3812
    %vm3819 = vmor %vm3817, %vm3818
    %v3820 = vsel %vm3819, %v3812, %v3816
    %v3821 = vand.u32 2147483647, %v3781
    %vm3822 = vcmp.eq.f32.partialorder %v3821, 8.507059e+37
    %v3823 = vand.u32 %v3781, 2147483648
    %v3824 = vor.u32 1.1754944e-38, %v3823
    %v3825 = vsel %vm3822, %v3824, %v3820
    %v3826 = vmul.f32 1.0, %v3825
    %v3827 = vtanh.pop %v3769
    %v3828 = vmul.f32 %v3811, %v3706
    %v3829 = vmul.f32 %v3796, %v3827
    %v3830 = vadd.f32 %v3828, %v3829
    %v3831 = vtanh.pop %v3830
    %v3832 = vmul.f32 %v3826, %v3831
    %v3833 = vld [vmem:[%s1298] sm:$0xff]
    %v3834 = vld [vmem:[%s1298 + $0x8] sm:$0xff]
    %v3835 = vld [vmem:[%s1298 + $0x10] sm:$0xff]
    %v3836 = vld [vmem:[%s1298 + $0x18] sm:$0xff]
    %v3837 = vpack.c.bf16 %v3832, %v3832
    %3838 = vmatpush.bf16.msra.mxu0 %v3430
    %3839 = vmatpush.bf16.msra.mxu0 %v3426
    %3840 = vmatpush.bf16.msra.mxu0 %v3422
    %3841 = vmatpush.bf16.msra.mxu0 %v3418
    %3842 = vmatpush.bf16.msra.mxu0 %v3414
    %3843 = vmatpush.bf16.msra.mxu0 %v3410
    %3844 = vmatpush.bf16.msra.mxu0 %v3406
    %3845 = vmatpush.bf16.msra.mxu0 %v3402
    %3846 = vmatmul.bf16.gmra.mxu0 %v3837
    %v3847 = vpop.f32.mrf.mxu0
    %v3848 = vadd.f32 0.0, %v3847
    %v3849 = vpop.f32.mrf.mxu0
    %3850 = vdwg.mxu0
    %3851 = vmatpush.bf16.msra.mxu0 %v3431
    %3852 = vmatpush.bf16.msra.mxu0 %v3427
    %3853 = vmatpush.bf16.msra.mxu0 %v3423
    %3854 = vmatpush.bf16.msra.mxu0 %v3419
    %3855 = vmatpush.bf16.msra.mxu0 %v3415
    %3856 = vmatpush.bf16.msra.mxu0 %v3411
    %3857 = vmatpush.bf16.msra.mxu0 %v3407
    %3858 = vmatpush.bf16.msra.mxu0 %v3403
    %3859 = vmatmul.bf16.gmra.mxu0 %v3837
    %v3860 = vpop.f32.mrf.mxu0
    %v3861 = vadd.f32 0.0, %v3860
    %v3862 = vpop.f32.mrf.mxu0
    %3863 = vdwg.mxu0
    %3864 = vmatpush.bf16.msra.mxu0 %v3432
    %3865 = vmatpush.bf16.msra.mxu0 %v3428
    %3866 = vmatpush.bf16.msra.mxu0 %v3424
    %3867 = vmatpush.bf16.msra.mxu0 %v3420
    %3868 = vmatpush.bf16.msra.mxu0 %v3416
    %3869 = vmatpush.bf16.msra.mxu0 %v3412
    %3870 = vmatpush.bf16.msra.mxu0 %v3408
    %3871 = vmatpush.bf16.msra.mxu0 %v3404
    %3872 = vmatmul.bf16.gmra.mxu0 %v3837
    %v3873 = vpop.f32.mrf.mxu0
    %v3874 = vadd.f32 0.0, %v3873
    %v3875 = vpop.f32.mrf.mxu0
    %3876 = vdwg.mxu0
    %3877 = vmatpush.bf16.msra.mxu0 %v3433
    %3878 = vmatpush.bf16.msra.mxu0 %v3429
    %3879 = vmatpush.bf16.msra.mxu0 %v3425
    %3880 = vmatpush.bf16.msra.mxu0 %v3421
    %3881 = vmatpush.bf16.msra.mxu0 %v3417
    %3882 = vmatpush.bf16.msra.mxu0 %v3413
    %3883 = vmatpush.bf16.msra.mxu0 %v3409
    %3884 = vmatpush.bf16.msra.mxu0 %v3405
    %3885 = vmatmul.bf16.gmra.mxu0 %v3837
    %v3886 = vpop.f32.mrf.mxu0
    %v3887 = vadd.f32 0.0, %v3886
    %v3888 = vpop.f32.mrf.mxu0
    %3889 = vdwg.mxu0
    %v3890 = vadd.f32 %v3833, %v3848
    %v3891 = vadd.f32 %v3834, %v3861
    %v3892 = vadd.f32 %v3835, %v3874
    %v3893 = vadd.f32 %v3836, %v3887
    %v3894 = vxor.u32 %v3890, 2147483648
    %v3895 = vxor.u32 %v3891, 2147483648
    %v3896 = vxor.u32 %v3892, 2147483648
    %v3897 = vmul.f32 %v3894, 1.442695
    %v3898 = vpow.pop %v3897
    %v3899 = vmul.f32 %v3895, 1.442695
    %v3900 = vpow.pop %v3899
    %v3901 = vmul.f32 %v3896, 1.442695
    %v3902 = vpow.pop %v3901
    %v3903 = vadd.f32 %v3898, 1.0
    %v3904 = vadd.f32 %v3900, 1.0
    %v3905 = vadd.f32 %v3902, 1.0
    %v3906 = vrcp.pop %v3903
    %v3907 = vmul.f32 %v3903, %v3906
    %v3908 = vsub.f32 1.0, %v3907
    %v3909 = vmul.f32 %v3906, %v3908
    %v3910 = vadd.f32 %v3906, %v3909
    %vm3911 = vweird.f32 %v3903
    %vm3912 = vweird.f32 %v3906
    %vm3913 = vmor %vm3911, %vm3912
    %v3914 = vsel %vm3913, %v3906, %v3910
    %v3915 = vand.u32 2147483647, %v3903
    %vm3916 = vcmp.eq.f32.partialorder %v3915, 8.507059e+37
    %v3917 = vand.u32 %v3903, 2147483648
    %v3918 = vor.u32 1.1754944e-38, %v3917
    %v3919 = vsel %vm3916, %v3918, %v3914
    %v3920 = vmul.f32 1.0, %v3919
    %v3921 = vrcp.pop %v3904
    %v3922 = vmul.f32 %v3904, %v3921
    %v3923 = vsub.f32 1.0, %v3922
    %v3924 = vmul.f32 %v3921, %v3923
    %v3925 = vadd.f32 %v3921, %v3924
    %vm3926 = vweird.f32 %v3904
    %vm3927 = vweird.f32 %v3921
    %vm3928 = vmor %vm3926, %vm3927
    %v3929 = vsel %vm3928, %v3921, %v3925
    %v3930 = vand.u32 2147483647, %v3904
    %vm3931 = vcmp.eq.f32.partialorder %v3930, 8.507059e+37
    %v3932 = vand.u32 %v3904, 2147483648
    %v3933 = vor.u32 1.1754944e-38, %v3932
    %v3934 = vsel %vm3931, %v3933, %v3929
    %v3935 = vmul.f32 1.0, %v3934
    %v3936 = vrcp.pop %v3905
    %v3937 = vmul.f32 %v3905, %v3936
    %v3938 = vsub.f32 1.0, %v3937
    %v3939 = vmul.f32 %v3936, %v3938
    %v3940 = vadd.f32 %v3936, %v3939
    %vm3941 = vweird.f32 %v3905
    %vm3942 = vweird.f32 %v3936
    %vm3943 = vmor %vm3941, %vm3942
    %v3944 = vsel %vm3943, %v3936, %v3940
    %v3945 = vand.u32 2147483647, %v3905
    %vm3946 = vcmp.eq.f32.partialorder %v3945, 8.507059e+37
    %v3947 = vand.u32 %v3905, 2147483648
    %v3948 = vor.u32 1.1754944e-38, %v3947
    %v3949 = vsel %vm3946, %v3948, %v3944
    %v3950 = vmul.f32 1.0, %v3949
    %v3951 = vtanh.pop %v3893
    %v3952 = vmul.f32 %v3935, %v3830
    %v3953 = vmul.f32 %v3920, %v3951
    %v3954 = vadd.f32 %v3952, %v3953
    %v3955 = vtanh.pop %v3954
    %v3956 = vmul.f32 %v3950, %v3955
    %v3957 = vld [vmem:[%s1619] sm:$0xff]
    %v3958 = vld [vmem:[%s1619 + $0x8] sm:$0xff]
    %v3959 = vld [vmem:[%s1619 + $0x10] sm:$0xff]
    %v3960 = vld [vmem:[%s1619 + $0x18] sm:$0xff]
    %v3961 = vpack.c.bf16 %v3956, %v3956
    %3962 = vmatpush.bf16.msra.mxu0 %v3430
    %3963 = vmatpush.bf16.msra.mxu0 %v3426
    %3964 = vmatpush.bf16.msra.mxu0 %v3422
    %3965 = vmatpush.bf16.msra.mxu0 %v3418
    %3966 = vmatpush.bf16.msra.mxu0 %v3414
    %3967 = vmatpush.bf16.msra.mxu0 %v3410
    %3968 = vmatpush.bf16.msra.mxu0 %v3406
    %3969 = vmatpush.bf16.msra.mxu0 %v3402
    %3970 = vmatmul.bf16.gmra.mxu0 %v3961
    %v3971 = vpop.f32.mrf.mxu0
    %v3972 = vadd.f32 0.0, %v3971
    %v3973 = vpop.f32.mrf.mxu0
    %3974 = vdwg.mxu0
    %3975 = vmatpush.bf16.msra.mxu0 %v3431
    %3976 = vmatpush.bf16.msra.mxu0 %v3427
    %3977 = vmatpush.bf16.msra.mxu0 %v3423
    %3978 = vmatpush.bf16.msra.mxu0 %v3419
    %3979 = vmatpush.bf16.msra.mxu0 %v3415
    %3980 = vmatpush.bf16.msra.mxu0 %v3411
    %3981 = vmatpush.bf16.msra.mxu0 %v3407
    %3982 = vmatpush.bf16.msra.mxu0 %v3403
    %3983 = vmatmul.bf16.gmra.mxu0 %v3961
    %v3984 = vpop.f32.mrf.mxu0
    %v3985 = vadd.f32 0.0, %v3984
    %v3986 = vpop.f32.mrf.mxu0
    %3987 = vdwg.mxu0
    %3988 = vmatpush.bf16.msra.mxu0 %v3432
    %3989 = vmatpush.bf16.msra.mxu0 %v3428
    %3990 = vmatpush.bf16.msra.mxu0 %v3424
    %3991 = vmatpush.bf16.msra.mxu0 %v3420
    %3992 = vmatpush.bf16.msra.mxu0 %v3416
    %3993 = vmatpush.bf16.msra.mxu0 %v3412
    %3994 = vmatpush.bf16.msra.mxu0 %v3408
    %3995 = vmatpush.bf16.msra.mxu0 %v3404
    %3996 = vmatmul.bf16.gmra.mxu0 %v3961
    %v3997 = vpop.f32.mrf.mxu0
    %v3998 = vadd.f32 0.0, %v3997
    %v3999 = vpop.f32.mrf.mxu0
    %4000 = vdwg.mxu0
    %4001 = vmatpush.bf16.msra.mxu0 %v3433
    %4002 = vmatpush.bf16.msra.mxu0 %v3429
    %4003 = vmatpush.bf16.msra.mxu0 %v3425
    %4004 = vmatpush.bf16.msra.mxu0 %v3421
    %4005 = vmatpush.bf16.msra.mxu0 %v3417
    %4006 = vmatpush.bf16.msra.mxu0 %v3413
    %4007 = vmatpush.bf16.msra.mxu0 %v3409
    %4008 = vmatpush.bf16.msra.mxu0 %v3405
    %4009 = vmatmul.bf16.gmra.mxu0 %v3961
    %v4010 = vpop.f32.mrf.mxu0
    %v4011 = vadd.f32 0.0, %v4010
    %v4012 = vpop.f32.mrf.mxu0
    %4013 = vdwg.mxu0
    %v4014 = vadd.f32 %v3957, %v3972
    %v4015 = vadd.f32 %v3958, %v3985
    %v4016 = vadd.f32 %v3959, %v3998
    %v4017 = vadd.f32 %v3960, %v4011
    %v4018 = vxor.u32 %v4014, 2147483648
    %v4019 = vxor.u32 %v4015, 2147483648
    %v4020 = vxor.u32 %v4016, 2147483648
    %v4021 = vmul.f32 %v4018, 1.442695
    %v4022 = vpow.pop %v4021
    %v4023 = vmul.f32 %v4019, 1.442695
    %v4024 = vpow.pop %v4023
    %v4025 = vmul.f32 %v4020, 1.442695
    %v4026 = vpow.pop %v4025
    %v4027 = vadd.f32 %v4022, 1.0
    %v4028 = vadd.f32 %v4024, 1.0
    %v4029 = vadd.f32 %v4026, 1.0
    %v4030 = vrcp.pop %v4027
    %v4031 = vmul.f32 %v4027, %v4030
    %v4032 = vsub.f32 1.0, %v4031
    %v4033 = vmul.f32 %v4030, %v4032
    %v4034 = vadd.f32 %v4030, %v4033
    %vm4035 = vweird.f32 %v4027
    %vm4036 = vweird.f32 %v4030
    %vm4037 = vmor %vm4035, %vm4036
    %v4038 = vsel %vm4037, %v4030, %v4034
    %v4039 = vand.u32 2147483647, %v4027
    %vm4040 = vcmp.eq.f32.partialorder %v4039, 8.507059e+37
    %v4041 = vand.u32 %v4027, 2147483648
    %v4042 = vor.u32 1.1754944e-38, %v4041
    %v4043 = vsel %vm4040, %v4042, %v4038
    %v4044 = vmul.f32 1.0, %v4043
    %v4045 = vrcp.pop %v4028
    %v4046 = vmul.f32 %v4028, %v4045
    %v4047 = vsub.f32 1.0, %v4046
    %v4048 = vmul.f32 %v4045, %v4047
    %v4049 = vadd.f32 %v4045, %v4048
    %vm4050 = vweird.f32 %v4028
    %vm4051 = vweird.f32 %v4045
    %vm4052 = vmor %vm4050, %vm4051
    %v4053 = vsel %vm4052, %v4045, %v4049
    %v4054 = vand.u32 2147483647, %v4028
    %vm4055 = vcmp.eq.f32.partialorder %v4054, 8.507059e+37
    %v4056 = vand.u32 %v4028, 2147483648
    %v4057 = vor.u32 1.1754944e-38, %v4056
    %v4058 = vsel %vm4055, %v4057, %v4053
    %v4059 = vmul.f32 1.0, %v4058
    %v4060 = vrcp.pop %v4029
    %v4061 = vmul.f32 %v4029, %v4060
    %v4062 = vsub.f32 1.0, %v4061
    %v4063 = vmul.f32 %v4060, %v4062
    %v4064 = vadd.f32 %v4060, %v4063
    %vm4065 = vweird.f32 %v4029
    %vm4066 = vweird.f32 %v4060
    %vm4067 = vmor %vm4065, %vm4066
    %v4068 = vsel %vm4067, %v4060, %v4064
    %v4069 = vand.u32 2147483647, %v4029
    %vm4070 = vcmp.eq.f32.partialorder %v4069, 8.507059e+37
    %v4071 = vand.u32 %v4029, 2147483648
    %v4072 = vor.u32 1.1754944e-38, %v4071
    %v4073 = vsel %vm4070, %v4072, %v4068
    %v4074 = vmul.f32 1.0, %v4073
    %v4075 = vtanh.pop %v4017
    %v4076 = vmul.f32 %v4059, %v3954
    %v4077 = vmul.f32 %v4044, %v4075
    %v4078 = vadd.f32 %v4076, %v4077
    %v4079 = vtanh.pop %v4078
    %v4080 = vmul.f32 %v4074, %v4079
    %v4081 = vld [vmem:[%s1940] sm:$0xff]
    %v4082 = vld [vmem:[%s1940 + $0x8] sm:$0xff]
    %v4083 = vld [vmem:[%s1940 + $0x10] sm:$0xff]
    %v4084 = vld [vmem:[%s1940 + $0x18] sm:$0xff]
    %v4085 = vpack.c.bf16 %v4080, %v4080
    %4086 = vmatpush.bf16.msra.mxu0 %v3430
    %4087 = vmatpush.bf16.msra.mxu0 %v3426
    %4088 = vmatpush.bf16.msra.mxu0 %v3422
    %4089 = vmatpush.bf16.msra.mxu0 %v3418
    %4090 = vmatpush.bf16.msra.mxu0 %v3414
    %4091 = vmatpush.bf16.msra.mxu0 %v3410
    %4092 = vmatpush.bf16.msra.mxu0 %v3406
    %4093 = vmatpush.bf16.msra.mxu0 %v3402
    %4094 = vmatmul.bf16.gmra.mxu0 %v4085
    %v4095 = vpop.f32.mrf.mxu0
    %v4096 = vadd.f32 0.0, %v4095
    %v4097 = vpop.f32.mrf.mxu0
    %4098 = vdwg.mxu0
    %4099 = vmatpush.bf16.msra.mxu0 %v3431
    %4100 = vmatpush.bf16.msra.mxu0 %v3427
    %4101 = vmatpush.bf16.msra.mxu0 %v3423
    %4102 = vmatpush.bf16.msra.mxu0 %v3419
    %4103 = vmatpush.bf16.msra.mxu0 %v3415
    %4104 = vmatpush.bf16.msra.mxu0 %v3411
    %4105 = vmatpush.bf16.msra.mxu0 %v3407
    %4106 = vmatpush.bf16.msra.mxu0 %v3403
    %4107 = vmatmul.bf16.gmra.mxu0 %v4085
    %v4108 = vpop.f32.mrf.mxu0
    %v4109 = vadd.f32 0.0, %v4108
    %v4110 = vpop.f32.mrf.mxu0
    %4111 = vdwg.mxu0
    %4112 = vmatpush.bf16.msra.mxu0 %v3432
    %4113 = vmatpush.bf16.msra.mxu0 %v3428
    %4114 = vmatpush.bf16.msra.mxu0 %v3424
    %4115 = vmatpush.bf16.msra.mxu0 %v3420
    %4116 = vmatpush.bf16.msra.mxu0 %v3416
    %4117 = vmatpush.bf16.msra.mxu0 %v3412
    %4118 = vmatpush.bf16.msra.mxu0 %v3408
    %4119 = vmatpush.bf16.msra.mxu0 %v3404
    %4120 = vmatmul.bf16.gmra.mxu0 %v4085
    %v4121 = vpop.f32.mrf.mxu0
    %v4122 = vadd.f32 0.0, %v4121
    %v4123 = vpop.f32.mrf.mxu0
    %4124 = vdwg.mxu0
    %4125 = vmatpush.bf16.msra.mxu0 %v3433
    %4126 = vmatpush.bf16.msra.mxu0 %v3429
    %4127 = vmatpush.bf16.msra.mxu0 %v3425
    %4128 = vmatpush.bf16.msra.mxu0 %v3421
    %4129 = vmatpush.bf16.msra.mxu0 %v3417
    %4130 = vmatpush.bf16.msra.mxu0 %v3413
    %4131 = vmatpush.bf16.msra.mxu0 %v3409
    %4132 = vmatpush.bf16.msra.mxu0 %v3405
    %4133 = vmatmul.bf16.gmra.mxu0 %v4085
    %v4134 = vpop.f32.mrf.mxu0
    %v4135 = vadd.f32 0.0, %v4134
    %v4136 = vpop.f32.mrf.mxu0
    %4137 = vdwg.mxu0
    %v4138 = vadd.f32 %v4081, %v4096
    %v4139 = vadd.f32 %v4082, %v4109
    %v4140 = vadd.f32 %v4083, %v4122
    %v4141 = vadd.f32 %v4084, %v4135
    %v4142 = vxor.u32 %v4138, 2147483648
    %v4143 = vxor.u32 %v4139, 2147483648
    %v4144 = vxor.u32 %v4140, 2147483648
    %v4145 = vmul.f32 %v4142, 1.442695
    %v4146 = vpow.pop %v4145
    %v4147 = vmul.f32 %v4143, 1.442695
    %v4148 = vpow.pop %v4147
    %v4149 = vmul.f32 %v4144, 1.442695
    %v4150 = vpow.pop %v4149
    %v4151 = vadd.f32 %v4146, 1.0
    %v4152 = vadd.f32 %v4148, 1.0
    %v4153 = vadd.f32 %v4150, 1.0
    %v4154 = vrcp.pop %v4151
    %v4155 = vmul.f32 %v4151, %v4154
    %v4156 = vsub.f32 1.0, %v4155
    %v4157 = vmul.f32 %v4154, %v4156
    %v4158 = vadd.f32 %v4154, %v4157
    %vm4159 = vweird.f32 %v4151
    %vm4160 = vweird.f32 %v4154
    %vm4161 = vmor %vm4159, %vm4160
    %v4162 = vsel %vm4161, %v4154, %v4158
    %v4163 = vand.u32 2147483647, %v4151
    %vm4164 = vcmp.eq.f32.partialorder %v4163, 8.507059e+37
    %v4165 = vand.u32 %v4151, 2147483648
    %v4166 = vor.u32 1.1754944e-38, %v4165
    %v4167 = vsel %vm4164, %v4166, %v4162
    %v4168 = vmul.f32 1.0, %v4167
    %v4169 = vrcp.pop %v4152
    %v4170 = vmul.f32 %v4152, %v4169
    %v4171 = vsub.f32 1.0, %v4170
    %v4172 = vmul.f32 %v4169, %v4171
    %v4173 = vadd.f32 %v4169, %v4172
    %vm4174 = vweird.f32 %v4152
    %vm4175 = vweird.f32 %v4169
    %vm4176 = vmor %vm4174, %vm4175
    %v4177 = vsel %vm4176, %v4169, %v4173
    %v4178 = vand.u32 2147483647, %v4152
    %vm4179 = vcmp.eq.f32.partialorder %v4178, 8.507059e+37
    %v4180 = vand.u32 %v4152, 2147483648
    %v4181 = vor.u32 1.1754944e-38, %v4180
    %v4182 = vsel %vm4179, %v4181, %v4177
    %v4183 = vmul.f32 1.0, %v4182
    %v4184 = vrcp.pop %v4153
    %v4185 = vmul.f32 %v4153, %v4184
    %v4186 = vsub.f32 1.0, %v4185
    %v4187 = vmul.f32 %v4184, %v4186
    %v4188 = vadd.f32 %v4184, %v4187
    %vm4189 = vweird.f32 %v4153
    %vm4190 = vweird.f32 %v4184
    %vm4191 = vmor %vm4189, %vm4190
    %v4192 = vsel %vm4191, %v4184, %v4188
    %v4193 = vand.u32 2147483647, %v4153
    %vm4194 = vcmp.eq.f32.partialorder %v4193, 8.507059e+37
    %v4195 = vand.u32 %v4153, 2147483648
    %v4196 = vor.u32 1.1754944e-38, %v4195
    %v4197 = vsel %vm4194, %v4196, %v4192
    %v4198 = vmul.f32 1.0, %v4197
    %v4199 = vtanh.pop %v4141
    %v4200 = vmul.f32 %v4183, %v4078
    %v4201 = vmul.f32 %v4168, %v4199
    %v4202 = vadd.f32 %v4200, %v4201
    %v4203 = vtanh.pop %v4202
    %v4204 = vmul.f32 %v4198, %v4203
    %v4205 = vld [vmem:[%s2261] sm:$0xff]
    %v4206 = vld [vmem:[%s2261 + $0x8] sm:$0xff]
    %v4207 = vld [vmem:[%s2261 + $0x10] sm:$0xff]
    %v4208 = vld [vmem:[%s2261 + $0x18] sm:$0xff]
    %v4209 = vpack.c.bf16 %v4204, %v4204
    %4210 = vmatpush.bf16.msra.mxu0 %v3430
    %4211 = vmatpush.bf16.msra.mxu0 %v3426
    %4212 = vmatpush.bf16.msra.mxu0 %v3422
    %4213 = vmatpush.bf16.msra.mxu0 %v3418
    %4214 = vmatpush.bf16.msra.mxu0 %v3414
    %4215 = vmatpush.bf16.msra.mxu0 %v3410
    %4216 = vmatpush.bf16.msra.mxu0 %v3406
    %4217 = vmatpush.bf16.msra.mxu0 %v3402
    %4218 = vmatmul.bf16.gmra.mxu0 %v4209
    %v4219 = vpop.f32.mrf.mxu0
    %v4220 = vadd.f32 0.0, %v4219
    %v4221 = vpop.f32.mrf.mxu0
    %4222 = vdwg.mxu0
    %4223 = vmatpush.bf16.msra.mxu0 %v3431
    %4224 = vmatpush.bf16.msra.mxu0 %v3427
    %4225 = vmatpush.bf16.msra.mxu0 %v3423
    %4226 = vmatpush.bf16.msra.mxu0 %v3419
    %4227 = vmatpush.bf16.msra.mxu0 %v3415
    %4228 = vmatpush.bf16.msra.mxu0 %v3411
    %4229 = vmatpush.bf16.msra.mxu0 %v3407
    %4230 = vmatpush.bf16.msra.mxu0 %v3403
    %4231 = vmatmul.bf16.gmra.mxu0 %v4209
    %v4232 = vpop.f32.mrf.mxu0
    %v4233 = vadd.f32 0.0, %v4232
    %v4234 = vpop.f32.mrf.mxu0
    %4235 = vdwg.mxu0
    %4236 = vmatpush.bf16.msra.mxu0 %v3432
    %4237 = vmatpush.bf16.msra.mxu0 %v3428
    %4238 = vmatpush.bf16.msra.mxu0 %v3424
    %4239 = vmatpush.bf16.msra.mxu0 %v3420
    %4240 = vmatpush.bf16.msra.mxu0 %v3416
    %4241 = vmatpush.bf16.msra.mxu0 %v3412
    %4242 = vmatpush.bf16.msra.mxu0 %v3408
    %4243 = vmatpush.bf16.msra.mxu0 %v3404
    %4244 = vmatmul.bf16.gmra.mxu0 %v4209
    %v4245 = vpop.f32.mrf.mxu0
    %v4246 = vadd.f32 0.0, %v4245
    %v4247 = vpop.f32.mrf.mxu0
    %4248 = vdwg.mxu0
    %4249 = vmatpush.bf16.msra.mxu0 %v3433
    %4250 = vmatpush.bf16.msra.mxu0 %v3429
    %4251 = vmatpush.bf16.msra.mxu0 %v3425
    %4252 = vmatpush.bf16.msra.mxu0 %v3421
    %4253 = vmatpush.bf16.msra.mxu0 %v3417
    %4254 = vmatpush.bf16.msra.mxu0 %v3413
    %4255 = vmatpush.bf16.msra.mxu0 %v3409
    %4256 = vmatpush.bf16.msra.mxu0 %v3405
    %4257 = vmatmul.bf16.gmra.mxu0 %v4209
    %v4258 = vpop.f32.mrf.mxu0
    %v4259 = vadd.f32 0.0, %v4258
    %v4260 = vpop.f32.mrf.mxu0
    %4261 = vdwg.mxu0
    %v4262 = vadd.f32 %v4205, %v4220
    %v4263 = vadd.f32 %v4206, %v4233
    %v4264 = vadd.f32 %v4207, %v4246
    %v4265 = vadd.f32 %v4208, %v4259
    %v4266 = vxor.u32 %v4262, 2147483648
    %v4267 = vxor.u32 %v4263, 2147483648
    %v4268 = vxor.u32 %v4264, 2147483648
    %v4269 = vmul.f32 %v4266, 1.442695
    %v4270 = vpow.pop %v4269
    %v4271 = vmul.f32 %v4267, 1.442695
    %v4272 = vpow.pop %v4271
    %v4273 = vmul.f32 %v4268, 1.442695
    %v4274 = vpow.pop %v4273
    %v4275 = vadd.f32 %v4270, 1.0
    %v4276 = vadd.f32 %v4272, 1.0
    %v4277 = vadd.f32 %v4274, 1.0
    %v4278 = vrcp.pop %v4275
    %v4279 = vmul.f32 %v4275, %v4278
    %v4280 = vsub.f32 1.0, %v4279
    %v4281 = vmul.f32 %v4278, %v4280
    %v4282 = vadd.f32 %v4278, %v4281
    %vm4283 = vweird.f32 %v4275
    %vm4284 = vweird.f32 %v4278
    %vm4285 = vmor %vm4283, %vm4284
    %v4286 = vsel %vm4285, %v4278, %v4282
    %v4287 = vand.u32 2147483647, %v4275
    %vm4288 = vcmp.eq.f32.partialorder %v4287, 8.507059e+37
    %v4289 = vand.u32 %v4275, 2147483648
    %v4290 = vor.u32 1.1754944e-38, %v4289
    %v4291 = vsel %vm4288, %v4290, %v4286
    %v4292 = vmul.f32 1.0, %v4291
    %v4293 = vrcp.pop %v4276
    %v4294 = vmul.f32 %v4276, %v4293
    %v4295 = vsub.f32 1.0, %v4294
    %v4296 = vmul.f32 %v4293, %v4295
    %v4297 = vadd.f32 %v4293, %v4296
    %vm4298 = vweird.f32 %v4276
    %vm4299 = vweird.f32 %v4293
    %vm4300 = vmor %vm4298, %vm4299
    %v4301 = vsel %vm4300, %v4293, %v4297
    %v4302 = vand.u32 2147483647, %v4276
    %vm4303 = vcmp.eq.f32.partialorder %v4302, 8.507059e+37
    %v4304 = vand.u32 %v4276, 2147483648
    %v4305 = vor.u32 1.1754944e-38, %v4304
    %v4306 = vsel %vm4303, %v4305, %v4301
    %v4307 = vmul.f32 1.0, %v4306
    %v4308 = vrcp.pop %v4277
    %v4309 = vmul.f32 %v4277, %v4308
    %v4310 = vsub.f32 1.0, %v4309
    %v4311 = vmul.f32 %v4308, %v4310
    %v4312 = vadd.f32 %v4308, %v4311
    %vm4313 = vweird.f32 %v4277
    %vm4314 = vweird.f32 %v4308
    %vm4315 = vmor %vm4313, %vm4314
    %v4316 = vsel %vm4315, %v4308, %v4312
    %v4317 = vand.u32 2147483647, %v4277
    %vm4318 = vcmp.eq.f32.partialorder %v4317, 8.507059e+37
    %v4319 = vand.u32 %v4277, 2147483648
    %v4320 = vor.u32 1.1754944e-38, %v4319
    %v4321 = vsel %vm4318, %v4320, %v4316
    %v4322 = vmul.f32 1.0, %v4321
    %v4323 = vtanh.pop %v4265
    %v4324 = vmul.f32 %v4307, %v4202
    %v4325 = vmul.f32 %v4292, %v4323
    %v4326 = vadd.f32 %v4324, %v4325
    %v4327 = vtanh.pop %v4326
    %v4328 = vmul.f32 %v4322, %v4327
    %v4329 = vld [vmem:[%s2582] sm:$0xff]
    %v4330 = vld [vmem:[%s2582 + $0x8] sm:$0xff]
    %v4331 = vld [vmem:[%s2582 + $0x10] sm:$0xff]
    %v4332 = vld [vmem:[%s2582 + $0x18] sm:$0xff]
    %v4333 = vpack.c.bf16 %v4328, %v4328
    %4334 = vmatpush.bf16.msra.mxu0 %v3430
    %4335 = vmatpush.bf16.msra.mxu0 %v3426
    %4336 = vmatpush.bf16.msra.mxu0 %v3422
    %4337 = vmatpush.bf16.msra.mxu0 %v3418
    %4338 = vmatpush.bf16.msra.mxu0 %v3414
    %4339 = vmatpush.bf16.msra.mxu0 %v3410
    %4340 = vmatpush.bf16.msra.mxu0 %v3406
    %4341 = vmatpush.bf16.msra.mxu0 %v3402
    %4342 = vmatmul.bf16.gmra.mxu0 %v4333
    %v4343 = vpop.f32.mrf.mxu0
    %v4344 = vadd.f32 0.0, %v4343
    %v4345 = vpop.f32.mrf.mxu0
    %4346 = vdwg.mxu0
    %4347 = vmatpush.bf16.msra.mxu0 %v3431
    %4348 = vmatpush.bf16.msra.mxu0 %v3427
    %4349 = vmatpush.bf16.msra.mxu0 %v3423
    %4350 = vmatpush.bf16.msra.mxu0 %v3419
    %4351 = vmatpush.bf16.msra.mxu0 %v3415
    %4352 = vmatpush.bf16.msra.mxu0 %v3411
    %4353 = vmatpush.bf16.msra.mxu0 %v3407
    %4354 = vmatpush.bf16.msra.mxu0 %v3403
    %4355 = vmatmul.bf16.gmra.mxu0 %v4333
    %v4356 = vpop.f32.mrf.mxu0
    %v4357 = vadd.f32 0.0, %v4356
    %v4358 = vpop.f32.mrf.mxu0
    %4359 = vdwg.mxu0
    %4360 = vmatpush.bf16.msra.mxu0 %v3432
    %4361 = vmatpush.bf16.msra.mxu0 %v3428
    %4362 = vmatpush.bf16.msra.mxu0 %v3424
    %4363 = vmatpush.bf16.msra.mxu0 %v3420
    %4364 = vmatpush.bf16.msra.mxu0 %v3416
    %4365 = vmatpush.bf16.msra.mxu0 %v3412
    %4366 = vmatpush.bf16.msra.mxu0 %v3408
    %4367 = vmatpush.bf16.msra.mxu0 %v3404
    %4368 = vmatmul.bf16.gmra.mxu0 %v4333
    %v4369 = vpop.f32.mrf.mxu0
    %v4370 = vadd.f32 0.0, %v4369
    %v4371 = vpop.f32.mrf.mxu0
    %4372 = vdwg.mxu0
    %4373 = vmatpush.bf16.msra.mxu0 %v3433
    %4374 = vmatpush.bf16.msra.mxu0 %v3429
    %4375 = vmatpush.bf16.msra.mxu0 %v3425
    %4376 = vmatpush.bf16.msra.mxu0 %v3421
    %4377 = vmatpush.bf16.msra.mxu0 %v3417
    %4378 = vmatpush.bf16.msra.mxu0 %v3413
    %4379 = vmatpush.bf16.msra.mxu0 %v3409
    %4380 = vmatpush.bf16.msra.mxu0 %v3405
    %4381 = vmatmul.bf16.gmra.mxu0 %v4333
    %v4382 = vpop.f32.mrf.mxu0
    %v4383 = vadd.f32 0.0, %v4382
    %v4384 = vpop.f32.mrf.mxu0
    %4385 = vdwg.mxu0
    %v4386 = vadd.f32 %v4329, %v4344
    %v4387 = vadd.f32 %v4330, %v4357
    %v4388 = vadd.f32 %v4331, %v4370
    %v4389 = vadd.f32 %v4332, %v4383
    %v4390 = vxor.u32 %v4386, 2147483648
    %v4391 = vxor.u32 %v4387, 2147483648
    %v4392 = vxor.u32 %v4388, 2147483648
    %v4393 = vmul.f32 %v4390, 1.442695
    %v4394 = vpow.pop %v4393
    %v4395 = vmul.f32 %v4391, 1.442695
    %v4396 = vpow.pop %v4395
    %v4397 = vmul.f32 %v4392, 1.442695
    %v4398 = vpow.pop %v4397
    %v4399 = vadd.f32 %v4394, 1.0
    %v4400 = vadd.f32 %v4396, 1.0
    %v4401 = vadd.f32 %v4398, 1.0
    %v4402 = vrcp.pop %v4399
    %v4403 = vmul.f32 %v4399, %v4402
    %v4404 = vsub.f32 1.0, %v4403
    %v4405 = vmul.f32 %v4402, %v4404
    %v4406 = vadd.f32 %v4402, %v4405
    %vm4407 = vweird.f32 %v4399
    %vm4408 = vweird.f32 %v4402
    %vm4409 = vmor %vm4407, %vm4408
    %v4410 = vsel %vm4409, %v4402, %v4406
    %v4411 = vand.u32 2147483647, %v4399
    %vm4412 = vcmp.eq.f32.partialorder %v4411, 8.507059e+37
    %v4413 = vand.u32 %v4399, 2147483648
    %v4414 = vor.u32 1.1754944e-38, %v4413
    %v4415 = vsel %vm4412, %v4414, %v4410
    %v4416 = vmul.f32 1.0, %v4415
    %v4417 = vrcp.pop %v4400
    %v4418 = vmul.f32 %v4400, %v4417
    %v4419 = vsub.f32 1.0, %v4418
    %v4420 = vmul.f32 %v4417, %v4419
    %v4421 = vadd.f32 %v4417, %v4420
    %vm4422 = vweird.f32 %v4400
    %vm4423 = vweird.f32 %v4417
    %vm4424 = vmor %vm4422, %vm4423
    %v4425 = vsel %vm4424, %v4417, %v4421
    %v4426 = vand.u32 2147483647, %v4400
    %vm4427 = vcmp.eq.f32.partialorder %v4426, 8.507059e+37
    %v4428 = vand.u32 %v4400, 2147483648
    %v4429 = vor.u32 1.1754944e-38, %v4428
    %v4430 = vsel %vm4427, %v4429, %v4425
    %v4431 = vmul.f32 1.0, %v4430
    %v4432 = vrcp.pop %v4401
    %v4433 = vmul.f32 %v4401, %v4432
    %v4434 = vsub.f32 1.0, %v4433
    %v4435 = vmul.f32 %v4432, %v4434
    %v4436 = vadd.f32 %v4432, %v4435
    %vm4437 = vweird.f32 %v4401
    %vm4438 = vweird.f32 %v4432
    %vm4439 = vmor %vm4437, %vm4438
    %v4440 = vsel %vm4439, %v4432, %v4436
    %v4441 = vand.u32 2147483647, %v4401
    %vm4442 = vcmp.eq.f32.partialorder %v4441, 8.507059e+37
    %v4443 = vand.u32 %v4401, 2147483648
    %v4444 = vor.u32 1.1754944e-38, %v4443
    %v4445 = vsel %vm4442, %v4444, %v4440
    %v4446 = vmul.f32 1.0, %v4445
    %v4447 = vtanh.pop %v4389
    %v4448 = vmul.f32 %v4431, %v4326
    %v4449 = vmul.f32 %v4416, %v4447
    %v4450 = vadd.f32 %v4448, %v4449
    %v4451 = vtanh.pop %v4450
    %v4452 = vmul.f32 %v4446, %v4451
    %4453 = vst [vmem:[%s3265] sm:$0xff] %v4452
    %4454 = vst [vmem:[%s3267] sm:$0xff] %v4450
    // Predicated region
    $region58: #{tpu_custom_call.1} parent=1 // pred_check
      %p4455 = pneg %p101
    $region59: #{tpu_custom_call.1} parent=1 // pred_check_branch
      %4457 = sbr.rel (%p4455) target = $region61
    $region60: #{tpu_custom_call.1} parent=1 // pred_region
      %v4458 = vld [vmem:[#allocation2] sm:$0xff]
      %v4459 = vld [vmem:[#allocation2 + $0x8] sm:$0xff]
      %4460 = vst [vmem:[#allocation15] sm:$0xff] %v4458
      %4461 = vst [vmem:[#allocation15 + $0x8] sm:$0xff] %v4459
      %v4462 = vld [vmem:[#allocation3] sm:$0xff]
      %v4463 = vld [vmem:[#allocation3 + $0x8] sm:$0xff]
      %4464 = vst [vmem:[#allocation17] sm:$0xff] %v4462
      %4465 = vst [vmem:[#allocation17 + $0x8] sm:$0xff] %v4463
      %v4466 = vld [vmem:[%s3265] sm:$0xff]
      %v4467 = vpack.c.bf16 %v4466, %v4466
      %v4468 = vld [vmem:[#allocation12] sm:$0xf]
      %v4469 = vld [vmem:[#allocation12 + $0x4] sm:$0xf]
      %v4470 = vld [vmem:[#allocation12 + $0x8] sm:$0xf]
      %v4471 = vld [vmem:[#allocation12 + $0xc] sm:$0xf]
      %v4472 = vld [vmem:[#allocation12 + $0x10] sm:$0xf]
      %v4473 = vld [vmem:[#allocation12 + $0x14] sm:$0xf]
      %v4474 = vld [vmem:[#allocation12 + $0x18] sm:$0xf]
      %v4475 = vld [vmem:[#allocation12 + $0x1c] sm:$0xf]
      %v4476 = vld [vmem:[#allocation12 + $0x20] sm:$0xf]
      %v4477 = vld [vmem:[#allocation12 + $0x24] sm:$0xf]
      %v4478 = vld [vmem:[#allocation12 + $0x28] sm:$0xf]
      %v4479 = vld [vmem:[#allocation12 + $0x2c] sm:$0xf]
      %v4480 = vld [vmem:[#allocation12 + $0x30] sm:$0xf]
      %v4481 = vld [vmem:[#allocation12 + $0x34] sm:$0xf]
      %v4482 = vld [vmem:[#allocation12 + $0x38] sm:$0xf]
      %v4483 = vld [vmem:[#allocation12 + $0x3c] sm:$0xf]
      %v4484 = vld [vmem:[%s8] sm:$0x1]
      %v4486 = vperm.slane %v4484, 0
      %v4504 = vunpack.c.l.b16 %v4468
      %v4505 = vunpack.c.l.b16 %v4469
      %v4506 = vunpack.c.l.b16 %v4470
      %v4507 = vunpack.c.l.b16 %v4471
      %v4508 = vunpack.c.l.b16 %v4472
      %v4509 = vunpack.c.l.b16 %v4473
      %v4510 = vunpack.c.l.b16 %v4474
      %v4511 = vunpack.c.l.b16 %v4475
      %v4512 = vunpack.c.l.b16 %v4476
      %v4513 = vunpack.c.l.b16 %v4477
      %v4514 = vunpack.c.l.b16 %v4478
      %v4515 = vunpack.c.l.b16 %v4479
      %v4516 = vunpack.c.l.b16 %v4480
      %v4517 = vunpack.c.l.b16 %v4481
      %v4518 = vunpack.c.l.b16 %v4482
      %v4519 = vunpack.c.l.b16 %v4483
      %v4520 = vpack.c.b16 %v4505, %v4504
      %v4521 = vpack.c.b16 %v4507, %v4506
      %v4522 = vpack.c.b16 %v4509, %v4508
      %v4523 = vpack.c.b16 %v4511, %v4510
      %v4524 = vpack.c.b16 %v4513, %v4512
      %v4525 = vpack.c.b16 %v4515, %v4514
      %v4526 = vpack.c.b16 %v4517, %v4516
      %v4527 = vpack.c.b16 %v4519, %v4518
      %4536 = vmatpush.bf16.msra.mxu0 %v4527
      %4537 = vmatpush.bf16.msra.mxu0 %v4526
      %4538 = vmatpush.bf16.msra.mxu0 %v4525
      %4539 = vmatpush.bf16.msra.mxu0 %v4524
      %4540 = vmatpush.bf16.msra.mxu0 %v4523
      %4541 = vmatpush.bf16.msra.mxu0 %v4522
      %4542 = vmatpush.bf16.msra.mxu0 %v4521
      %4543 = vmatpush.bf16.msra.mxu0 %v4520
      %4544 = vmatmul.bf16.gmra.mxu0 %v4467
      %v4545 = vpop.f32.mrf.mxu0
      %v4546 = vadd.f32 %v4486, %v4545
      %v4547 = vpop.f32.mrf.mxu0
      %4548 = vdwg.mxu0
      %4549 = vst [vmem:[#allocation14] sm:$0xff] %v4546
    $region61: #{tpu_custom_call.1} parent=1 // pred_fallthru
      _
    // Predicated region
    $region62: #{tpu_custom_call.1} parent=1 // pred_check
      _
    $region63: #{tpu_custom_call.1} parent=1 // pred_check_branch
      %4551 = sbr.rel (0) target = $region65
    $region64: #{tpu_custom_call.1} parent=1 // pred_region
      %4553 = vsyncadd [#allocation8], 0
      %s4555 = sshll.u32 [#allocation14], 4
      %s4556 = int_to_ptr.vmem [resolvable:$true] %s4555
      %s4557 = sshll.u32 %s9, 4
      %s4558 = int_to_ptr.hbm [resolvable:$true] %s4557
      %4560 = dma.vmem_to_hbm [thread:$0]  %s4556, 128, %s4558, [#allocation8]
    $region65: #{tpu_custom_call.1} parent=1 // pred_fallthru
      _
    // Predicated region
    $region66: #{tpu_custom_call.1} parent=1 // pred_check
      _
    $region67: #{tpu_custom_call.1} parent=1 // pred_check_branch
      %4562 = sbr.rel (0) target = $region69
    $region68: #{tpu_custom_call.1} parent=1 // pred_region
      %4564 = vsyncadd [#allocation16], 0
      %s4565 = sshll.u32 [#allocation15], 4
      %s4566 = int_to_ptr.vmem [resolvable:$true] %s4565
      %s4567 = sshll.u32 %s10, 4
      %s4568 = int_to_ptr.hbm [resolvable:$true] %s4567
      %4573 = dma.vmem_to_hbm [thread:$0]  %s4566, 256, %s4568, [#allocation16], 128, 128, 8
    $region69: #{tpu_custom_call.1} parent=1 // pred_fallthru
      _
    // Predicated region
    $region70: #{tpu_custom_call.1} parent=1 // pred_check
      _
    $region71: #{tpu_custom_call.1} parent=1 // pred_check_branch
      %4575 = sbr.rel (0) target = $region73
    $region72: #{tpu_custom_call.1} parent=1 // pred_region
      %4577 = vsyncadd [#allocation16], 0
      %s4578 = sshll.u32 [#allocation17], 4
      %s4579 = int_to_ptr.vmem [resolvable:$true] %s4578
      %s4580 = sshll.u32 %s11, 4
      %s4581 = int_to_ptr.hbm [resolvable:$true] %s4580
      %4586 = dma.vmem_to_hbm [thread:$0]  %s4579, 256, %s4581, [#allocation16], 128, 128, 8
    $region73: #{tpu_custom_call.1} parent=1 // pred_fallthru
      _
    // Predicated region
    $region74: #{tpu_custom_call.1} parent=1 // pred_check
      _
    $region75: #{tpu_custom_call.1} parent=1 // pred_check_branch
      %4588 = sbr.rel (0) target = $region77
    $region76: #{tpu_custom_call.1} parent=1 // pred_region
      %4590 = dma.done [#allocation8], 128
    $region77: #{tpu_custom_call.1} parent=1 // pred_fallthru
      _
    // Predicated region
    $region78: #{tpu_custom_call.1} parent=1 // pred_check
      _
    $region79: #{tpu_custom_call.1} parent=1 // pred_check_branch
      %4592 = sbr.rel (0) target = $region81
    $region80: #{tpu_custom_call.1} parent=1 // pred_region
      %4594 = dma.done [#allocation16], 256
    $region81: #{tpu_custom_call.1} parent=1 // pred_fallthru
      _
    // Predicated region
    $region82: #{tpu_custom_call.1} parent=1 // pred_check
      _
    $region83: #{tpu_custom_call.1} parent=1 // pred_check_branch
      %4596 = sbr.rel (0) target = $region85
    $region84: #{tpu_custom_call.1} parent=1 // pred_region
      %4598 = dma.done [#allocation16], 256
    $region85: #{tpu_custom_call.1} parent=1 // pred_fallthru
      _
    %4599 = vsyncpa [#allocation7], 1
    %4600 = vsyncpa [#allocation10], 1
    %4601 = vsyncpa [#allocation13], 1
    %4602 = vsyncpa [#allocation8], 1
    %4603 = vsyncpa [#allocation16], 1

</llo_original>
